<compile_context>
chip_gen: v7x
topology: tpu7x:2x2x1
jax: 0.10.0
libtpu: 0.0.40
codegen_flags: <defaults>
</compile_context>

<pallas_src>
import numpy as np

import jax
import jax.numpy as jnp
from jax.experimental import pallas as pl

# ----------------------------- model constants ------------------------------
D = 8          # d
Z = 16         # latent dim
F = 8          # self.f (encoder output spatial) -> input must be 32x32
BATCH = 2
IMG = 32
LRELU_SLOPE = 0.01
BN_EPS = 1e-5


# ------------------------------ Pallas kernels -------------------------------
def _act(y, kind):
    if kind == "relu":
        return jnp.maximum(y, 0.0)
    if kind == "leaky_relu":
        return jnp.where(y > 0, y, LRELU_SLOPE * y)
    if kind == "sigmoid":
        return jax.nn.sigmoid(y)
    return y


def _make_fused_kernel(*, has_bias, has_res, has_bn, bn_groups, inv_count,
                       pre_act, post_act):
    """One-shot kernel: post_act(BN(pre_act(A) @ W + bias + residual)).

    BN uses training-mode batch statistics computed over the VMEM-resident
    output (two-pass mean/variance, biased variance like PyTorch).  For the
    stride-split conv-transpose the output columns hold `bn_groups` sub-pixel
    copies of each channel; `cmap` (a 0/1 channel-equivalence matrix) merges
    and re-broadcasts the statistics across those groups with one tiny,
    tile-aligned MXU matmul (no lane gathers / concats needed).
    """

    def kernel(*refs):
        it = iter(refs)
        a_ref = next(it)
        w_ref = next(it)
        bias_ref = next(it) if has_bias else None
        res_ref = next(it) if has_res else None
        if has_bn:
            gamma_ref = next(it)                              # (1, N) pre-tiled
            beta_ref = next(it)                               # (1, N) pre-tiled
            cmap_ref = next(it) if bn_groups > 1 else None    # (N, N)
        o_ref = next(it)

        a = _act(a_ref[...], pre_act)
        y = jnp.dot(a, w_ref[...], preferred_element_type=jnp.float32)
        if has_bias:
            y = y + bias_ref[...]
        if has_res:
            y = y + res_ref[...]
        if has_bn:
            s = jnp.sum(y, axis=0, keepdims=True)             # (1, N)
            if bn_groups > 1:
                s = jnp.dot(s, cmap_ref[...],
                            preferred_element_type=jnp.float32)
            mean = s * inv_count                              # per-channel mean
            cen = y - mean
            sq = jnp.sum(cen * cen, axis=0, keepdims=True)
            if bn_groups > 1:
                sq = jnp.dot(sq, cmap_ref[...],
                             preferred_element_type=jnp.float32)
            var = sq * inv_count                              # biased (PyTorch train)
            inv = jax.lax.rsqrt(var + BN_EPS)
            y = cen * inv * gamma_ref[...] + beta_ref[...]
        o_ref[...] = _act(y, post_act)

    return kernel


def fused_matmul(a, w, *, bias=None, residual=None, bn=None, bn_groups=1,
                 pre_act="none", post_act="none"):
    """Single-grid-step pallas_call; all operands VMEM resident (<= ~100 KiB)."""
    m = a.shape[0]
    n = w.shape[1]
    inputs = [a, w]
    if bias is not None:
        inputs.append(bias)
    if residual is not None:
        inputs.append(residual)
    if bn is not None:
        gamma, beta = bn                          # prepared as (1, n)
        inputs += [gamma, beta]
        if bn_groups > 1:
            c = n // bn_groups
            # channel-equivalence matrix: cmap[i, j] = 1 iff columns i, j hold
            # the same BN channel.  Compile-time constant (folded by XLA).
            cmap = jnp.tile(jnp.eye(c, dtype=jnp.float32),
                            (bn_groups, bn_groups))
            inputs.append(cmap)
    kernel = _make_fused_kernel(
        has_bias=bias is not None, has_res=residual is not None,
        has_bn=bn is not None, bn_groups=bn_groups,
        inv_count=1.0 / float(m * bn_groups),
        pre_act=pre_act, post_act=post_act)
    return pl.pallas_call(
        kernel, out_shape=jax.ShapeDtypeStruct((m, n), jnp.float32),
    )(*inputs)


def _fc_reparam_kernel(h_ref, wml_ref, bml_ref, eps_ref, w21_ref, b21_ref,
                       mu_ref, lv_ref, hi_ref, hp_ref):
    """fc11|fc12 (one concatenated matmul) + reparameterize + fc21, fused."""
    ml = jnp.dot(h_ref[...], wml_ref[...],
                 preferred_element_type=jnp.float32) + bml_ref[...]
    mu = ml[:, :Z]
    lv = ml[:, Z:]
    hi = eps_ref[...] * jnp.exp(0.5 * lv) + mu
    hp = jnp.dot(hi, w21_ref[...],
                 preferred_element_type=jnp.float32) + b21_ref[...]
    mu_ref[...] = mu
    lv_ref[...] = lv
    hi_ref[...] = hi
    hp_ref[...] = hp


def fc_reparam(h1, eps, p):
    n = h1.shape[0]
    f32 = jnp.float32
    return pl.pallas_call(
        _fc_reparam_kernel,
        out_shape=(jax.ShapeDtypeStruct((n, Z), f32),
                   jax.ShapeDtypeStruct((n, Z), f32),
                   jax.ShapeDtypeStruct((n, Z), f32),
                   jax.ShapeDtypeStruct((n, D * F * F), f32)),
    )(h1, p["fc_ml_w"], p["fc_ml_b"], eps, p["fc21_w"], p["fc21_b"])


# ------------------------------ layer helpers --------------------------------
def _im2col(x, k, stride, pad):
    """NHWC -> (N*oh*ow, k*k*C) patches, column order (kh, kw, Cin)."""
    n, h, w, c = x.shape
    xp = jnp.pad(x, ((0, 0), (pad, pad), (pad, pad), (0, 0)))
    oh = (h + 2 * pad - k) // stride + 1
    ow = (w + 2 * pad - k) // stride + 1
    cols = []
    for di in range(k):
        for dj in range(k):
            cols.append(xp[:, di:di + stride * (oh - 1) + 1:stride,
                              dj:dj + stride * (ow - 1) + 1:stride, :])
    patches = jnp.stack(cols, axis=3)                 # (N, oh, ow, k*k, C)
    return patches.reshape(n * oh * ow, k * k * c), (n, oh, ow)


def conv_layer(x, w, *, k, stride, pad, bias=None, bn=None,
               pre_act="none", post_act="none"):
    """Conv2d + (BN) + (act) as one fused kernel (im2col done as cheap glue)."""
    a, (n, oh, ow) = _im2col(x, k, stride, pad)
    y = fused_matmul(a, w, bias=bias, bn=bn, pre_act=pre_act, post_act=post_act)
    return y.reshape(n, oh, ow, -1)


def resblock(x, p, pre, out_bn):
    """ResBlock(d, d, bn=True) in 2 fused kernels.

    kernel 1: LeakyReLU (pre-act on patches; leaky(0)=0 so it commutes with the
              zero padding of im2col) -> Conv3x3+bias -> BN -> LeakyReLU
    kernel 2: Conv1x1+bias -> +x (residual) -> optional trailing BatchNorm that
              follows the block in the encoder/decoder (folded in, `out_bn`).
    """
    n, h, w, c = x.shape
    a, _ = _im2col(x, 3, 1, 1)
    y = fused_matmul(a, p[f"{pre}_w1"], bias=p[f"{pre}_b1"], bn=p[f"{pre}_bn"],
                     pre_act="leaky_relu", post_act="leaky_relu")
    y = fused_matmul(y, p[f"{pre}_w2"], bias=p[f"{pre}_b2"],
                     residual=x.reshape(-1, c), bn=out_bn)
    return y.reshape(n, h, w, c)


def conv_transpose_layer(x, w2, cout, *, bn=None, post_act="none"):
    """ConvTranspose2d(k=4, s=2, p=1, bias=False) in stride-split form.

    k=3/s=1/p=1 im2col over the ORIGINAL input + one matmul producing the 4
    sub-pixels per output channel (columns ordered (r_h, r_w, Cout)), then a
    depth-to-space reshape.  BN (group-aware) / activation are fused in-kernel.
    """
    n, h, w, _ = x.shape
    a, _ = _im2col(x, 3, 1, 1)                      # (n*h*w, 9*Cin)
    kp = w2.shape[0] - a.shape[1]                   # weight K was rounded to 8x
    if kp:
        a = jnp.pad(a, ((0, 0), (0, kp)))           # zero K-pad: exact result
    y = fused_matmul(a, w2, bn=bn, bn_groups=4 if bn is not None else 1,
                     post_act=post_act)             # (n*h*w, 4*cout)
    y = y.reshape(n, h, w, 2, 2, cout)
    y = jnp.transpose(y, (0, 1, 3, 2, 4, 5)).reshape(n, 2 * h, 2 * w, cout)
    return y


# ------------------------------ full forward ---------------------------------
def rcvae_forward(params, x_nchw, eps):
    p = params
    x = jnp.transpose(x_nchw, (0, 2, 3, 1)).astype(jnp.float32)   # NCHW -> NHWC

    # ------------------------------ encoder -------------------------------
    h = conv_layer(x, p["enc_c1_w"], k=4, stride=2, pad=1,
                   bn=p["enc_bn1"], post_act="relu")              # (N,16,16,4)
    h = conv_layer(h, p["enc_c2_w"], k=4, stride=2, pad=1,
                   bn=p["enc_bn2"], post_act="relu")              # (N,8,8,8)
    h = resblock(h, p, "enc_rb1", out_bn=p["enc_bn3"])
    h = resblock(h, p, "enc_rb2", out_bn=None)

    # NHWC flatten; the fc weights were permuted to (h, w, c) order at init so
    # this reshape is equivalent to PyTorch's h.view(-1, d*f*f) on NCHW.
    h1 = h.reshape(h.shape[0], -1)                                # (N, 512)

    mu, logvar, hi, hproj = fc_reparam(h1, eps, p)                # 1 fused kernel

    # ------------------------------ decoder -------------------------------
    g = hproj.reshape(-1, F, F, D)                                # NHWC (N,8,8,8)
    g = resblock(g, p, "dec_rb1", out_bn=p["dec_bn1"])
    g = resblock(g, p, "dec_rb2", out_bn=p["dec_bn2"])
    g = conv_transpose_layer(g, p["dec_ct1_w"], D // 2,
                             bn=p["dec_bn3"], post_act="leaky_relu")  # (N,16,16,4)
    g = conv_transpose_layer(g, p["dec_ct2_w"], 3,
                             post_act="sigmoid")                      # (N,32,32,3)
    xi = jnp.transpose(g, (0, 3, 1, 2))                           # NHWC -> NCHW
    return hi, xi, mu, logvar


# --------------------------- parameter preparation ---------------------------
def _conv_w_to_matmul(w):
    """(Cout, Cin, kh, kw) -> (kh*kw*Cin, Cout), matching _im2col column order."""
    cout, cin, kh, kw = w.shape
    return jnp.transpose(w, (2, 3, 1, 0)).reshape(kh * kw * cin, cout)


def _convt_w_to_matmul(w_t):
    """PyTorch ConvTranspose2d weight (Cin, Cout, 4, 4), stride=2, pad=1 ->
    stride-split matrix acting on k=3/s=1/p=1 im2col patches.

    out[2q + r] = sum_d x[q + d - 1] * w[tap], tap = r - 2d + 3 (per axis).
    Rows: (d_h*3 + d_w)*Cin + ci (rounded up to a multiple of 8 with zeros so
    the MXU contraction is sublane-aligned).  Cols: (r_h*2 + r_w)*Cout + co.
    """
    w_np = np.asarray(jax.device_get(w_t))
    cin, cout = w_np.shape[:2]
    tap = {(0, 0): 3, (0, 1): 1, (1, 1): 2, (1, 2): 0}    # (r, d) -> kernel tap
    rows = 9 * cin
    rows_p = ((rows + 7) // 8) * 8
    out = np.zeros((rows_p, 4 * cout), np.float32)
    for rh in range(2):
        for rw in range(2):
            for dh in range(3):
                for dw in range(3):
                    th = tap.get((rh, dh))
                    tw = tap.get((rw, dw))
                    if th is None or tw is None:
                        continue
                    r0 = (dh * 3 + dw) * cin
                    c0 = (rh * 2 + rw) * cout
                    out[r0:r0 + cin, c0:c0 + cout] = w_np[:, :, th, tw]
    return jnp.asarray(out)


def prepare_params(raw):
    """Hoist every weight re-layout out of the jitted forward (runs once)."""
    p = {}

    def bn(prefix, tile=1):
        g = raw[f"{prefix}_g"].reshape(1, -1)
        b = raw[f"{prefix}_b"].reshape(1, -1)
        if tile > 1:                              # sub-pixel-layout BN params
            g = jnp.tile(g, (1, tile))
            b = jnp.tile(b, (1, tile))
        return (g, b)

    def rb(prefix):
        p[f"{prefix}_w1"] = _conv_w_to_matmul(raw[f"{prefix}_w1"])
        p[f"{prefix}_b1"] = raw[f"{prefix}_b1"].reshape(1, -1)
        p[f"{prefix}_bn"] = bn(f"{prefix}_bn")
        p[f"{prefix}_w2"] = _conv_w_to_matmul(raw[f"{prefix}_w2"])
        p[f"{prefix}_b2"] = raw[f"{prefix}_b2"].reshape(1, -1)

    # encoder
    p["enc_c1_w"] = _conv_w_to_matmul(raw["enc_c1_w"])
    p["enc_bn1"] = bn("enc_bn1")
    p["enc_c2_w"] = _conv_w_to_matmul(raw["enc_c2_w"])
    p["enc_bn2"] = bn("enc_bn2")
    rb("enc_rb1")
    p["enc_bn3"] = bn("enc_bn3")
    rb("enc_rb2")

    # fc heads: permute the flatten dim from PyTorch (c,h,w) order to our NHWC
    # (h,w,c) order; concatenate fc11|fc12 into one (512, 32) matmul weight.
    def fc_in(w):                                  # (z, d*f*f) -> (f*f*d, z)
        return jnp.transpose(w.reshape(Z, D, F, F),
                             (2, 3, 1, 0)).reshape(F * F * D, Z)

    p["fc_ml_w"] = jnp.concatenate([fc_in(raw["fc11_w"]),
                                    fc_in(raw["fc12_w"])], axis=1)
    p["fc_ml_b"] = jnp.concatenate([raw["fc11_b"],
                                    raw["fc12_b"]]).reshape(1, 2 * Z)
    p["fc21_w"] = jnp.transpose(raw["fc21_w"].reshape(D, F, F, Z),
                                (3, 1, 2, 0)).reshape(Z, F * F * D)
    p["fc21_b"] = jnp.transpose(raw["fc21_b"].reshape(D, F, F),
                                (1, 2, 0)).reshape(1, F * F * D)

    # decoder
    rb("dec_rb1")
    p["dec_bn1"] = bn("dec_bn1")
    rb("dec_rb2")
    p["dec_bn2"] = bn("dec_bn2")
    p["dec_ct1_w"] = _convt_w_to_matmul(raw["dec_ct1_w"])
    p["dec_bn3"] = bn("dec_bn3", tile=4)          # applied on sub-pixel layout
    p["dec_ct2_w"] = _convt_w_to_matmul(raw["dec_ct2_w"])
    # TODO(synk): self.xi_bn is defined in __init__ but never used in forward(); omitted.
    return p


# ------------------------------ parameter init --------------------------------
def init_params(key):
    """Random weights in native PyTorch layouts (converted by prepare_params)."""
    raw = {}
    keys = iter(jax.random.split(key, 64))

    def w(shape, scale=0.1):
        return scale * jax.random.normal(next(keys), shape, jnp.float32)

    def bn(prefix, c):
        raw[f"{prefix}_g"] = 1.0 + 0.05 * jax.random.normal(next(keys), (c,), jnp.float32)
        raw[f"{prefix}_b"] = 0.05 * jax.random.normal(next(keys), (c,), jnp.float32)

    def rb(prefix, c):
        raw[f"{prefix}_w1"] = w((c, c, 3, 3))
        raw[f"{prefix}_b1"] = w((c,))
        bn(f"{prefix}_bn", c)
        raw[f"{prefix}_w2"] = w((c, c, 1, 1))
        raw[f"{prefix}_b2"] = w((c,))

    d, z, f = D, Z, F
    # encoder
    raw["enc_c1_w"] = w((d // 2, 3, 4, 4))
    bn("enc_bn1", d // 2)
    raw["enc_c2_w"] = w((d, d // 2, 4, 4))
    bn("enc_bn2", d)
    rb("enc_rb1", d)
    bn("enc_bn3", d)
    rb("enc_rb2", d)
    # fc heads
    raw["fc11_w"] = w((z, d * f * f)); raw["fc11_b"] = w((z,))
    raw["fc12_w"] = w((z, d * f * f)); raw["fc12_b"] = w((z,))
    raw["fc21_w"] = w((d * f * f, z)); raw["fc21_b"] = w((d * f * f,))
    # decoder
    rb("dec_rb1", d)
    bn("dec_bn1", d)
    rb("dec_rb2", d)
    bn("dec_bn2", d)
    raw["dec_ct1_w"] = w((d, d // 2, 4, 4))   # ConvTranspose layout (Cin, Cout, k, k)
    bn("dec_bn3", d // 2)
    raw["dec_ct2_w"] = w((d // 2, 3, 4, 4))
    return raw


# ------------------------------------ main ------------------------------------
if __name__ == "__main__":
    key = jax.random.PRNGKey(0)
    k_param, k_x, k_eps = jax.random.split(key, 3)

    params = prepare_params(init_params(k_param))                 # one-time layout
    x = jax.random.uniform(k_x, (BATCH, 3, IMG, IMG), jnp.float32)  # NCHW input
    eps = jax.random.normal(k_eps, (BATCH, Z), jnp.float32)         # reparam noise

    fwd = jax.jit(rcvae_forward)
    hi, xi, mu, logvar = fwd(params, x, eps)
    jax.block_until_ready((hi, xi, mu, logvar))

    assert hi.shape == (BATCH, Z)
    assert xi.shape == (BATCH, 3, IMG, IMG)
    assert mu.shape == (BATCH, Z)
    assert logvar.shape == (BATCH, Z)
    assert bool(jnp.isfinite(xi).all()) and bool(jnp.isfinite(hi).all())
    print("KERNEL_OK")
</pallas_src>

<mosaic_0001>
module attributes {stable_mosaic.version = 11 : i64} {
  func.func @kernel(%arg0: memref<512x48xf32, #tpu.memory_space<vmem>>, %arg1: memref<48x4xf32, #tpu.memory_space<vmem>>, %arg2: memref<1x4xf32, #tpu.memory_space<vmem>>, %arg3: memref<1x4xf32, #tpu.memory_space<vmem>>, %arg4: memref<512x4xf32, #tpu.memory_space<vmem>>) attributes {dimension_semantics = [], scalar_prefetch = 0 : i64, scratch_operands = 0 : i64, tpu.core_type = #tpu.core_type<tc>} {
    %c0 = arith.constant 0 : index
    %c0_0 = arith.constant 0 : index
    %0 = vector.load %arg0[%c0, %c0_0] : memref<512x48xf32, #tpu.memory_space<vmem>>, vector<512x48xf32>
    %c0_1 = arith.constant 0 : index
    %c0_2 = arith.constant 0 : index
    %1 = vector.load %arg1[%c0_1, %c0_2] : memref<48x4xf32, #tpu.memory_space<vmem>>, vector<48x4xf32>
    %cst = arith.constant dense<0.000000e+00> : vector<512x4xf32>
    %2 = tpu.matmul %0, %1, %cst {dimension_numbers = #tpu.dot_dimension_numbers<[1], [0], [0], [1], [0, 0, 1, 1], [], []>} : vector<512x48xf32>, vector<48x4xf32>, vector<512x4xf32> -> vector<512x4xf32>
    %cst_3 = arith.constant dense<0.000000e+00> : vector<4xf32>
    %3 = vector.multi_reduction <add>, %2, %cst_3 [0] : vector<512x4xf32> to vector<4xf32>
    %4 = vector.shape_cast %3 : vector<4xf32> to vector<1x4xf32>
    %cst_4 = arith.constant 0.001953125 : f32
    %5 = vector.broadcast %cst_4 : f32 to vector<1x4xf32>
    %6 = arith.mulf %4, %5 : vector<1x4xf32>
    %7 = vector.broadcast %6 : vector<1x4xf32> to vector<512x4xf32>
    %8 = arith.subf %2, %7 : vector<512x4xf32>
    %9 = arith.mulf %8, %8 : vector<512x4xf32>
    %cst_5 = arith.constant dense<0.000000e+00> : vector<4xf32>
    %10 = vector.multi_reduction <add>, %9, %cst_5 [0] : vector<512x4xf32> to vector<4xf32>
    %11 = vector.shape_cast %10 : vector<4xf32> to vector<1x4xf32>
    %cst_6 = arith.constant 0.001953125 : f32
    %12 = vector.broadcast %cst_6 : f32 to vector<1x4xf32>
    %13 = arith.mulf %11, %12 : vector<1x4xf32>
    %cst_7 = arith.constant 9.99999974E-6 : f32
    %14 = vector.broadcast %cst_7 : f32 to vector<1x4xf32>
    %15 = arith.addf %13, %14 : vector<1x4xf32>
    %16 = math.rsqrt %15 : vector<1x4xf32>
    %17 = vector.broadcast %16 : vector<1x4xf32> to vector<512x4xf32>
    %18 = arith.mulf %8, %17 : vector<512x4xf32>
    %c0_8 = arith.constant 0 : index
    %c0_9 = arith.constant 0 : index
    %19 = vector.load %arg2[%c0_8, %c0_9] : memref<1x4xf32, #tpu.memory_space<vmem>>, vector<1x4xf32>
    %20 = vector.broadcast %19 : vector<1x4xf32> to vector<512x4xf32>
    %21 = arith.mulf %18, %20 : vector<512x4xf32>
    %c0_10 = arith.constant 0 : index
    %c0_11 = arith.constant 0 : index
    %22 = vector.load %arg3[%c0_10, %c0_11] : memref<1x4xf32, #tpu.memory_space<vmem>>, vector<1x4xf32>
    %23 = vector.broadcast %22 : vector<1x4xf32> to vector<512x4xf32>
    %24 = arith.addf %21, %23 : vector<512x4xf32>
    %cst_12 = arith.constant 0.000000e+00 : f32
    %25 = vector.broadcast %cst_12 : f32 to vector<512x4xf32>
    %26 = arith.maximumf %24, %25 : vector<512x4xf32>
    %c0_13 = arith.constant 0 : index
    %c0_14 = arith.constant 0 : index
    %27 = vector.load %arg4[%c0_13, %c0_14] : memref<512x4xf32, #tpu.memory_space<vmem>>, vector<512x4xf32>
    tpu.vector_store %arg4[%c0_13, %c0_14], %26 {strides = array<i32>} : memref<512x4xf32, #tpu.memory_space<vmem>>, vector<512x4xf32>,
    return
  }
}

module attributes {stable_mosaic.version = 11 : i64} {
  func.func @kernel(%arg0: memref<128x64xf32, #tpu.memory_space<vmem>>, %arg1: memref<64x8xf32, #tpu.memory_space<vmem>>, %arg2: memref<1x8xf32, #tpu.memory_space<vmem>>, %arg3: memref<1x8xf32, #tpu.memory_space<vmem>>, %arg4: memref<128x8xf32, #tpu.memory_space<vmem>>) attributes {dimension_semantics = [], scalar_prefetch = 0 : i64, scratch_operands = 0 : i64, tpu.core_type = #tpu.core_type<tc>} {
    %c0 = arith.constant 0 : index
    %c0_0 = arith.constant 0 : index
    %0 = vector.load %arg0[%c0, %c0_0] : memref<128x64xf32, #tpu.memory_space<vmem>>, vector<128x64xf32>
    %c0_1 = arith.constant 0 : index
    %c0_2 = arith.constant 0 : index
    %1 = vector.load %arg1[%c0_1, %c0_2] : memref<64x8xf32, #tpu.memory_space<vmem>>, vector<64x8xf32>
    %cst = arith.constant dense<0.000000e+00> : vector<128x8xf32>
    %2 = tpu.matmul %0, %1, %cst {dimension_numbers = #tpu.dot_dimension_numbers<[1], [0], [0], [1], [0, 0, 1, 1], [], []>} : vector<128x64xf32>, vector<64x8xf32>, vector<128x8xf32> -> vector<128x8xf32>
    %cst_3 = arith.constant dense<0.000000e+00> : vector<8xf32>
    %3 = vector.multi_reduction <add>, %2, %cst_3 [0] : vector<128x8xf32> to vector<8xf32>
    %4 = vector.shape_cast %3 : vector<8xf32> to vector<1x8xf32>
    %cst_4 = arith.constant 7.812500e-03 : f32
    %5 = vector.broadcast %cst_4 : f32 to vector<1x8xf32>
    %6 = arith.mulf %4, %5 : vector<1x8xf32>
    %7 = vector.broadcast %6 : vector<1x8xf32> to vector<128x8xf32>
    %8 = arith.subf %2, %7 : vector<128x8xf32>
    %9 = arith.mulf %8, %8 : vector<128x8xf32>
    %cst_5 = arith.constant dense<0.000000e+00> : vector<8xf32>
    %10 = vector.multi_reduction <add>, %9, %cst_5 [0] : vector<128x8xf32> to vector<8xf32>
    %11 = vector.shape_cast %10 : vector<8xf32> to vector<1x8xf32>
    %cst_6 = arith.constant 7.812500e-03 : f32
    %12 = vector.broadcast %cst_6 : f32 to vector<1x8xf32>
    %13 = arith.mulf %11, %12 : vector<1x8xf32>
    %cst_7 = arith.constant 9.99999974E-6 : f32
    %14 = vector.broadcast %cst_7 : f32 to vector<1x8xf32>
    %15 = arith.addf %13, %14 : vector<1x8xf32>
    %16 = math.rsqrt %15 : vector<1x8xf32>
    %17 = vector.broadcast %16 : vector<1x8xf32> to vector<128x8xf32>
    %18 = arith.mulf %8, %17 : vector<128x8xf32>
    %c0_8 = arith.constant 0 : index
    %c0_9 = arith.constant 0 : index
    %19 = vector.load %arg2[%c0_8, %c0_9] : memref<1x8xf32, #tpu.memory_space<vmem>>, vector<1x8xf32>
    %20 = vector.broadcast %19 : vector<1x8xf32> to vector<128x8xf32>
    %21 = arith.mulf %18, %20 : vector<128x8xf32>
    %c0_10 = arith.constant 0 : index
    %c0_11 = arith.constant 0 : index
    %22 = vector.load %arg3[%c0_10, %c0_11] : memref<1x8xf32, #tpu.memory_space<vmem>>, vector<1x8xf32>
    %23 = vector.broadcast %22 : vector<1x8xf32> to vector<128x8xf32>
    %24 = arith.addf %21, %23 : vector<128x8xf32>
    %cst_12 = arith.constant 0.000000e+00 : f32
    %25 = vector.broadcast %cst_12 : f32 to vector<128x8xf32>
    %26 = arith.maximumf %24, %25 : vector<128x8xf32>
    %c0_13 = arith.constant 0 : index
    %c0_14 = arith.constant 0 : index
    %27 = vector.load %arg4[%c0_13, %c0_14] : memref<128x8xf32, #tpu.memory_space<vmem>>, vector<128x8xf32>
    tpu.vector_store %arg4[%c0_13, %c0_14], %26 {strides = array<i32>} : memref<128x8xf32, #tpu.memory_space<vmem>>, vector<128x8xf32>,
    return
  }
}

module attributes {stable_mosaic.version = 11 : i64} {
  func.func @kernel(%arg0: memref<128x8xf32, #tpu.memory_space<vmem>>, %arg1: memref<8x8xf32, #tpu.memory_space<vmem>>, %arg2: memref<1x8xf32, #tpu.memory_space<vmem>>, %arg3: memref<128x8xf32, #tpu.memory_space<vmem>>, %arg4: memref<1x8xf32, #tpu.memory_space<vmem>>, %arg5: memref<1x8xf32, #tpu.memory_space<vmem>>, %arg6: memref<128x8xf32, #tpu.memory_space<vmem>>) attributes {dimension_semantics = [], scalar_prefetch = 0 : i64, scratch_operands = 0 : i64, tpu.core_type = #tpu.core_type<tc>} {
    %c0 = arith.constant 0 : index
    %c0_0 = arith.constant 0 : index
    %0 = vector.load %arg0[%c0, %c0_0] : memref<128x8xf32, #tpu.memory_space<vmem>>, vector<128x8xf32>
    %c0_1 = arith.constant 0 : index
    %c0_2 = arith.constant 0 : index
    %1 = vector.load %arg1[%c0_1, %c0_2] : memref<8x8xf32, #tpu.memory_space<vmem>>, vector<8x8xf32>
    %cst = arith.constant dense<0.000000e+00> : vector<128x8xf32>
    %2 = tpu.matmul %0, %1, %cst {dimension_numbers = #tpu.dot_dimension_numbers<[1], [0], [0], [1], [0, 0, 1, 1], [], []>} : vector<128x8xf32>, vector<8x8xf32>, vector<128x8xf32> -> vector<128x8xf32>
    %c0_3 = arith.constant 0 : index
    %c0_4 = arith.constant 0 : index
    %3 = vector.load %arg2[%c0_3, %c0_4] : memref<1x8xf32, #tpu.memory_space<vmem>>, vector<1x8xf32>
    %4 = vector.broadcast %3 : vector<1x8xf32> to vector<128x8xf32>
    %5 = arith.addf %2, %4 : vector<128x8xf32>
    %c0_5 = arith.constant 0 : index
    %c0_6 = arith.constant 0 : index
    %6 = vector.load %arg3[%c0_5, %c0_6] : memref<128x8xf32, #tpu.memory_space<vmem>>, vector<128x8xf32>
    %7 = arith.addf %5, %6 : vector<128x8xf32>
    %cst_7 = arith.constant dense<0.000000e+00> : vector<8xf32>
    %8 = vector.multi_reduction <add>, %7, %cst_7 [0] : vector<128x8xf32> to vector<8xf32>
    %9 = vector.shape_cast %8 : vector<8xf32> to vector<1x8xf32>
    %cst_8 = arith.constant 7.812500e-03 : f32
    %10 = vector.broadcast %cst_8 : f32 to vector<1x8xf32>
    %11 = arith.mulf %9, %10 : vector<1x8xf32>
    %12 = vector.broadcast %11 : vector<1x8xf32> to vector<128x8xf32>
    %13 = arith.subf %7, %12 : vector<128x8xf32>
    %14 = arith.mulf %13, %13 : vector<128x8xf32>
    %cst_9 = arith.constant dense<0.000000e+00> : vector<8xf32>
    %15 = vector.multi_reduction <add>, %14, %cst_9 [0] : vector<128x8xf32> to vector<8xf32>
    %16 = vector.shape_cast %15 : vector<8xf32> to vector<1x8xf32>
    %cst_10 = arith.constant 7.812500e-03 : f32
    %17 = vector.broadcast %cst_10 : f32 to vector<1x8xf32>
    %18 = arith.mulf %16, %17 : vector<1x8xf32>
    %cst_11 = arith.constant 9.99999974E-6 : f32
    %19 = vector.broadcast %cst_11 : f32 to vector<1x8xf32>
    %20 = arith.addf %18, %19 : vector<1x8xf32>
    %21 = math.rsqrt %20 : vector<1x8xf32>
    %22 = vector.broadcast %21 : vector<1x8xf32> to vector<128x8xf32>
    %23 = arith.mulf %13, %22 : vector<128x8xf32>
    %c0_12 = arith.constant 0 : index
    %c0_13 = arith.constant 0 : index
    %24 = vector.load %arg4[%c0_12, %c0_13] : memref<1x8xf32, #tpu.memory_space<vmem>>, vector<1x8xf32>
    %25 = vector.broadcast %24 : vector<1x8xf32> to vector<128x8xf32>
    %26 = arith.mulf %23, %25 : vector<128x8xf32>
    %c0_14 = arith.constant 0 : index
    %c0_15 = arith.constant 0 : index
    %27 = vector.load %arg5[%c0_14, %c0_15] : memref<1x8xf32, #tpu.memory_space<vmem>>, vector<1x8xf32>
    %28 = vector.broadcast %27 : vector<1x8xf32> to vector<128x8xf32>
    %29 = arith.addf %26, %28 : vector<128x8xf32>
    %c0_16 = arith.constant 0 : index
    %c0_17 = arith.constant 0 : index
    %30 = vector.load %arg6[%c0_16, %c0_17] : memref<128x8xf32, #tpu.memory_space<vmem>>, vector<128x8xf32>
    tpu.vector_store %arg6[%c0_16, %c0_17], %29 {strides = array<i32>} : memref<128x8xf32, #tpu.memory_space<vmem>>, vector<128x8xf32>,
    return
  }
}

module attributes {stable_mosaic.version = 11 : i64} {
  func.func @kernel(%arg0: memref<128x72xf32, #tpu.memory_space<vmem>>, %arg1: memref<72x8xf32, #tpu.memory_space<vmem>>, %arg2: memref<1x8xf32, #tpu.memory_space<vmem>>, %arg3: memref<1x8xf32, #tpu.memory_space<vmem>>, %arg4: memref<1x8xf32, #tpu.memory_space<vmem>>, %arg5: memref<128x8xf32, #tpu.memory_space<vmem>>) attributes {dimension_semantics = [], scalar_prefetch = 0 : i64, scratch_operands = 0 : i64, tpu.core_type = #tpu.core_type<tc>} {
    %c0 = arith.constant 0 : index
    %c0_0 = arith.constant 0 : index
    %0 = vector.load %arg0[%c0, %c0_0] : memref<128x72xf32, #tpu.memory_space<vmem>>, vector<128x72xf32>
    %cst = arith.constant 0.000000e+00 : f32
    %1 = vector.broadcast %cst : f32 to vector<128x72xf32>
    %2 = arith.cmpf ogt, %0, %1 : vector<128x72xf32>
    %cst_1 = arith.constant 0.00999999977 : f32
    %3 = vector.broadcast %cst_1 : f32 to vector<128x72xf32>
    %4 = arith.mulf %3, %0 : vector<128x72xf32>
    %5 = arith.select %2, %0, %4 : vector<128x72xi1>, vector<128x72xf32>
    %c0_2 = arith.constant 0 : index
    %c0_3 = arith.constant 0 : index
    %6 = vector.load %arg1[%c0_2, %c0_3] : memref<72x8xf32, #tpu.memory_space<vmem>>, vector<72x8xf32>
    %cst_4 = arith.constant dense<0.000000e+00> : vector<128x8xf32>
    %7 = tpu.matmul %5, %6, %cst_4 {dimension_numbers = #tpu.dot_dimension_numbers<[1], [0], [0], [1], [0, 0, 1, 1], [], []>} : vector<128x72xf32>, vector<72x8xf32>, vector<128x8xf32> -> vector<128x8xf32>
    %c0_5 = arith.constant 0 : index
    %c0_6 = arith.constant 0 : index
    %8 = vector.load %arg2[%c0_5, %c0_6] : memref<1x8xf32, #tpu.memory_space<vmem>>, vector<1x8xf32>
    %9 = vector.broadcast %8 : vector<1x8xf32> to vector<128x8xf32>
    %10 = arith.addf %7, %9 : vector<128x8xf32>
    %cst_7 = arith.constant dense<0.000000e+00> : vector<8xf32>
    %11 = vector.multi_reduction <add>, %10, %cst_7 [0] : vector<128x8xf32> to vector<8xf32>
    %12 = vector.shape_cast %11 : vector<8xf32> to vector<1x8xf32>
    %cst_8 = arith.constant 7.812500e-03 : f32
    %13 = vector.broadcast %cst_8 : f32 to vector<1x8xf32>
    %14 = arith.mulf %12, %13 : vector<1x8xf32>
    %15 = vector.broadcast %14 : vector<1x8xf32> to vector<128x8xf32>
    %16 = arith.subf %10, %15 : vector<128x8xf32>
    %17 = arith.mulf %16, %16 : vector<128x8xf32>
    %cst_9 = arith.constant dense<0.000000e+00> : vector<8xf32>
    %18 = vector.multi_reduction <add>, %17, %cst_9 [0] : vector<128x8xf32> to vector<8xf32>
    %19 = vector.shape_cast %18 : vector<8xf32> to vector<1x8xf32>
    %cst_10 = arith.constant 7.812500e-03 : f32
    %20 = vector.broadcast %cst_10 : f32 to vector<1x8xf32>
    %21 = arith.mulf %19, %20 : vector<1x8xf32>
    %cst_11 = arith.constant 9.99999974E-6 : f32
    %22 = vector.broadcast %cst_11 : f32 to vector<1x8xf32>
    %23 = arith.addf %21, %22 : vector<1x8xf32>
    %24 = math.rsqrt %23 : vector<1x8xf32>
    %25 = vector.broadcast %24 : vector<1x8xf32> to vector<128x8xf32>
    %26 = arith.mulf %16, %25 : vector<128x8xf32>
    %c0_12 = arith.constant 0 : index
    %c0_13 = arith.constant 0 : index
    %27 = vector.load %arg3[%c0_12, %c0_13] : memref<1x8xf32, #tpu.memory_space<vmem>>, vector<1x8xf32>
    %28 = vector.broadcast %27 : vector<1x8xf32> to vector<128x8xf32>
    %29 = arith.mulf %26, %28 : vector<128x8xf32>
    %c0_14 = arith.constant 0 : index
    %c0_15 = arith.constant 0 : index
    %30 = vector.load %arg4[%c0_14, %c0_15] : memref<1x8xf32, #tpu.memory_space<vmem>>, vector<1x8xf32>
    %31 = vector.broadcast %30 : vector<1x8xf32> to vector<128x8xf32>
    %32 = arith.addf %29, %31 : vector<128x8xf32>
    %cst_16 = arith.constant 0.000000e+00 : f32
    %33 = vector.broadcast %cst_16 : f32 to vector<128x8xf32>
    %34 = arith.cmpf ogt, %32, %33 : vector<128x8xf32>
    %cst_17 = arith.constant 0.00999999977 : f32
    %35 = vector.broadcast %cst_17 : f32 to vector<128x8xf32>
    %36 = arith.mulf %35, %32 : vector<128x8xf32>
    %37 = arith.select %34, %32, %36 : vector<128x8xi1>, vector<128x8xf32>
    %c0_18 = arith.constant 0 : index
    %c0_19 = arith.constant 0 : index
    %38 = vector.load %arg5[%c0_18, %c0_19] : memref<128x8xf32, #tpu.memory_space<vmem>>, vector<128x8xf32>
    tpu.vector_store %arg5[%c0_18, %c0_19], %37 {strides = array<i32>} : memref<128x8xf32, #tpu.memory_space<vmem>>, vector<128x8xf32>,
    return
  }
}

module attributes {stable_mosaic.version = 11 : i64} {
  func.func @kernel(%arg0: memref<128x8xf32, #tpu.memory_space<vmem>>, %arg1: memref<8x8xf32, #tpu.memory_space<vmem>>, %arg2: memref<1x8xf32, #tpu.memory_space<vmem>>, %arg3: memref<128x8xf32, #tpu.memory_space<vmem>>, %arg4: memref<128x8xf32, #tpu.memory_space<vmem>>) attributes {dimension_semantics = [], scalar_prefetch = 0 : i64, scratch_operands = 0 : i64, tpu.core_type = #tpu.core_type<tc>} {
    %c0 = arith.constant 0 : index
    %c0_0 = arith.constant 0 : index
    %0 = vector.load %arg0[%c0, %c0_0] : memref<128x8xf32, #tpu.memory_space<vmem>>, vector<128x8xf32>
    %c0_1 = arith.constant 0 : index
    %c0_2 = arith.constant 0 : index
    %1 = vector.load %arg1[%c0_1, %c0_2] : memref<8x8xf32, #tpu.memory_space<vmem>>, vector<8x8xf32>
    %cst = arith.constant dense<0.000000e+00> : vector<128x8xf32>
    %2 = tpu.matmul %0, %1, %cst {dimension_numbers = #tpu.dot_dimension_numbers<[1], [0], [0], [1], [0, 0, 1, 1], [], []>} : vector<128x8xf32>, vector<8x8xf32>, vector<128x8xf32> -> vector<128x8xf32>
    %c0_3 = arith.constant 0 : index
    %c0_4 = arith.constant 0 : index
    %3 = vector.load %arg2[%c0_3, %c0_4] : memref<1x8xf32, #tpu.memory_space<vmem>>, vector<1x8xf32>
    %4 = vector.broadcast %3 : vector<1x8xf32> to vector<128x8xf32>
    %5 = arith.addf %2, %4 : vector<128x8xf32>
    %c0_5 = arith.constant 0 : index
    %c0_6 = arith.constant 0 : index
    %6 = vector.load %arg3[%c0_5, %c0_6] : memref<128x8xf32, #tpu.memory_space<vmem>>, vector<128x8xf32>
    %7 = arith.addf %5, %6 : vector<128x8xf32>
    %c0_7 = arith.constant 0 : index
    %c0_8 = arith.constant 0 : index
    %8 = vector.load %arg4[%c0_7, %c0_8] : memref<128x8xf32, #tpu.memory_space<vmem>>, vector<128x8xf32>
    tpu.vector_store %arg4[%c0_7, %c0_8], %7 {strides = array<i32>} : memref<128x8xf32, #tpu.memory_space<vmem>>, vector<128x8xf32>,
    return
  }
}

module attributes {stable_mosaic.version = 11 : i64} {
  func.func @_fc_reparam_kernel(%arg0: memref<2x512xf32, #tpu.memory_space<vmem>>, %arg1: memref<512x32xf32, #tpu.memory_space<vmem>>, %arg2: memref<1x32xf32, #tpu.memory_space<vmem>>, %arg3: memref<2x16xf32, #tpu.memory_space<vmem>>, %arg4: memref<16x512xf32, #tpu.memory_space<vmem>>, %arg5: memref<1x512xf32, #tpu.memory_space<vmem>>, %arg6: memref<2x16xf32, #tpu.memory_space<vmem>>, %arg7: memref<2x16xf32, #tpu.memory_space<vmem>>, %arg8: memref<2x16xf32, #tpu.memory_space<vmem>>, %arg9: memref<2x512xf32, #tpu.memory_space<vmem>>) attributes {dimension_semantics = [], scalar_prefetch = 0 : i64, scratch_operands = 0 : i64, tpu.core_type = #tpu.core_type<tc>} {
    %c0 = arith.constant 0 : index
    %c0_0 = arith.constant 0 : index
    %0 = vector.load %arg0[%c0, %c0_0] : memref<2x512xf32, #tpu.memory_space<vmem>>, vector<2x512xf32>
    %c0_1 = arith.constant 0 : index
    %c0_2 = arith.constant 0 : index
    %1 = vector.load %arg1[%c0_1, %c0_2] : memref<512x32xf32, #tpu.memory_space<vmem>>, vector<512x32xf32>
    %cst = arith.constant dense<0.000000e+00> : vector<2x32xf32>
    %2 = tpu.matmul %0, %1, %cst {dimension_numbers = #tpu.dot_dimension_numbers<[1], [0], [0], [1], [0, 0, 1, 1], [], []>} : vector<2x512xf32>, vector<512x32xf32>, vector<2x32xf32> -> vector<2x32xf32>
    %c0_3 = arith.constant 0 : index
    %c0_4 = arith.constant 0 : index
    %3 = vector.load %arg2[%c0_3, %c0_4] : memref<1x32xf32, #tpu.memory_space<vmem>>, vector<1x32xf32>
    %4 = vector.broadcast %3 : vector<1x32xf32> to vector<2x32xf32>
    %5 = arith.addf %2, %4 : vector<2x32xf32>
    %6 = vector.extract_strided_slice %5 {offsets = [0, 0], sizes = [2, 16], strides = [1, 1]} : vector<2x32xf32> to vector<2x16xf32>
    %7 = vector.extract_strided_slice %5 {offsets = [0, 16], sizes = [2, 16], strides = [1, 1]} : vector<2x32xf32> to vector<2x16xf32>
    %c0_5 = arith.constant 0 : index
    %c0_6 = arith.constant 0 : index
    %8 = vector.load %arg3[%c0_5, %c0_6] : memref<2x16xf32, #tpu.memory_space<vmem>>, vector<2x16xf32>
    %cst_7 = arith.constant 5.000000e-01 : f32
    %9 = vector.broadcast %cst_7 : f32 to vector<2x16xf32>
    %10 = arith.mulf %9, %7 : vector<2x16xf32>
    %11 = math.exp %10 : vector<2x16xf32>
    %12 = arith.mulf %8, %11 : vector<2x16xf32>
    %13 = arith.addf %12, %6 : vector<2x16xf32>
    %c0_8 = arith.constant 0 : index
    %c0_9 = arith.constant 0 : index
    %14 = vector.load %arg4[%c0_8, %c0_9] : memref<16x512xf32, #tpu.memory_space<vmem>>, vector<16x512xf32>
    %cst_10 = arith.constant dense<0.000000e+00> : vector<2x512xf32>
    %15 = tpu.matmul %13, %14, %cst_10 {dimension_numbers = #tpu.dot_dimension_numbers<[1], [0], [0], [1], [0, 0, 1, 1], [], []>} : vector<2x16xf32>, vector<16x512xf32>, vector<2x512xf32> -> vector<2x512xf32>
    %c0_11 = arith.constant 0 : index
    %c0_12 = arith.constant 0 : index
    %16 = vector.load %arg5[%c0_11, %c0_12] : memref<1x512xf32, #tpu.memory_space<vmem>>, vector<1x512xf32>
    %17 = vector.broadcast %16 : vector<1x512xf32> to vector<2x512xf32>
    %18 = arith.addf %15, %17 : vector<2x512xf32>
    %c0_13 = arith.constant 0 : index
    %c0_14 = arith.constant 0 : index
    %19 = vector.load %arg6[%c0_13, %c0_14] : memref<2x16xf32, #tpu.memory_space<vmem>>, vector<2x16xf32>
    tpu.vector_store %arg6[%c0_13, %c0_14], %6 {strides = array<i32>} : memref<2x16xf32, #tpu.memory_space<vmem>>, vector<2x16xf32>,
    %c0_15 = arith.constant 0 : index
    %c0_16 = arith.constant 0 : index
    %20 = vector.load %arg7[%c0_15, %c0_16] : memref<2x16xf32, #tpu.memory_space<vmem>>, vector<2x16xf32>
    tpu.vector_store %arg7[%c0_15, %c0_16], %7 {strides = array<i32>} : memref<2x16xf32, #tpu.memory_space<vmem>>, vector<2x16xf32>,
    %c0_17 = arith.constant 0 : index
    %c0_18 = arith.constant 0 : index
    %21 = vector.load %arg8[%c0_17, %c0_18] : memref<2x16xf32, #tpu.memory_space<vmem>>, vector<2x16xf32>
    tpu.vector_store %arg8[%c0_17, %c0_18], %13 {strides = array<i32>} : memref<2x16xf32, #tpu.memory_space<vmem>>, vector<2x16xf32>,
    %c0_19 = arith.constant 0 : index
    %c0_20 = arith.constant 0 : index
    %22 = vector.load %arg9[%c0_19, %c0_20] : memref<2x512xf32, #tpu.memory_space<vmem>>, vector<2x512xf32>
    tpu.vector_store %arg9[%c0_19, %c0_20], %18 {strides = array<i32>} : memref<2x512xf32, #tpu.memory_space<vmem>>, vector<2x512xf32>,
    return
  }
}

module attributes {stable_mosaic.version = 11 : i64} {
  func.func @kernel(%arg0: memref<128x72xf32, #tpu.memory_space<vmem>>, %arg1: memref<72x16xf32, #tpu.memory_space<vmem>>, %arg2: memref<1x16xf32, #tpu.memory_space<vmem>>, %arg3: memref<1x16xf32, #tpu.memory_space<vmem>>, %arg4: memref<16x16xf32, #tpu.memory_space<vmem>>, %arg5: memref<128x16xf32, #tpu.memory_space<vmem>>) attributes {dimension_semantics = [], scalar_prefetch = 0 : i64, scratch_operands = 0 : i64, tpu.core_type = #tpu.core_type<tc>} {
    %c0 = arith.constant 0 : index
    %c0_0 = arith.constant 0 : index
    %0 = vector.load %arg0[%c0, %c0_0] : memref<128x72xf32, #tpu.memory_space<vmem>>, vector<128x72xf32>
    %c0_1 = arith.constant 0 : index
    %c0_2 = arith.constant 0 : index
    %1 = vector.load %arg1[%c0_1, %c0_2] : memref<72x16xf32, #tpu.memory_space<vmem>>, vector<72x16xf32>
    %cst = arith.constant dense<0.000000e+00> : vector<128x16xf32>
    %2 = tpu.matmul %0, %1, %cst {dimension_numbers = #tpu.dot_dimension_numbers<[1], [0], [0], [1], [0, 0, 1, 1], [], []>} : vector<128x72xf32>, vector<72x16xf32>, vector<128x16xf32> -> vector<128x16xf32>
    %cst_3 = arith.constant dense<0.000000e+00> : vector<16xf32>
    %3 = vector.multi_reduction <add>, %2, %cst_3 [0] : vector<128x16xf32> to vector<16xf32>
    %4 = vector.shape_cast %3 : vector<16xf32> to vector<1x16xf32>
    %c0_4 = arith.constant 0 : index
    %c0_5 = arith.constant 0 : index
    %5 = vector.load %arg4[%c0_4, %c0_5] : memref<16x16xf32, #tpu.memory_space<vmem>>, vector<16x16xf32>
    %cst_6 = arith.constant dense<0.000000e+00> : vector<1x16xf32>
    %6 = tpu.matmul %4, %5, %cst_6 {dimension_numbers = #tpu.dot_dimension_numbers<[1], [0], [0], [1], [0, 0, 1, 1], [], []>} : vector<1x16xf32>, vector<16x16xf32>, vector<1x16xf32> -> vector<1x16xf32>
    %cst_7 = arith.constant 0.001953125 : f32
    %7 = vector.broadcast %cst_7 : f32 to vector<1x16xf32>
    %8 = arith.mulf %6, %7 : vector<1x16xf32>
    %9 = vector.broadcast %8 : vector<1x16xf32> to vector<128x16xf32>
    %10 = arith.subf %2, %9 : vector<128x16xf32>
    %11 = arith.mulf %10, %10 : vector<128x16xf32>
    %cst_8 = arith.constant dense<0.000000e+00> : vector<16xf32>
    %12 = vector.multi_reduction <add>, %11, %cst_8 [0] : vector<128x16xf32> to vector<16xf32>
    %13 = vector.shape_cast %12 : vector<16xf32> to vector<1x16xf32>
    %c0_9 = arith.constant 0 : index
    %c0_10 = arith.constant 0 : index
    %14 = vector.load %arg4[%c0_9, %c0_10] : memref<16x16xf32, #tpu.memory_space<vmem>>, vector<16x16xf32>
    %cst_11 = arith.constant dense<0.000000e+00> : vector<1x16xf32>
    %15 = tpu.matmul %13, %14, %cst_11 {dimension_numbers = #tpu.dot_dimension_numbers<[1], [0], [0], [1], [0, 0, 1, 1], [], []>} : vector<1x16xf32>, vector<16x16xf32>, vector<1x16xf32> -> vector<1x16xf32>
    %cst_12 = arith.constant 0.001953125 : f32
    %16 = vector.broadcast %cst_12 : f32 to vector<1x16xf32>
    %17 = arith.mulf %15, %16 : vector<1x16xf32>
    %cst_13 = arith.constant 9.99999974E-6 : f32
    %18 = vector.broadcast %cst_13 : f32 to vector<1x16xf32>
    %19 = arith.addf %17, %18 : vector<1x16xf32>
    %20 = math.rsqrt %19 : vector<1x16xf32>
    %21 = vector.broadcast %20 : vector<1x16xf32> to vector<128x16xf32>
    %22 = arith.mulf %10, %21 : vector<128x16xf32>
    %c0_14 = arith.constant 0 : index
    %c0_15 = arith.constant 0 : index
    %23 = vector.load %arg2[%c0_14, %c0_15] : memref<1x16xf32, #tpu.memory_space<vmem>>, vector<1x16xf32>
    %24 = vector.broadcast %23 : vector<1x16xf32> to vector<128x16xf32>
    %25 = arith.mulf %22, %24 : vector<128x16xf32>
    %c0_16 = arith.constant 0 : index
    %c0_17 = arith.constant 0 : index
    %26 = vector.load %arg3[%c0_16, %c0_17] : memref<1x16xf32, #tpu.memory_space<vmem>>, vector<1x16xf32>
    %27 = vector.broadcast %26 : vector<1x16xf32> to vector<128x16xf32>
    %28 = arith.addf %25, %27 : vector<128x16xf32>
    %cst_18 = arith.constant 0.000000e+00 : f32
    %29 = vector.broadcast %cst_18 : f32 to vector<128x16xf32>
    %30 = arith.cmpf ogt, %28, %29 : vector<128x16xf32>
    %cst_19 = arith.constant 0.00999999977 : f32
    %31 = vector.broadcast %cst_19 : f32 to vector<128x16xf32>
    %32 = arith.mulf %31, %28 : vector<128x16xf32>
    %33 = arith.select %30, %28, %32 : vector<128x16xi1>, vector<128x16xf32>
    %c0_20 = arith.constant 0 : index
    %c0_21 = arith.constant 0 : index
    %34 = vector.load %arg5[%c0_20, %c0_21] : memref<128x16xf32, #tpu.memory_space<vmem>>, vector<128x16xf32>
    tpu.vector_store %arg5[%c0_20, %c0_21], %33 {strides = array<i32>} : memref<128x16xf32, #tpu.memory_space<vmem>>, vector<128x16xf32>,
    return
  }
}

module attributes {stable_mosaic.version = 11 : i64} {
  func.func @kernel(%arg0: memref<512x40xf32, #tpu.memory_space<vmem>>, %arg1: memref<40x12xf32, #tpu.memory_space<vmem>>, %arg2: memref<512x12xf32, #tpu.memory_space<vmem>>) attributes {dimension_semantics = [], scalar_prefetch = 0 : i64, scratch_operands = 0 : i64, tpu.core_type = #tpu.core_type<tc>} {
    %c0 = arith.constant 0 : index
    %c0_0 = arith.constant 0 : index
    %0 = vector.load %arg0[%c0, %c0_0] : memref<512x40xf32, #tpu.memory_space<vmem>>, vector<512x40xf32>
    %c0_1 = arith.constant 0 : index
    %c0_2 = arith.constant 0 : index
    %1 = vector.load %arg1[%c0_1, %c0_2] : memref<40x12xf32, #tpu.memory_space<vmem>>, vector<40x12xf32>
    %cst = arith.constant dense<0.000000e+00> : vector<512x12xf32>
    %2 = tpu.matmul %0, %1, %cst {dimension_numbers = #tpu.dot_dimension_numbers<[1], [0], [0], [1], [0, 0, 1, 1], [], []>} : vector<512x40xf32>, vector<40x12xf32>, vector<512x12xf32> -> vector<512x12xf32>
    %3 = arith.negf %2 : vector<512x12xf32>
    %4 = math.exp %3 : vector<512x12xf32>
    %cst_3 = arith.constant 1.000000e+00 : f32
    %5 = vector.broadcast %cst_3 : f32 to vector<512x12xf32>
    %6 = arith.addf %5, %4 : vector<512x12xf32>
    %7 = arith.divf %5, %6 : vector<512x12xf32>
    %c0_4 = arith.constant 0 : index
    %c0_5 = arith.constant 0 : index
    %8 = vector.load %arg2[%c0_4, %c0_5] : memref<512x12xf32, #tpu.memory_space<vmem>>, vector<512x12xf32>
    tpu.vector_store %arg2[%c0_4, %c0_5], %7 {strides = array<i32>} : memref<512x12xf32, #tpu.memory_space<vmem>>, vector<512x12xf32>,
    return
  }
}

</mosaic_0001>

<llo_original>
// kernel: rcvae_forward.13
$region0: #{rcvae_forward.13}
  #allocation0 [shape = 'u32[]', space=smem, size = 0x4, offset = 0x4, fixed_abs, tag = 'smem constant byte address 0x4 - core index']
  #allocation1 [shape = 'u32[144,128]{1,0:T(1,128)}', space=vmem, size = 0x12000, scoped, tag = 'internal scratch']
  %s0 = inlined_call_operand.vmem [shape: f32[512,48], index: 0, kind: input, shape index: {}]
  %s1 = inlined_call_operand.vmem [shape: f32[48,4], index: 1, kind: input, shape index: {}]
  %s2 = inlined_call_operand.vmem [shape: f32[1,4], index: 2, kind: input, shape index: {}]
  %s3 = inlined_call_operand.vmem [shape: f32[1,4], index: 3, kind: input, shape index: {}]
  %s4 = inlined_call_operand.vmem [shape: f32[512,4], index: 4, kind: output, shape index: {}]
  %s5 = sld [smem:[#allocation0]]
  $region26: #{rcvae_forward.13} parent=0
    _
  %s7 = ssub.s32 1, %s5
  %s8 = scalar_select 0, %s7, %s5
  // Predicated region
  $region2: #{rcvae_forward.13} parent=0 // pred_check
    _
  $region3: #{rcvae_forward.13} parent=0 // pred_check_branch
    %10 = sbr.rel (0) target = $region5
  $region4: #{rcvae_forward.13} parent=0 // pred_region
    _
  $region5: #{rcvae_forward.13} parent=0 // pred_fallthru
    _
  // Predicated region
  $region6: #{rcvae_forward.13} parent=0 // pred_check
    _
  $region7: #{rcvae_forward.13} parent=0 // pred_check_branch
    %12 = sbr.rel (0) target = $region9
  $region8: #{rcvae_forward.13} parent=0 // pred_region
    _
  $region9: #{rcvae_forward.13} parent=0 // pred_fallthru
    _
  // Predicated region
  $region10: #{rcvae_forward.13} parent=0 // pred_check
    _
  $region11: #{rcvae_forward.13} parent=0 // pred_check_branch
    %14 = sbr.rel (0) target = $region13
  $region12: #{rcvae_forward.13} parent=0 // pred_region
    _
  $region13: #{rcvae_forward.13} parent=0 // pred_fallthru
    _
  // Predicated region
  $region14: #{rcvae_forward.13} parent=0 // pred_check
    _
  $region15: #{rcvae_forward.13} parent=0 // pred_check_branch
    %16 = sbr.rel (0) target = $region17
  $region16: #{rcvae_forward.13} parent=0 // pred_region
    _
  $region17: #{rcvae_forward.13} parent=0 // pred_fallthru
    _
  %v17 = vld [vmem:[%s0] sm:$0xff]
  %v18 = vld [vmem:[%s0 + $0x8] sm:$0xff]
  %v19 = vld [vmem:[%s0 + $0x10] sm:$0xff]
  %v20 = vld [vmem:[%s0 + $0x18] sm:$0xff]
  %v21 = vld [vmem:[%s0 + $0x20] sm:$0xff]
  %v22 = vld [vmem:[%s0 + $0x28] sm:$0xff]
  %v23 = vld [vmem:[%s0 + $0x30] sm:$0xff]
  %v24 = vld [vmem:[%s0 + $0x38] sm:$0xff]
  %v25 = vld [vmem:[%s0 + $0x40] sm:$0xff]
  %v26 = vld [vmem:[%s0 + $0x48] sm:$0xff]
  %v27 = vld [vmem:[%s0 + $0x50] sm:$0xff]
  %v28 = vld [vmem:[%s0 + $0x58] sm:$0xff]
  %v29 = vld [vmem:[%s0 + $0x60] sm:$0xff]
  %v30 = vld [vmem:[%s0 + $0x68] sm:$0xff]
  %v31 = vld [vmem:[%s0 + $0x70] sm:$0xff]
  %v32 = vld [vmem:[%s0 + $0x78] sm:$0xff]
  %v33 = vld [vmem:[%s0 + $0x80] sm:$0xff]
  %v34 = vld [vmem:[%s0 + $0x88] sm:$0xff]
  %v35 = vld [vmem:[%s0 + $0x90] sm:$0xff]
  %v36 = vld [vmem:[%s0 + $0x98] sm:$0xff]
  %v37 = vld [vmem:[%s0 + $0xa0] sm:$0xff]
  %v38 = vld [vmem:[%s0 + $0xa8] sm:$0xff]
  %v39 = vld [vmem:[%s0 + $0xb0] sm:$0xff]
  %v40 = vld [vmem:[%s0 + $0xb8] sm:$0xff]
  %v41 = vld [vmem:[%s0 + $0xc0] sm:$0xff]
  %v42 = vld [vmem:[%s0 + $0xc8] sm:$0xff]
  %v43 = vld [vmem:[%s0 + $0xd0] sm:$0xff]
  %v44 = vld [vmem:[%s0 + $0xd8] sm:$0xff]
  %v45 = vld [vmem:[%s0 + $0xe0] sm:$0xff]
  %v46 = vld [vmem:[%s0 + $0xe8] sm:$0xff]
  %v47 = vld [vmem:[%s0 + $0xf0] sm:$0xff]
  %v48 = vld [vmem:[%s0 + $0xf8] sm:$0xff]
  %v49 = vld [vmem:[%s0 + $0x100] sm:$0xff]
  %v50 = vld [vmem:[%s0 + $0x108] sm:$0xff]
  %v51 = vld [vmem:[%s0 + $0x110] sm:$0xff]
  %v52 = vld [vmem:[%s0 + $0x118] sm:$0xff]
  %v53 = vld [vmem:[%s0 + $0x120] sm:$0xff]
  %v54 = vld [vmem:[%s0 + $0x128] sm:$0xff]
  %v55 = vld [vmem:[%s0 + $0x130] sm:$0xff]
  %v56 = vld [vmem:[%s0 + $0x138] sm:$0xff]
  %v57 = vld [vmem:[%s0 + $0x140] sm:$0xff]
  %v58 = vld [vmem:[%s0 + $0x148] sm:$0xff]
  %v59 = vld [vmem:[%s0 + $0x150] sm:$0xff]
  %v60 = vld [vmem:[%s0 + $0x158] sm:$0xff]
  %v61 = vld [vmem:[%s0 + $0x160] sm:$0xff]
  %v62 = vld [vmem:[%s0 + $0x168] sm:$0xff]
  %v63 = vld [vmem:[%s0 + $0x170] sm:$0xff]
  %v64 = vld [vmem:[%s0 + $0x178] sm:$0xff]
  %v65 = vld [vmem:[%s0 + $0x180] sm:$0xff]
  %v66 = vld [vmem:[%s0 + $0x188] sm:$0xff]
  %v67 = vld [vmem:[%s0 + $0x190] sm:$0xff]
  %v68 = vld [vmem:[%s0 + $0x198] sm:$0xff]
  %v69 = vld [vmem:[%s0 + $0x1a0] sm:$0xff]
  %v70 = vld [vmem:[%s0 + $0x1a8] sm:$0xff]
  %v71 = vld [vmem:[%s0 + $0x1b0] sm:$0xff]
  %v72 = vld [vmem:[%s0 + $0x1b8] sm:$0xff]
  %v73 = vld [vmem:[%s0 + $0x1c0] sm:$0xff]
  %v74 = vld [vmem:[%s0 + $0x1c8] sm:$0xff]
  %v75 = vld [vmem:[%s0 + $0x1d0] sm:$0xff]
  %v76 = vld [vmem:[%s0 + $0x1d8] sm:$0xff]
  %v77 = vld [vmem:[%s0 + $0x1e0] sm:$0xff]
  %v78 = vld [vmem:[%s0 + $0x1e8] sm:$0xff]
  %v79 = vld [vmem:[%s0 + $0x1f0] sm:$0xff]
  %v80 = vld [vmem:[%s0 + $0x1f8] sm:$0xff]
  %v81 = vld [vmem:[%s1] sm:$0xff]
  %v82 = vld [vmem:[%s1 + $0x8] sm:$0xff]
  %v83 = vld [vmem:[%s1 + $0x10] sm:$0xff]
  %v84 = vld [vmem:[%s1 + $0x18] sm:$0xff]
  %v85 = vld [vmem:[%s1 + $0x20] sm:$0xff]
  %v86 = vld [vmem:[%s1 + $0x28] sm:$0xff]
  %vm87 = vcmask 392192
  %v89 = vsel %vm87, %v17, 0
  %v92 = vsel %vm87, %v18, 0
  %v95 = vsel %vm87, %v19, 0
  %v98 = vsel %vm87, %v20, 0
  %v101 = vsel %vm87, %v21, 0
  %v104 = vsel %vm87, %v22, 0
  %v107 = vsel %vm87, %v23, 0
  %v110 = vsel %vm87, %v24, 0
  %v113 = vsel %vm87, %v25, 0
  %v116 = vsel %vm87, %v26, 0
  %v119 = vsel %vm87, %v27, 0
  %v122 = vsel %vm87, %v28, 0
  %v125 = vsel %vm87, %v29, 0
  %v128 = vsel %vm87, %v30, 0
  %v131 = vsel %vm87, %v31, 0
  %v134 = vsel %vm87, %v32, 0
  %v137 = vsel %vm87, %v33, 0
  %v140 = vsel %vm87, %v34, 0
  %v143 = vsel %vm87, %v35, 0
  %v146 = vsel %vm87, %v36, 0
  %v149 = vsel %vm87, %v37, 0
  %v152 = vsel %vm87, %v38, 0
  %v155 = vsel %vm87, %v39, 0
  %v158 = vsel %vm87, %v40, 0
  %v161 = vsel %vm87, %v41, 0
  %v164 = vsel %vm87, %v42, 0
  %v167 = vsel %vm87, %v43, 0
  %v170 = vsel %vm87, %v44, 0
  %v173 = vsel %vm87, %v45, 0
  %v176 = vsel %vm87, %v46, 0
  %v179 = vsel %vm87, %v47, 0
  %v182 = vsel %vm87, %v48, 0
  %v185 = vsel %vm87, %v49, 0
  %v188 = vsel %vm87, %v50, 0
  %v191 = vsel %vm87, %v51, 0
  %v194 = vsel %vm87, %v52, 0
  %v197 = vsel %vm87, %v53, 0
  %v200 = vsel %vm87, %v54, 0
  %v203 = vsel %vm87, %v55, 0
  %v206 = vsel %vm87, %v56, 0
  %v209 = vsel %vm87, %v57, 0
  %v212 = vsel %vm87, %v58, 0
  %v215 = vsel %vm87, %v59, 0
  %v218 = vsel %vm87, %v60, 0
  %v221 = vsel %vm87, %v61, 0
  %v224 = vsel %vm87, %v62, 0
  %v227 = vsel %vm87, %v63, 0
  %v230 = vsel %vm87, %v64, 0
  %v233 = vsel %vm87, %v65, 0
  %v236 = vsel %vm87, %v66, 0
  %v239 = vsel %vm87, %v67, 0
  %v242 = vsel %vm87, %v68, 0
  %v245 = vsel %vm87, %v69, 0
  %v248 = vsel %vm87, %v70, 0
  %v251 = vsel %vm87, %v71, 0
  %v254 = vsel %vm87, %v72, 0
  %v257 = vsel %vm87, %v73, 0
  %v260 = vsel %vm87, %v74, 0
  %v263 = vsel %vm87, %v75, 0
  %v266 = vsel %vm87, %v76, 0
  %v269 = vsel %vm87, %v77, 0
  %v272 = vsel %vm87, %v78, 0
  %v275 = vsel %vm87, %v79, 0
  %v278 = vsel %vm87, %v80, 0
  %280 = vmatprep.subr.mxu0 0.0
  %281 = vmatpush1.msra.mxu0 %v81
  %282 = vmatprep.subr.mxu0 0.0
  %283 = vmatpush1.msra.mxu0 %v82
  %284 = vmatprep.subr.mxu0 0.0
  %285 = vmatpush1.msra.mxu0 %v83
  %286 = vmatprep.subr.mxu0 0.0
  %287 = vmatpush1.msra.mxu0 %v84
  %288 = vmatprep.subr.mxu0 0.0
  %289 = vmatpush1.msra.mxu0 %v85
  %290 = vmatprep.subr.mxu0 0.0
  %291 = vmatpush1.msra.mxu0 %v86
  %292 = vmatprep.subr.mxu0 0.0
  %293 = vmatpush1.msra.mxu0 0.0
  %294 = vmatprep.subr.mxu0 0.0
  %295 = vmatpush1.msra.mxu0 0.0
  %296 = vmatprep.subr.mxu0 0.0
  %297 = vmatpush1.msra.mxu0 0.0
  %298 = vmatprep.subr.mxu0 0.0
  %299 = vmatpush1.msra.mxu0 0.0
  %300 = vmatprep.subr.mxu0 0.0
  %301 = vmatpush1.msra.mxu0 0.0
  %302 = vmatprep.subr.mxu0 0.0
  %303 = vmatpush1.msra.mxu0 0.0
  %304 = vmatprep.subr.mxu0 0.0
  %305 = vmatpush1.msra.mxu0 0.0
  %306 = vmatprep.subr.mxu0 0.0
  %307 = vmatpush1.msra.mxu0 0.0
  %308 = vmatprep.subr.mxu0 0.0
  %309 = vmatpush1.msra.mxu0 0.0
  %310 = vmatprep.subr.mxu0 0.0
  %311 = vmatpush1.msra.mxu0 0.0
  %312 = vmatprep.subr.mxu0 0.0
  %313 = vmatpush1.msra.mxu0 0.0
  %314 = vmatprep.subr.mxu0 0.0
  %315 = vmatpush1.msra.mxu0 0.0
  %316 = vmatprep.subr.mxu0 0.0
  %317 = vmatpush1.msra.mxu0 0.0
  %318 = vmatprep.subr.mxu0 0.0
  %319 = vmatpush1.msra.mxu0 0.0
  %320 = vmatprep.subr.mxu0 0.0
  %321 = vmatpush1.msra.mxu0 0.0
  %322 = vmatprep.subr.mxu0 0.0
  %323 = vmatpush1.msra.mxu0 0.0
  %324 = vmatprep.subr.mxu0 0.0
  %325 = vmatpush1.msra.mxu0 0.0
  %326 = vmatprep.subr.mxu0 0.0
  %327 = vmatpush1.msra.mxu0 0.0
  %328 = vmatprep.subr.mxu0 0.0
  %329 = vmatpush1.msra.mxu0 0.0
  %330 = vmatprep.subr.mxu0 0.0
  %331 = vmatpush1.msra.mxu0 0.0
  %332 = vmatprep.subr.mxu0 0.0
  %333 = vmatpush1.msra.mxu0 0.0
  %334 = vmatprep.subr.mxu0 0.0
  %335 = vmatpush1.msra.mxu0 0.0
  %336 = vmatprep.subr.mxu0 0.0
  %337 = vmatpush1.msra.mxu0 0.0
  %338 = vmatprep.subr.mxu0 0.0
  %339 = vmatpush1.msra.mxu0 0.0
  %340 = vmatprep.subr.mxu0 0.0
  %341 = vmatpush1.msra.mxu0 0.0
  %342 = vmatprep.subr.mxu0 0.0
  %343 = vmatpush1.msra.mxu0 0.0
  %344 = vmatprep.mubr.f32.mxu0 0.0
  %345 = vmatmul.mubr.f32.gmra.mrb[0].mxu0 %v89
  %v346 = vpop.f32.mrb[0].mxu0
  %v347 = vadd.f32 0.0, %v346
  %v348 = vpop.f32.mrb[0].mxu0
  %349 = vmatprep.mubr.f32.mxu0 0.0
  %350 = vmatmul.mubr.f32.gmra.mrb[0].mxu0 %v92
  %v351 = vpop.f32.mrb[0].mxu0
  %v352 = vadd.f32 0.0, %v351
  %v353 = vpop.f32.mrb[0].mxu0
  %354 = vmatprep.mubr.f32.mxu0 0.0
  %355 = vmatmul.mubr.f32.gmra.mrb[0].mxu0 %v95
  %v356 = vpop.f32.mrb[0].mxu0
  %v357 = vadd.f32 0.0, %v356
  %v358 = vpop.f32.mrb[0].mxu0
  %359 = vmatprep.mubr.f32.mxu0 0.0
  %360 = vmatmul.mubr.f32.gmra.mrb[0].mxu0 %v98
  %v361 = vpop.f32.mrb[0].mxu0
  %v362 = vadd.f32 0.0, %v361
  %v363 = vpop.f32.mrb[0].mxu0
  %364 = vmatprep.mubr.f32.mxu0 0.0
  %365 = vmatmul.mubr.f32.gmra.mrb[0].mxu0 %v101
  %v366 = vpop.f32.mrb[0].mxu0
  %v367 = vadd.f32 0.0, %v366
  %v368 = vpop.f32.mrb[0].mxu0
  %369 = vmatprep.mubr.f32.mxu0 0.0
  %370 = vmatmul.mubr.f32.gmra.mrb[0].mxu0 %v104
  %v371 = vpop.f32.mrb[0].mxu0
  %v372 = vadd.f32 0.0, %v371
  %v373 = vpop.f32.mrb[0].mxu0
  %374 = vmatprep.mubr.f32.mxu0 0.0
  %375 = vmatmul.mubr.f32.gmra.mrb[0].mxu0 %v107
  %v376 = vpop.f32.mrb[0].mxu0
  %v377 = vadd.f32 0.0, %v376
  %v378 = vpop.f32.mrb[0].mxu0
  %379 = vmatprep.mubr.f32.mxu0 0.0
  %380 = vmatmul.mubr.f32.gmra.mrb[0].mxu0 %v110
  %v381 = vpop.f32.mrb[0].mxu0
  %v382 = vadd.f32 0.0, %v381
  %v383 = vpop.f32.mrb[0].mxu0
  %384 = vmatprep.mubr.f32.mxu0 0.0
  %385 = vmatmul.mubr.f32.gmra.mrb[0].mxu0 %v113
  %v386 = vpop.f32.mrb[0].mxu0
  %v387 = vadd.f32 0.0, %v386
  %v388 = vpop.f32.mrb[0].mxu0
  %389 = vmatprep.mubr.f32.mxu0 0.0
  %390 = vmatmul.mubr.f32.gmra.mrb[0].mxu0 %v116
  %v391 = vpop.f32.mrb[0].mxu0
  %v392 = vadd.f32 0.0, %v391
  %v393 = vpop.f32.mrb[0].mxu0
  %394 = vmatprep.mubr.f32.mxu0 0.0
  %395 = vmatmul.mubr.f32.gmra.mrb[0].mxu0 %v119
  %v396 = vpop.f32.mrb[0].mxu0
  %v397 = vadd.f32 0.0, %v396
  %v398 = vpop.f32.mrb[0].mxu0
  %399 = vmatprep.mubr.f32.mxu0 0.0
  %400 = vmatmul.mubr.f32.gmra.mrb[0].mxu0 %v122
  %v401 = vpop.f32.mrb[0].mxu0
  %v402 = vadd.f32 0.0, %v401
  %v403 = vpop.f32.mrb[0].mxu0
  %404 = vmatprep.mubr.f32.mxu0 0.0
  %405 = vmatmul.mubr.f32.gmra.mrb[0].mxu0 %v125
  %v406 = vpop.f32.mrb[0].mxu0
  %v407 = vadd.f32 0.0, %v406
  %v408 = vpop.f32.mrb[0].mxu0
  %409 = vmatprep.mubr.f32.mxu0 0.0
  %410 = vmatmul.mubr.f32.gmra.mrb[0].mxu0 %v128
  %v411 = vpop.f32.mrb[0].mxu0
  %v412 = vadd.f32 0.0, %v411
  %v413 = vpop.f32.mrb[0].mxu0
  %414 = vmatprep.mubr.f32.mxu0 0.0
  %415 = vmatmul.mubr.f32.gmra.mrb[0].mxu0 %v131
  %v416 = vpop.f32.mrb[0].mxu0
  %v417 = vadd.f32 0.0, %v416
  %v418 = vpop.f32.mrb[0].mxu0
  %419 = vmatprep.mubr.f32.mxu0 0.0
  %420 = vmatmul.mubr.f32.gmra.mrb[0].mxu0 %v134
  %v421 = vpop.f32.mrb[0].mxu0
  %v422 = vadd.f32 0.0, %v421
  %v423 = vpop.f32.mrb[0].mxu0
  %424 = vmatprep.mubr.f32.mxu0 0.0
  %425 = vmatmul.mubr.f32.gmra.mrb[0].mxu0 %v137
  %v426 = vpop.f32.mrb[0].mxu0
  %v427 = vadd.f32 0.0, %v426
  %v428 = vpop.f32.mrb[0].mxu0
  %429 = vmatprep.mubr.f32.mxu0 0.0
  %430 = vmatmul.mubr.f32.gmra.mrb[0].mxu0 %v140
  %v431 = vpop.f32.mrb[0].mxu0
  %v432 = vadd.f32 0.0, %v431
  %v433 = vpop.f32.mrb[0].mxu0
  %434 = vmatprep.mubr.f32.mxu0 0.0
  %435 = vmatmul.mubr.f32.gmra.mrb[0].mxu0 %v143
  %v436 = vpop.f32.mrb[0].mxu0
  %v437 = vadd.f32 0.0, %v436
  %v438 = vpop.f32.mrb[0].mxu0
  %439 = vmatprep.mubr.f32.mxu0 0.0
  %440 = vmatmul.mubr.f32.gmra.mrb[0].mxu0 %v146
  %v441 = vpop.f32.mrb[0].mxu0
  %v442 = vadd.f32 0.0, %v441
  %v443 = vpop.f32.mrb[0].mxu0
  %444 = vmatprep.mubr.f32.mxu0 0.0
  %445 = vmatmul.mubr.f32.gmra.mrb[0].mxu0 %v149
  %v446 = vpop.f32.mrb[0].mxu0
  %v447 = vadd.f32 0.0, %v446
  %v448 = vpop.f32.mrb[0].mxu0
  %449 = vmatprep.mubr.f32.mxu0 0.0
  %450 = vmatmul.mubr.f32.gmra.mrb[0].mxu0 %v152
  %v451 = vpop.f32.mrb[0].mxu0
  %v452 = vadd.f32 0.0, %v451
  %v453 = vpop.f32.mrb[0].mxu0
  %454 = vmatprep.mubr.f32.mxu0 0.0
  %455 = vmatmul.mubr.f32.gmra.mrb[0].mxu0 %v155
  %v456 = vpop.f32.mrb[0].mxu0
  %v457 = vadd.f32 0.0, %v456
  %v458 = vpop.f32.mrb[0].mxu0
  %459 = vmatprep.mubr.f32.mxu0 0.0
  %460 = vmatmul.mubr.f32.gmra.mrb[0].mxu0 %v158
  %v461 = vpop.f32.mrb[0].mxu0
  %v462 = vadd.f32 0.0, %v461
  %v463 = vpop.f32.mrb[0].mxu0
  %464 = vmatprep.mubr.f32.mxu0 0.0
  %465 = vmatmul.mubr.f32.gmra.mrb[0].mxu0 %v161
  %v466 = vpop.f32.mrb[0].mxu0
  %v467 = vadd.f32 0.0, %v466
  %v468 = vpop.f32.mrb[0].mxu0
  %469 = vmatprep.mubr.f32.mxu0 0.0
  %470 = vmatmul.mubr.f32.gmra.mrb[0].mxu0 %v164
  %v471 = vpop.f32.mrb[0].mxu0
  %v472 = vadd.f32 0.0, %v471
  %v473 = vpop.f32.mrb[0].mxu0
  %474 = vmatprep.mubr.f32.mxu0 0.0
  %475 = vmatmul.mubr.f32.gmra.mrb[0].mxu0 %v167
  %v476 = vpop.f32.mrb[0].mxu0
  %v477 = vadd.f32 0.0, %v476
  %v478 = vpop.f32.mrb[0].mxu0
  %479 = vmatprep.mubr.f32.mxu0 0.0
  %480 = vmatmul.mubr.f32.gmra.mrb[0].mxu0 %v170
  %v481 = vpop.f32.mrb[0].mxu0
  %v482 = vadd.f32 0.0, %v481
  %v483 = vpop.f32.mrb[0].mxu0
  %484 = vmatprep.mubr.f32.mxu0 0.0
  %485 = vmatmul.mubr.f32.gmra.mrb[0].mxu0 %v173
  %v486 = vpop.f32.mrb[0].mxu0
  %v487 = vadd.f32 0.0, %v486
  %v488 = vpop.f32.mrb[0].mxu0
  %489 = vmatprep.mubr.f32.mxu0 0.0
  %490 = vmatmul.mubr.f32.gmra.mrb[0].mxu0 %v176
  %v491 = vpop.f32.mrb[0].mxu0
  %v492 = vadd.f32 0.0, %v491
  %v493 = vpop.f32.mrb[0].mxu0
  %494 = vmatprep.mubr.f32.mxu0 0.0
  %495 = vmatmul.mubr.f32.gmra.mrb[0].mxu0 %v179
  %v496 = vpop.f32.mrb[0].mxu0
  %v497 = vadd.f32 0.0, %v496
  %v498 = vpop.f32.mrb[0].mxu0
  %499 = vmatprep.mubr.f32.mxu0 0.0
  %500 = vmatmul.mubr.f32.gmra.mrb[0].mxu0 %v182
  %v501 = vpop.f32.mrb[0].mxu0
  %v502 = vadd.f32 0.0, %v501
  %v503 = vpop.f32.mrb[0].mxu0
  %504 = vmatprep.mubr.f32.mxu0 0.0
  %505 = vmatmul.mubr.f32.gmra.mrb[0].mxu0 %v185
  %v506 = vpop.f32.mrb[0].mxu0
  %v507 = vadd.f32 0.0, %v506
  %v508 = vpop.f32.mrb[0].mxu0
  %509 = vmatprep.mubr.f32.mxu0 0.0
  %510 = vmatmul.mubr.f32.gmra.mrb[0].mxu0 %v188
  %v511 = vpop.f32.mrb[0].mxu0
  %v512 = vadd.f32 0.0, %v511
  %v513 = vpop.f32.mrb[0].mxu0
  %514 = vmatprep.mubr.f32.mxu0 0.0
  %515 = vmatmul.mubr.f32.gmra.mrb[0].mxu0 %v191
  %v516 = vpop.f32.mrb[0].mxu0
  %v517 = vadd.f32 0.0, %v516
  %v518 = vpop.f32.mrb[0].mxu0
  %519 = vmatprep.mubr.f32.mxu0 0.0
  %520 = vmatmul.mubr.f32.gmra.mrb[0].mxu0 %v194
  %v521 = vpop.f32.mrb[0].mxu0
  %v522 = vadd.f32 0.0, %v521
  %v523 = vpop.f32.mrb[0].mxu0
  %524 = vmatprep.mubr.f32.mxu0 0.0
  %525 = vmatmul.mubr.f32.gmra.mrb[0].mxu0 %v197
  %v526 = vpop.f32.mrb[0].mxu0
  %v527 = vadd.f32 0.0, %v526
  %v528 = vpop.f32.mrb[0].mxu0
  %529 = vmatprep.mubr.f32.mxu0 0.0
  %530 = vmatmul.mubr.f32.gmra.mrb[0].mxu0 %v200
  %v531 = vpop.f32.mrb[0].mxu0
  %v532 = vadd.f32 0.0, %v531
  %v533 = vpop.f32.mrb[0].mxu0
  %534 = vmatprep.mubr.f32.mxu0 0.0
  %535 = vmatmul.mubr.f32.gmra.mrb[0].mxu0 %v203
  %v536 = vpop.f32.mrb[0].mxu0
  %v537 = vadd.f32 0.0, %v536
  %v538 = vpop.f32.mrb[0].mxu0
  %539 = vmatprep.mubr.f32.mxu0 0.0
  %540 = vmatmul.mubr.f32.gmra.mrb[0].mxu0 %v206
  %v541 = vpop.f32.mrb[0].mxu0
  %v542 = vadd.f32 0.0, %v541
  %v543 = vpop.f32.mrb[0].mxu0
  %544 = vmatprep.mubr.f32.mxu0 0.0
  %545 = vmatmul.mubr.f32.gmra.mrb[0].mxu0 %v209
  %v546 = vpop.f32.mrb[0].mxu0
  %v547 = vadd.f32 0.0, %v546
  %v548 = vpop.f32.mrb[0].mxu0
  %549 = vmatprep.mubr.f32.mxu0 0.0
  %550 = vmatmul.mubr.f32.gmra.mrb[0].mxu0 %v212
  %v551 = vpop.f32.mrb[0].mxu0
  %v552 = vadd.f32 0.0, %v551
  %v553 = vpop.f32.mrb[0].mxu0
  %554 = vmatprep.mubr.f32.mxu0 0.0
  %555 = vmatmul.mubr.f32.gmra.mrb[0].mxu0 %v215
  %v556 = vpop.f32.mrb[0].mxu0
  %v557 = vadd.f32 0.0, %v556
  %v558 = vpop.f32.mrb[0].mxu0
  %559 = vmatprep.mubr.f32.mxu0 0.0
  %560 = vmatmul.mubr.f32.gmra.mrb[0].mxu0 %v218
  %v561 = vpop.f32.mrb[0].mxu0
  %v562 = vadd.f32 0.0, %v561
  %v563 = vpop.f32.mrb[0].mxu0
  %564 = vmatprep.mubr.f32.mxu0 0.0
  %565 = vmatmul.mubr.f32.gmra.mrb[0].mxu0 %v221
  %v566 = vpop.f32.mrb[0].mxu0
  %v567 = vadd.f32 0.0, %v566
  %v568 = vpop.f32.mrb[0].mxu0
  %569 = vmatprep.mubr.f32.mxu0 0.0
  %570 = vmatmul.mubr.f32.gmra.mrb[0].mxu0 %v224
  %v571 = vpop.f32.mrb[0].mxu0
  %v572 = vadd.f32 0.0, %v571
  %v573 = vpop.f32.mrb[0].mxu0
  %574 = vmatprep.mubr.f32.mxu0 0.0
  %575 = vmatmul.mubr.f32.gmra.mrb[0].mxu0 %v227
  %v576 = vpop.f32.mrb[0].mxu0
  %v577 = vadd.f32 0.0, %v576
  %v578 = vpop.f32.mrb[0].mxu0
  %579 = vmatprep.mubr.f32.mxu0 0.0
  %580 = vmatmul.mubr.f32.gmra.mrb[0].mxu0 %v230
  %v581 = vpop.f32.mrb[0].mxu0
  %v582 = vadd.f32 0.0, %v581
  %v583 = vpop.f32.mrb[0].mxu0
  %584 = vmatprep.mubr.f32.mxu0 0.0
  %585 = vmatmul.mubr.f32.gmra.mrb[0].mxu0 %v233
  %v586 = vpop.f32.mrb[0].mxu0
  %v587 = vadd.f32 0.0, %v586
  %v588 = vpop.f32.mrb[0].mxu0
  %589 = vmatprep.mubr.f32.mxu0 0.0
  %590 = vmatmul.mubr.f32.gmra.mrb[0].mxu0 %v236
  %v591 = vpop.f32.mrb[0].mxu0
  %v592 = vadd.f32 0.0, %v591
  %v593 = vpop.f32.mrb[0].mxu0
  %594 = vmatprep.mubr.f32.mxu0 0.0
  %595 = vmatmul.mubr.f32.gmra.mrb[0].mxu0 %v239
  %v596 = vpop.f32.mrb[0].mxu0
  %v597 = vadd.f32 0.0, %v596
  %v598 = vpop.f32.mrb[0].mxu0
  %599 = vmatprep.mubr.f32.mxu0 0.0
  %600 = vmatmul.mubr.f32.gmra.mrb[0].mxu0 %v242
  %v601 = vpop.f32.mrb[0].mxu0
  %v602 = vadd.f32 0.0, %v601
  %v603 = vpop.f32.mrb[0].mxu0
  %604 = vmatprep.mubr.f32.mxu0 0.0
  %605 = vmatmul.mubr.f32.gmra.mrb[0].mxu0 %v245
  %v606 = vpop.f32.mrb[0].mxu0
  %v607 = vadd.f32 0.0, %v606
  %v608 = vpop.f32.mrb[0].mxu0
  %609 = vmatprep.mubr.f32.mxu0 0.0
  %610 = vmatmul.mubr.f32.gmra.mrb[0].mxu0 %v248
  %v611 = vpop.f32.mrb[0].mxu0
  %v612 = vadd.f32 0.0, %v611
  %v613 = vpop.f32.mrb[0].mxu0
  %614 = vmatprep.mubr.f32.mxu0 0.0
  %615 = vmatmul.mubr.f32.gmra.mrb[0].mxu0 %v251
  %v616 = vpop.f32.mrb[0].mxu0
  %v617 = vadd.f32 0.0, %v616
  %v618 = vpop.f32.mrb[0].mxu0
  %619 = vmatprep.mubr.f32.mxu0 0.0
  %620 = vmatmul.mubr.f32.gmra.mrb[0].mxu0 %v254
  %v621 = vpop.f32.mrb[0].mxu0
  %v622 = vadd.f32 0.0, %v621
  %v623 = vpop.f32.mrb[0].mxu0
  %624 = vmatprep.mubr.f32.mxu0 0.0
  %625 = vmatmul.mubr.f32.gmra.mrb[0].mxu0 %v257
  %v626 = vpop.f32.mrb[0].mxu0
  %v627 = vadd.f32 0.0, %v626
  %v628 = vpop.f32.mrb[0].mxu0
  %629 = vmatprep.mubr.f32.mxu0 0.0
  %630 = vmatmul.mubr.f32.gmra.mrb[0].mxu0 %v260
  %v631 = vpop.f32.mrb[0].mxu0
  %v632 = vadd.f32 0.0, %v631
  %v633 = vpop.f32.mrb[0].mxu0
  %634 = vmatprep.mubr.f32.mxu0 0.0
  %635 = vmatmul.mubr.f32.gmra.mrb[0].mxu0 %v263
  %v636 = vpop.f32.mrb[0].mxu0
  %v637 = vadd.f32 0.0, %v636
  %v638 = vpop.f32.mrb[0].mxu0
  %639 = vmatprep.mubr.f32.mxu0 0.0
  %640 = vmatmul.mubr.f32.gmra.mrb[0].mxu0 %v266
  %v641 = vpop.f32.mrb[0].mxu0
  %v642 = vadd.f32 0.0, %v641
  %v643 = vpop.f32.mrb[0].mxu0
  %644 = vmatprep.mubr.f32.mxu0 0.0
  %645 = vmatmul.mubr.f32.gmra.mrb[0].mxu0 %v269
  %v646 = vpop.f32.mrb[0].mxu0
  %v647 = vadd.f32 0.0, %v646
  %v648 = vpop.f32.mrb[0].mxu0
  %649 = vmatprep.mubr.f32.mxu0 0.0
  %650 = vmatmul.mubr.f32.gmra.mrb[0].mxu0 %v272
  %v651 = vpop.f32.mrb[0].mxu0
  %v652 = vadd.f32 0.0, %v651
  %v653 = vpop.f32.mrb[0].mxu0
  %654 = vmatprep.mubr.f32.mxu0 0.0
  %655 = vmatmul.mubr.f32.gmra.mrb[0].mxu0 %v275
  %v656 = vpop.f32.mrb[0].mxu0
  %v657 = vadd.f32 0.0, %v656
  %v658 = vpop.f32.mrb[0].mxu0
  %659 = vmatprep.mubr.f32.mxu0 0.0
  %660 = vmatmul.mubr.f32.gmra.mrb[0].mxu0 %v278
  %v661 = vpop.f32.mrb[0].mxu0
  %v662 = vadd.f32 0.0, %v661
  %v663 = vpop.f32.mrb[0].mxu0
  %664 = vdwg.mxu0
  %vm665 = vcmask 31744
  %v666 = vsel %vm665, %v347, 0.0
  %v667 = vsel %vm665, %v352, 0.0
  %v668 = vadd.f32 %v666, %v667
  %v669 = vsel %vm665, %v357, 0.0
  %v670 = vadd.f32 %v668, %v669
  %v671 = vsel %vm665, %v362, 0.0
  %v672 = vadd.f32 %v670, %v671
  %v673 = vsel %vm665, %v367, 0.0
  %v674 = vadd.f32 %v672, %v673
  %v675 = vsel %vm665, %v372, 0.0
  %v676 = vadd.f32 %v674, %v675
  %v677 = vsel %vm665, %v377, 0.0
  %v678 = vadd.f32 %v676, %v677
  %v679 = vsel %vm665, %v382, 0.0
  %v680 = vadd.f32 %v678, %v679
  %v681 = vsel %vm665, %v387, 0.0
  %v682 = vadd.f32 %v680, %v681
  %v683 = vsel %vm665, %v392, 0.0
  %v684 = vadd.f32 %v682, %v683
  %v685 = vsel %vm665, %v397, 0.0
  %v686 = vadd.f32 %v684, %v685
  %v687 = vsel %vm665, %v402, 0.0
  %v688 = vadd.f32 %v686, %v687
  %v689 = vsel %vm665, %v407, 0.0
  %v690 = vadd.f32 %v688, %v689
  %v691 = vsel %vm665, %v412, 0.0
  %v692 = vadd.f32 %v690, %v691
  %v693 = vsel %vm665, %v417, 0.0
  %v694 = vadd.f32 %v692, %v693
  %v695 = vsel %vm665, %v422, 0.0
  %v696 = vadd.f32 %v694, %v695
  %v697 = vsel %vm665, %v427, 0.0
  %v698 = vadd.f32 %v696, %v697
  %v699 = vsel %vm665, %v432, 0.0
  %v700 = vadd.f32 %v698, %v699
  %v701 = vsel %vm665, %v437, 0.0
  %v702 = vadd.f32 %v700, %v701
  %v703 = vsel %vm665, %v442, 0.0
  %v704 = vadd.f32 %v702, %v703
  %v705 = vsel %vm665, %v447, 0.0
  %v706 = vadd.f32 %v704, %v705
  %v707 = vsel %vm665, %v452, 0.0
  %v708 = vadd.f32 %v706, %v707
  %v709 = vsel %vm665, %v457, 0.0
  %v710 = vadd.f32 %v708, %v709
  %v711 = vsel %vm665, %v462, 0.0
  %v712 = vadd.f32 %v710, %v711
  %v713 = vsel %vm665, %v467, 0.0
  %v714 = vadd.f32 %v712, %v713
  %v715 = vsel %vm665, %v472, 0.0
  %v716 = vadd.f32 %v714, %v715
  %v717 = vsel %vm665, %v477, 0.0
  %v718 = vadd.f32 %v716, %v717
  %v719 = vsel %vm665, %v482, 0.0
  %v720 = vadd.f32 %v718, %v719
  %v721 = vsel %vm665, %v487, 0.0
  %v722 = vadd.f32 %v720, %v721
  %v723 = vsel %vm665, %v492, 0.0
  %v724 = vadd.f32 %v722, %v723
  %v725 = vsel %vm665, %v497, 0.0
  %v726 = vadd.f32 %v724, %v725
  %v727 = vsel %vm665, %v502, 0.0
  %v728 = vadd.f32 %v726, %v727
  %v729 = vsel %vm665, %v507, 0.0
  %v730 = vadd.f32 %v728, %v729
  %v731 = vsel %vm665, %v512, 0.0
  %v732 = vadd.f32 %v730, %v731
  %v733 = vsel %vm665, %v517, 0.0
  %v734 = vadd.f32 %v732, %v733
  %v735 = vsel %vm665, %v522, 0.0
  %v736 = vadd.f32 %v734, %v735
  %v737 = vsel %vm665, %v527, 0.0
  %v738 = vadd.f32 %v736, %v737
  %v739 = vsel %vm665, %v532, 0.0
  %v740 = vadd.f32 %v738, %v739
  %v741 = vsel %vm665, %v537, 0.0
  %v742 = vadd.f32 %v740, %v741
  %v743 = vsel %vm665, %v542, 0.0
  %v744 = vadd.f32 %v742, %v743
  %v745 = vsel %vm665, %v547, 0.0
  %v746 = vadd.f32 %v744, %v745
  %v747 = vsel %vm665, %v552, 0.0
  %v748 = vadd.f32 %v746, %v747
  %v749 = vsel %vm665, %v557, 0.0
  %v750 = vadd.f32 %v748, %v749
  %v751 = vsel %vm665, %v562, 0.0
  %v752 = vadd.f32 %v750, %v751
  %v753 = vsel %vm665, %v567, 0.0
  %v754 = vadd.f32 %v752, %v753
  %v755 = vsel %vm665, %v572, 0.0
  %v756 = vadd.f32 %v754, %v755
  %v757 = vsel %vm665, %v577, 0.0
  %v758 = vadd.f32 %v756, %v757
  %v759 = vsel %vm665, %v582, 0.0
  %v760 = vadd.f32 %v758, %v759
  %v761 = vsel %vm665, %v587, 0.0
  %v762 = vadd.f32 %v760, %v761
  %v763 = vsel %vm665, %v592, 0.0
  %v764 = vadd.f32 %v762, %v763
  %v765 = vsel %vm665, %v597, 0.0
  %v766 = vadd.f32 %v764, %v765
  %v767 = vsel %vm665, %v602, 0.0
  %v768 = vadd.f32 %v766, %v767
  %v769 = vsel %vm665, %v607, 0.0
  %v770 = vadd.f32 %v768, %v769
  %v771 = vsel %vm665, %v612, 0.0
  %v772 = vadd.f32 %v770, %v771
  %v773 = vsel %vm665, %v617, 0.0
  %v774 = vadd.f32 %v772, %v773
  %v775 = vsel %vm665, %v622, 0.0
  %v776 = vadd.f32 %v774, %v775
  %v777 = vsel %vm665, %v627, 0.0
  %v778 = vadd.f32 %v776, %v777
  %v779 = vsel %vm665, %v632, 0.0
  %v780 = vadd.f32 %v778, %v779
  %v781 = vsel %vm665, %v637, 0.0
  %v782 = vadd.f32 %v780, %v781
  %v783 = vsel %vm665, %v642, 0.0
  %v784 = vadd.f32 %v782, %v783
  %v785 = vsel %vm665, %v647, 0.0
  %v786 = vadd.f32 %v784, %v785
  %v787 = vsel %vm665, %v652, 0.0
  %v788 = vadd.f32 %v786, %v787
  %v789 = vsel %vm665, %v657, 0.0
  %v790 = vadd.f32 %v788, %v789
  %v791 = vsel %vm665, %v662, 0.0
  %v792 = vadd.f32 %v790, %v791
  %v793 = vrot.slane %v792, 4
  %v794 = vadd.f32 %v792, %v793
  %v795 = vrot.slane %v794, 2
  %v796 = vadd.f32 %v794, %v795
  %v797 = vrot.slane %v796, 1
  %v798 = vadd.f32 %v796, %v797
  %v799 = vmul.f32 %v798, 0.001953125
  %v800 = vsub.f32 %v347, %v799
  %v801 = vsub.f32 %v352, %v799
  %v802 = vsub.f32 %v357, %v799
  %v803 = vsub.f32 %v362, %v799
  %v804 = vsub.f32 %v367, %v799
  %v805 = vsub.f32 %v372, %v799
  %v806 = vsub.f32 %v377, %v799
  %v807 = vsub.f32 %v382, %v799
  %v808 = vsub.f32 %v387, %v799
  %v809 = vsub.f32 %v392, %v799
  %v810 = vsub.f32 %v397, %v799
  %v811 = vsub.f32 %v402, %v799
  %v812 = vsub.f32 %v407, %v799
  %v813 = vsub.f32 %v412, %v799
  %v814 = vsub.f32 %v417, %v799
  %v815 = vsub.f32 %v422, %v799
  %v816 = vsub.f32 %v427, %v799
  %v817 = vsub.f32 %v432, %v799
  %v818 = vsub.f32 %v437, %v799
  %v819 = vsub.f32 %v442, %v799
  %v820 = vsub.f32 %v447, %v799
  %v821 = vsub.f32 %v452, %v799
  %v822 = vsub.f32 %v457, %v799
  %v823 = vsub.f32 %v462, %v799
  %v824 = vsub.f32 %v467, %v799
  %v825 = vsub.f32 %v472, %v799
  %v826 = vsub.f32 %v477, %v799
  %v827 = vsub.f32 %v482, %v799
  %v828 = vsub.f32 %v487, %v799
  %v829 = vsub.f32 %v492, %v799
  %v830 = vsub.f32 %v497, %v799
  %v831 = vsub.f32 %v502, %v799
  %v832 = vsub.f32 %v507, %v799
  %v833 = vsub.f32 %v512, %v799
  %v834 = vsub.f32 %v517, %v799
  %v835 = vsub.f32 %v522, %v799
  %v836 = vsub.f32 %v527, %v799
  %v837 = vsub.f32 %v532, %v799
  %v838 = vsub.f32 %v537, %v799
  %v839 = vsub.f32 %v542, %v799
  %v840 = vsub.f32 %v547, %v799
  %v841 = vsub.f32 %v552, %v799
  %v842 = vsub.f32 %v557, %v799
  %v843 = vsub.f32 %v562, %v799
  %v844 = vsub.f32 %v567, %v799
  %v845 = vsub.f32 %v572, %v799
  %v846 = vsub.f32 %v577, %v799
  %v847 = vsub.f32 %v582, %v799
  %v848 = vsub.f32 %v587, %v799
  %v849 = vsub.f32 %v592, %v799
  %v850 = vsub.f32 %v597, %v799
  %v851 = vsub.f32 %v602, %v799
  %v852 = vsub.f32 %v607, %v799
  %v853 = vsub.f32 %v612, %v799
  %v854 = vsub.f32 %v617, %v799
  %v855 = vsub.f32 %v622, %v799
  %v856 = vsub.f32 %v627, %v799
  %v857 = vsub.f32 %v632, %v799
  %v858 = vsub.f32 %v637, %v799
  %v859 = vsub.f32 %v642, %v799
  %v860 = vsub.f32 %v647, %v799
  %v861 = vsub.f32 %v652, %v799
  %v862 = vsub.f32 %v657, %v799
  %v863 = vsub.f32 %v662, %v799
  %v864 = vmul.f32 %v800, %v800
  %v865 = vmul.f32 %v801, %v801
  %v866 = vmul.f32 %v802, %v802
  %v867 = vmul.f32 %v803, %v803
  %v868 = vmul.f32 %v804, %v804
  %v869 = vmul.f32 %v805, %v805
  %v870 = vmul.f32 %v806, %v806
  %v871 = vmul.f32 %v807, %v807
  %v872 = vmul.f32 %v808, %v808
  %v873 = vmul.f32 %v809, %v809
  %v874 = vmul.f32 %v810, %v810
  %v875 = vmul.f32 %v811, %v811
  %v876 = vmul.f32 %v812, %v812
  %v877 = vmul.f32 %v813, %v813
  %v878 = vmul.f32 %v814, %v814
  %v879 = vmul.f32 %v815, %v815
  %v880 = vmul.f32 %v816, %v816
  %v881 = vmul.f32 %v817, %v817
  %v882 = vmul.f32 %v818, %v818
  %v883 = vmul.f32 %v819, %v819
  %v884 = vmul.f32 %v820, %v820
  %v885 = vmul.f32 %v821, %v821
  %v886 = vmul.f32 %v822, %v822
  %v887 = vmul.f32 %v823, %v823
  %v888 = vmul.f32 %v824, %v824
  %v889 = vmul.f32 %v825, %v825
  %v890 = vmul.f32 %v826, %v826
  %v891 = vmul.f32 %v827, %v827
  %v892 = vmul.f32 %v828, %v828
  %v893 = vmul.f32 %v829, %v829
  %v894 = vmul.f32 %v830, %v830
  %v895 = vmul.f32 %v831, %v831
  %v896 = vmul.f32 %v832, %v832
  %v897 = vmul.f32 %v833, %v833
  %v898 = vmul.f32 %v834, %v834
  %v899 = vmul.f32 %v835, %v835
  %v900 = vmul.f32 %v836, %v836
  %v901 = vmul.f32 %v837, %v837
  %v902 = vmul.f32 %v838, %v838
  %v903 = vmul.f32 %v839, %v839
  %v904 = vmul.f32 %v840, %v840
  %v905 = vmul.f32 %v841, %v841
  %v906 = vmul.f32 %v842, %v842
  %v907 = vmul.f32 %v843, %v843
  %v908 = vmul.f32 %v844, %v844
  %v909 = vmul.f32 %v845, %v845
  %v910 = vmul.f32 %v846, %v846
  %v911 = vmul.f32 %v847, %v847
  %v912 = vmul.f32 %v848, %v848
  %v913 = vmul.f32 %v849, %v849
  %v914 = vmul.f32 %v850, %v850
  %v915 = vmul.f32 %v851, %v851
  %v916 = vmul.f32 %v852, %v852
  %v917 = vmul.f32 %v853, %v853
  %v918 = vmul.f32 %v854, %v854
  %v919 = vmul.f32 %v855, %v855
  %v920 = vmul.f32 %v856, %v856
  %v921 = vmul.f32 %v857, %v857
  %v922 = vmul.f32 %v858, %v858
  %v923 = vmul.f32 %v859, %v859
  %v924 = vmul.f32 %v860, %v860
  %v925 = vmul.f32 %v861, %v861
  %v926 = vmul.f32 %v862, %v862
  %v927 = vmul.f32 %v863, %v863
  %v928 = vsel %vm665, %v864, 0.0
  %v929 = vsel %vm665, %v865, 0.0
  %v930 = vadd.f32 %v928, %v929
  %v931 = vsel %vm665, %v866, 0.0
  %v932 = vadd.f32 %v930, %v931
  %v933 = vsel %vm665, %v867, 0.0
  %v934 = vadd.f32 %v932, %v933
  %v935 = vsel %vm665, %v868, 0.0
  %v936 = vadd.f32 %v934, %v935
  %v937 = vsel %vm665, %v869, 0.0
  %v938 = vadd.f32 %v936, %v937
  %v939 = vsel %vm665, %v870, 0.0
  %v940 = vadd.f32 %v938, %v939
  %v941 = vsel %vm665, %v871, 0.0
  %v942 = vadd.f32 %v940, %v941
  %v943 = vsel %vm665, %v872, 0.0
  %v944 = vadd.f32 %v942, %v943
  %v945 = vsel %vm665, %v873, 0.0
  %v946 = vadd.f32 %v944, %v945
  %v947 = vsel %vm665, %v874, 0.0
  %v948 = vadd.f32 %v946, %v947
  %v949 = vsel %vm665, %v875, 0.0
  %v950 = vadd.f32 %v948, %v949
  %v951 = vsel %vm665, %v876, 0.0
  %v952 = vadd.f32 %v950, %v951
  %v953 = vsel %vm665, %v877, 0.0
  %v954 = vadd.f32 %v952, %v953
  %v955 = vsel %vm665, %v878, 0.0
  %v956 = vadd.f32 %v954, %v955
  %v957 = vsel %vm665, %v879, 0.0
  %v958 = vadd.f32 %v956, %v957
  %v959 = vsel %vm665, %v880, 0.0
  %v960 = vadd.f32 %v958, %v959
  %v961 = vsel %vm665, %v881, 0.0
  %v962 = vadd.f32 %v960, %v961
  %v963 = vsel %vm665, %v882, 0.0
  %v964 = vadd.f32 %v962, %v963
  %v965 = vsel %vm665, %v883, 0.0
  %v966 = vadd.f32 %v964, %v965
  %v967 = vsel %vm665, %v884, 0.0
  %v968 = vadd.f32 %v966, %v967
  %v969 = vsel %vm665, %v885, 0.0
  %v970 = vadd.f32 %v968, %v969
  %v971 = vsel %vm665, %v886, 0.0
  %v972 = vadd.f32 %v970, %v971
  %v973 = vsel %vm665, %v887, 0.0
  %v974 = vadd.f32 %v972, %v973
  %v975 = vsel %vm665, %v888, 0.0
  %v976 = vadd.f32 %v974, %v975
  %v977 = vsel %vm665, %v889, 0.0
  %v978 = vadd.f32 %v976, %v977
  %v979 = vsel %vm665, %v890, 0.0
  %v980 = vadd.f32 %v978, %v979
  %v981 = vsel %vm665, %v891, 0.0
  %v982 = vadd.f32 %v980, %v981
  %v983 = vsel %vm665, %v892, 0.0
  %v984 = vadd.f32 %v982, %v983
  %v985 = vsel %vm665, %v893, 0.0
  %v986 = vadd.f32 %v984, %v985
  %v987 = vsel %vm665, %v894, 0.0
  %v988 = vadd.f32 %v986, %v987
  %v989 = vsel %vm665, %v895, 0.0
  %v990 = vadd.f32 %v988, %v989
  %v991 = vsel %vm665, %v896, 0.0
  %v992 = vadd.f32 %v990, %v991
  %v993 = vsel %vm665, %v897, 0.0
  %v994 = vadd.f32 %v992, %v993
  %v995 = vsel %vm665, %v898, 0.0
  %v996 = vadd.f32 %v994, %v995
  %v997 = vsel %vm665, %v899, 0.0
  %v998 = vadd.f32 %v996, %v997
  %v999 = vsel %vm665, %v900, 0.0
  %v1000 = vadd.f32 %v998, %v999
  %v1001 = vsel %vm665, %v901, 0.0
  %v1002 = vadd.f32 %v1000, %v1001
  %v1003 = vsel %vm665, %v902, 0.0
  %v1004 = vadd.f32 %v1002, %v1003
  %v1005 = vsel %vm665, %v903, 0.0
  %v1006 = vadd.f32 %v1004, %v1005
  %v1007 = vsel %vm665, %v904, 0.0
  %v1008 = vadd.f32 %v1006, %v1007
  %v1009 = vsel %vm665, %v905, 0.0
  %v1010 = vadd.f32 %v1008, %v1009
  %v1011 = vsel %vm665, %v906, 0.0
  %v1012 = vadd.f32 %v1010, %v1011
  %v1013 = vsel %vm665, %v907, 0.0
  %v1014 = vadd.f32 %v1012, %v1013
  %v1015 = vsel %vm665, %v908, 0.0
  %v1016 = vadd.f32 %v1014, %v1015
  %v1017 = vsel %vm665, %v909, 0.0
  %v1018 = vadd.f32 %v1016, %v1017
  %v1019 = vsel %vm665, %v910, 0.0
  %v1020 = vadd.f32 %v1018, %v1019
  %v1021 = vsel %vm665, %v911, 0.0
  %v1022 = vadd.f32 %v1020, %v1021
  %v1023 = vsel %vm665, %v912, 0.0
  %v1024 = vadd.f32 %v1022, %v1023
  %v1025 = vsel %vm665, %v913, 0.0
  %v1026 = vadd.f32 %v1024, %v1025
  %v1027 = vsel %vm665, %v914, 0.0
  %v1028 = vadd.f32 %v1026, %v1027
  %v1029 = vsel %vm665, %v915, 0.0
  %v1030 = vadd.f32 %v1028, %v1029
  %v1031 = vsel %vm665, %v916, 0.0
  %v1032 = vadd.f32 %v1030, %v1031
  %v1033 = vsel %vm665, %v917, 0.0
  %v1034 = vadd.f32 %v1032, %v1033
  %v1035 = vsel %vm665, %v918, 0.0
  %v1036 = vadd.f32 %v1034, %v1035
  %v1037 = vsel %vm665, %v919, 0.0
  %v1038 = vadd.f32 %v1036, %v1037
  %v1039 = vsel %vm665, %v920, 0.0
  %v1040 = vadd.f32 %v1038, %v1039
  %v1041 = vsel %vm665, %v921, 0.0
  %v1042 = vadd.f32 %v1040, %v1041
  %v1043 = vsel %vm665, %v922, 0.0
  %v1044 = vadd.f32 %v1042, %v1043
  %v1045 = vsel %vm665, %v923, 0.0
  %v1046 = vadd.f32 %v1044, %v1045
  %v1047 = vsel %vm665, %v924, 0.0
  %v1048 = vadd.f32 %v1046, %v1047
  %v1049 = vsel %vm665, %v925, 0.0
  %v1050 = vadd.f32 %v1048, %v1049
  %v1051 = vsel %vm665, %v926, 0.0
  %v1052 = vadd.f32 %v1050, %v1051
  %v1053 = vsel %vm665, %v927, 0.0
  %v1054 = vadd.f32 %v1052, %v1053
  %v1055 = vrot.slane %v1054, 4
  %v1056 = vadd.f32 %v1054, %v1055
  %v1057 = vrot.slane %v1056, 2
  %v1058 = vadd.f32 %v1056, %v1057
  %v1059 = vrot.slane %v1058, 1
  %v1060 = vadd.f32 %v1058, %v1059
  %v1061 = vmul.f32 %v1060, 0.001953125
  %v1062 = vadd.f32 %v1061, 1e-05
  %v1063 = vrsqrt.pop %v1062
  %v1064 = vmul.f32 %v800, %v1063
  %v1065 = vmul.f32 %v801, %v1063
  %v1066 = vmul.f32 %v802, %v1063
  %v1067 = vmul.f32 %v803, %v1063
  %v1068 = vmul.f32 %v804, %v1063
  %v1069 = vmul.f32 %v805, %v1063
  %v1070 = vmul.f32 %v806, %v1063
  %v1071 = vmul.f32 %v807, %v1063
  %v1072 = vmul.f32 %v808, %v1063
  %v1073 = vmul.f32 %v809, %v1063
  %v1074 = vmul.f32 %v810, %v1063
  %v1075 = vmul.f32 %v811, %v1063
  %v1076 = vmul.f32 %v812, %v1063
  %v1077 = vmul.f32 %v813, %v1063
  %v1078 = vmul.f32 %v814, %v1063
  %v1079 = vmul.f32 %v815, %v1063
  %v1080 = vmul.f32 %v816, %v1063
  %v1081 = vmul.f32 %v817, %v1063
  %v1082 = vmul.f32 %v818, %v1063
  %v1083 = vmul.f32 %v819, %v1063
  %v1084 = vmul.f32 %v820, %v1063
  %v1085 = vmul.f32 %v821, %v1063
  %v1086 = vmul.f32 %v822, %v1063
  %v1087 = vmul.f32 %v823, %v1063
  %v1088 = vmul.f32 %v824, %v1063
  %v1089 = vmul.f32 %v825, %v1063
  %v1090 = vmul.f32 %v826, %v1063
  %v1091 = vmul.f32 %v827, %v1063
  %v1092 = vmul.f32 %v828, %v1063
  %v1093 = vmul.f32 %v829, %v1063
  %v1094 = vmul.f32 %v830, %v1063
  %v1095 = vmul.f32 %v831, %v1063
  %v1096 = vmul.f32 %v832, %v1063
  %v1097 = vmul.f32 %v833, %v1063
  %v1098 = vmul.f32 %v834, %v1063
  %v1099 = vmul.f32 %v835, %v1063
  %v1100 = vmul.f32 %v836, %v1063
  %v1101 = vmul.f32 %v837, %v1063
  %v1102 = vmul.f32 %v838, %v1063
  %v1103 = vmul.f32 %v839, %v1063
  %v1104 = vmul.f32 %v840, %v1063
  %v1105 = vmul.f32 %v841, %v1063
  %v1106 = vmul.f32 %v842, %v1063
  %v1107 = vmul.f32 %v843, %v1063
  %v1108 = vmul.f32 %v844, %v1063
  %v1109 = vmul.f32 %v845, %v1063
  %v1110 = vmul.f32 %v846, %v1063
  %v1111 = vmul.f32 %v847, %v1063
  %v1112 = vmul.f32 %v848, %v1063
  %v1113 = vmul.f32 %v849, %v1063
  %v1114 = vmul.f32 %v850, %v1063
  %v1115 = vmul.f32 %v851, %v1063
  %v1116 = vmul.f32 %v852, %v1063
  %v1117 = vmul.f32 %v853, %v1063
  %v1118 = vmul.f32 %v854, %v1063
  %v1119 = vmul.f32 %v855, %v1063
  %v1120 = vmul.f32 %v856, %v1063
  %v1121 = vmul.f32 %v857, %v1063
  %v1122 = vmul.f32 %v858, %v1063
  %v1123 = vmul.f32 %v859, %v1063
  %v1124 = vmul.f32 %v860, %v1063
  %v1125 = vmul.f32 %v861, %v1063
  %v1126 = vmul.f32 %v862, %v1063
  %v1127 = vmul.f32 %v863, %v1063
  %v1128 = vld [vmem:[%s2] sm:$0x1]
  %v1130 = vlaneseq
  %v1131 = vshrl.u32 %v1130, 7
  %v1132 = vsub.s32 0, %v1131
  %v1133 = vrot.slane %v1128, %v1132
  %v1135 = vmul.f32 %v1064, %v1133
  %v1136 = vmul.f32 %v1065, %v1133
  %v1137 = vmul.f32 %v1066, %v1133
  %v1138 = vmul.f32 %v1067, %v1133
  %v1139 = vmul.f32 %v1068, %v1133
  %v1140 = vmul.f32 %v1069, %v1133
  %v1141 = vmul.f32 %v1070, %v1133
  %v1142 = vmul.f32 %v1071, %v1133
  %v1143 = vmul.f32 %v1072, %v1133
  %v1144 = vmul.f32 %v1073, %v1133
  %v1145 = vmul.f32 %v1074, %v1133
  %v1146 = vmul.f32 %v1075, %v1133
  %v1147 = vmul.f32 %v1076, %v1133
  %v1148 = vmul.f32 %v1077, %v1133
  %v1149 = vmul.f32 %v1078, %v1133
  %v1150 = vmul.f32 %v1079, %v1133
  %v1151 = vmul.f32 %v1080, %v1133
  %v1152 = vmul.f32 %v1081, %v1133
  %v1153 = vmul.f32 %v1082, %v1133
  %v1154 = vmul.f32 %v1083, %v1133
  %v1155 = vmul.f32 %v1084, %v1133
  %v1156 = vmul.f32 %v1085, %v1133
  %v1157 = vmul.f32 %v1086, %v1133
  %v1158 = vmul.f32 %v1087, %v1133
  %v1159 = vmul.f32 %v1088, %v1133
  %v1160 = vmul.f32 %v1089, %v1133
  %v1161 = vmul.f32 %v1090, %v1133
  %v1162 = vmul.f32 %v1091, %v1133
  %v1163 = vmul.f32 %v1092, %v1133
  %v1164 = vmul.f32 %v1093, %v1133
  %v1165 = vmul.f32 %v1094, %v1133
  %v1166 = vmul.f32 %v1095, %v1133
  %v1167 = vmul.f32 %v1096, %v1133
  %v1168 = vmul.f32 %v1097, %v1133
  %v1169 = vmul.f32 %v1098, %v1133
  %v1170 = vmul.f32 %v1099, %v1133
  %v1171 = vmul.f32 %v1100, %v1133
  %v1172 = vmul.f32 %v1101, %v1133
  %v1173 = vmul.f32 %v1102, %v1133
  %v1174 = vmul.f32 %v1103, %v1133
  %v1175 = vmul.f32 %v1104, %v1133
  %v1176 = vmul.f32 %v1105, %v1133
  %v1177 = vmul.f32 %v1106, %v1133
  %v1178 = vmul.f32 %v1107, %v1133
  %v1179 = vmul.f32 %v1108, %v1133
  %v1180 = vmul.f32 %v1109, %v1133
  %v1181 = vmul.f32 %v1110, %v1133
  %v1182 = vmul.f32 %v1111, %v1133
  %v1183 = vmul.f32 %v1112, %v1133
  %v1184 = vmul.f32 %v1113, %v1133
  %v1185 = vmul.f32 %v1114, %v1133
  %v1186 = vmul.f32 %v1115, %v1133
  %v1187 = vmul.f32 %v1116, %v1133
  %v1188 = vmul.f32 %v1117, %v1133
  %v1189 = vmul.f32 %v1118, %v1133
  %v1190 = vmul.f32 %v1119, %v1133
  %v1191 = vmul.f32 %v1120, %v1133
  %v1192 = vmul.f32 %v1121, %v1133
  %v1193 = vmul.f32 %v1122, %v1133
  %v1194 = vmul.f32 %v1123, %v1133
  %v1195 = vmul.f32 %v1124, %v1133
  %v1196 = vmul.f32 %v1125, %v1133
  %v1197 = vmul.f32 %v1126, %v1133
  %v1198 = vmul.f32 %v1127, %v1133
  %v1199 = vld [vmem:[%s3] sm:$0x1]
  %v1201 = vlaneseq
  %v1202 = vshrl.u32 %v1201, 7
  %v1203 = vsub.s32 0, %v1202
  %v1204 = vrot.slane %v1199, %v1203
  %v1206 = vadd.f32 %v1135, %v1204
  %v1207 = vadd.f32 %v1136, %v1204
  %v1208 = vadd.f32 %v1137, %v1204
  %v1209 = vadd.f32 %v1138, %v1204
  %v1210 = vadd.f32 %v1139, %v1204
  %v1211 = vadd.f32 %v1140, %v1204
  %v1212 = vadd.f32 %v1141, %v1204
  %v1213 = vadd.f32 %v1142, %v1204
  %v1214 = vadd.f32 %v1143, %v1204
  %v1215 = vadd.f32 %v1144, %v1204
  %v1216 = vadd.f32 %v1145, %v1204
  %v1217 = vadd.f32 %v1146, %v1204
  %v1218 = vadd.f32 %v1147, %v1204
  %v1219 = vadd.f32 %v1148, %v1204
  %v1220 = vadd.f32 %v1149, %v1204
  %v1221 = vadd.f32 %v1150, %v1204
  %v1222 = vadd.f32 %v1151, %v1204
  %v1223 = vadd.f32 %v1152, %v1204
  %v1224 = vadd.f32 %v1153, %v1204
  %v1225 = vadd.f32 %v1154, %v1204
  %v1226 = vadd.f32 %v1155, %v1204
  %v1227 = vadd.f32 %v1156, %v1204
  %v1228 = vadd.f32 %v1157, %v1204
  %v1229 = vadd.f32 %v1158, %v1204
  %v1230 = vadd.f32 %v1159, %v1204
  %v1231 = vadd.f32 %v1160, %v1204
  %v1232 = vadd.f32 %v1161, %v1204
  %v1233 = vadd.f32 %v1162, %v1204
  %v1234 = vadd.f32 %v1163, %v1204
  %v1235 = vadd.f32 %v1164, %v1204
  %v1236 = vadd.f32 %v1165, %v1204
  %v1237 = vadd.f32 %v1166, %v1204
  %v1238 = vadd.f32 %v1167, %v1204
  %v1239 = vadd.f32 %v1168, %v1204
  %v1240 = vadd.f32 %v1169, %v1204
  %v1241 = vadd.f32 %v1170, %v1204
  %v1242 = vadd.f32 %v1171, %v1204
  %v1243 = vadd.f32 %v1172, %v1204
  %v1244 = vadd.f32 %v1173, %v1204
  %v1245 = vadd.f32 %v1174, %v1204
  %v1246 = vadd.f32 %v1175, %v1204
  %v1247 = vadd.f32 %v1176, %v1204
  %v1248 = vadd.f32 %v1177, %v1204
  %v1249 = vadd.f32 %v1178, %v1204
  %v1250 = vadd.f32 %v1179, %v1204
  %v1251 = vadd.f32 %v1180, %v1204
  %v1252 = vadd.f32 %v1181, %v1204
  %v1253 = vadd.f32 %v1182, %v1204
  %v1254 = vadd.f32 %v1183, %v1204
  %v1255 = vadd.f32 %v1184, %v1204
  %v1256 = vadd.f32 %v1185, %v1204
  %v1257 = vadd.f32 %v1186, %v1204
  %v1258 = vadd.f32 %v1187, %v1204
  %v1259 = vadd.f32 %v1188, %v1204
  %v1260 = vadd.f32 %v1189, %v1204
  %v1261 = vadd.f32 %v1190, %v1204
  %v1262 = vadd.f32 %v1191, %v1204
  %v1263 = vadd.f32 %v1192, %v1204
  %v1264 = vadd.f32 %v1193, %v1204
  %v1265 = vadd.f32 %v1194, %v1204
  %v1266 = vadd.f32 %v1195, %v1204
  %v1267 = vadd.f32 %v1196, %v1204
  %v1268 = vadd.f32 %v1197, %v1204
  %v1269 = vadd.f32 %v1198, %v1204
  %v1270 = vmax.f32 %v1206, 0.0
  %v1271 = vmax.f32 %v1207, 0.0
  %v1272 = vmax.f32 %v1208, 0.0
  %v1273 = vmax.f32 %v1209, 0.0
  %v1274 = vmax.f32 %v1210, 0.0
  %v1275 = vmax.f32 %v1211, 0.0
  %v1276 = vmax.f32 %v1212, 0.0
  %v1277 = vmax.f32 %v1213, 0.0
  %v1278 = vmax.f32 %v1214, 0.0
  %v1279 = vmax.f32 %v1215, 0.0
  %v1280 = vmax.f32 %v1216, 0.0
  %v1281 = vmax.f32 %v1217, 0.0
  %v1282 = vmax.f32 %v1218, 0.0
  %v1283 = vmax.f32 %v1219, 0.0
  %v1284 = vmax.f32 %v1220, 0.0
  %v1285 = vmax.f32 %v1221, 0.0
  %v1286 = vmax.f32 %v1222, 0.0
  %v1287 = vmax.f32 %v1223, 0.0
  %v1288 = vmax.f32 %v1224, 0.0
  %v1289 = vmax.f32 %v1225, 0.0
  %v1290 = vmax.f32 %v1226, 0.0
  %v1291 = vmax.f32 %v1227, 0.0
  %v1292 = vmax.f32 %v1228, 0.0
  %v1293 = vmax.f32 %v1229, 0.0
  %v1294 = vmax.f32 %v1230, 0.0
  %v1295 = vmax.f32 %v1231, 0.0
  %v1296 = vmax.f32 %v1232, 0.0
  %v1297 = vmax.f32 %v1233, 0.0
  %v1298 = vmax.f32 %v1234, 0.0
  %v1299 = vmax.f32 %v1235, 0.0
  %v1300 = vmax.f32 %v1236, 0.0
  %v1301 = vmax.f32 %v1237, 0.0
  %v1302 = vmax.f32 %v1238, 0.0
  %v1303 = vmax.f32 %v1239, 0.0
  %v1304 = vmax.f32 %v1240, 0.0
  %v1305 = vmax.f32 %v1241, 0.0
  %v1306 = vmax.f32 %v1242, 0.0
  %v1307 = vmax.f32 %v1243, 0.0
  %v1308 = vmax.f32 %v1244, 0.0
  %v1309 = vmax.f32 %v1245, 0.0
  %v1310 = vmax.f32 %v1246, 0.0
  %v1311 = vmax.f32 %v1247, 0.0
  %v1312 = vmax.f32 %v1248, 0.0
  %v1313 = vmax.f32 %v1249, 0.0
  %v1314 = vmax.f32 %v1250, 0.0
  %v1315 = vmax.f32 %v1251, 0.0
  %v1316 = vmax.f32 %v1252, 0.0
  %v1317 = vmax.f32 %v1253, 0.0
  %v1318 = vmax.f32 %v1254, 0.0
  %v1319 = vmax.f32 %v1255, 0.0
  %v1320 = vmax.f32 %v1256, 0.0
  %v1321 = vmax.f32 %v1257, 0.0
  %v1322 = vmax.f32 %v1258, 0.0
  %v1323 = vmax.f32 %v1259, 0.0
  %v1324 = vmax.f32 %v1260, 0.0
  %v1325 = vmax.f32 %v1261, 0.0
  %v1326 = vmax.f32 %v1262, 0.0
  %v1327 = vmax.f32 %v1263, 0.0
  %v1328 = vmax.f32 %v1264, 0.0
  %v1329 = vmax.f32 %v1265, 0.0
  %v1330 = vmax.f32 %v1266, 0.0
  %v1331 = vmax.f32 %v1267, 0.0
  %v1332 = vmax.f32 %v1268, 0.0
  %v1333 = vmax.f32 %v1269, 0.0
  %1334 = vst.msk [vmem:[%s4] sm:$0xff] %vm665, %v1270
  %1335 = vst.msk [vmem:[%s4 + $0x8] sm:$0xff] %vm665, %v1271
  %1336 = vst.msk [vmem:[%s4 + $0x10] sm:$0xff] %vm665, %v1272
  %1337 = vst.msk [vmem:[%s4 + $0x18] sm:$0xff] %vm665, %v1273
  %1338 = vst.msk [vmem:[%s4 + $0x20] sm:$0xff] %vm665, %v1274
  %1339 = vst.msk [vmem:[%s4 + $0x28] sm:$0xff] %vm665, %v1275
  %1340 = vst.msk [vmem:[%s4 + $0x30] sm:$0xff] %vm665, %v1276
  %1341 = vst.msk [vmem:[%s4 + $0x38] sm:$0xff] %vm665, %v1277
  %1342 = vst.msk [vmem:[%s4 + $0x40] sm:$0xff] %vm665, %v1278
  %1343 = vst.msk [vmem:[%s4 + $0x48] sm:$0xff] %vm665, %v1279
  %1344 = vst.msk [vmem:[%s4 + $0x50] sm:$0xff] %vm665, %v1280
  %1345 = vst.msk [vmem:[%s4 + $0x58] sm:$0xff] %vm665, %v1281
  %1346 = vst.msk [vmem:[%s4 + $0x60] sm:$0xff] %vm665, %v1282
  %1347 = vst.msk [vmem:[%s4 + $0x68] sm:$0xff] %vm665, %v1283
  %1348 = vst.msk [vmem:[%s4 + $0x70] sm:$0xff] %vm665, %v1284
  %1349 = vst.msk [vmem:[%s4 + $0x78] sm:$0xff] %vm665, %v1285
  %1350 = vst.msk [vmem:[%s4 + $0x80] sm:$0xff] %vm665, %v1286
  %1351 = vst.msk [vmem:[%s4 + $0x88] sm:$0xff] %vm665, %v1287
  %1352 = vst.msk [vmem:[%s4 + $0x90] sm:$0xff] %vm665, %v1288
  %1353 = vst.msk [vmem:[%s4 + $0x98] sm:$0xff] %vm665, %v1289
  %1354 = vst.msk [vmem:[%s4 + $0xa0] sm:$0xff] %vm665, %v1290
  %1355 = vst.msk [vmem:[%s4 + $0xa8] sm:$0xff] %vm665, %v1291
  %1356 = vst.msk [vmem:[%s4 + $0xb0] sm:$0xff] %vm665, %v1292
  %1357 = vst.msk [vmem:[%s4 + $0xb8] sm:$0xff] %vm665, %v1293
  %1358 = vst.msk [vmem:[%s4 + $0xc0] sm:$0xff] %vm665, %v1294
  %1359 = vst.msk [vmem:[%s4 + $0xc8] sm:$0xff] %vm665, %v1295
  %1360 = vst.msk [vmem:[%s4 + $0xd0] sm:$0xff] %vm665, %v1296
  %1361 = vst.msk [vmem:[%s4 + $0xd8] sm:$0xff] %vm665, %v1297
  %1362 = vst.msk [vmem:[%s4 + $0xe0] sm:$0xff] %vm665, %v1298
  %1363 = vst.msk [vmem:[%s4 + $0xe8] sm:$0xff] %vm665, %v1299
  %1364 = vst.msk [vmem:[%s4 + $0xf0] sm:$0xff] %vm665, %v1300
  %1365 = vst.msk [vmem:[%s4 + $0xf8] sm:$0xff] %vm665, %v1301
  %1366 = vst.msk [vmem:[%s4 + $0x100] sm:$0xff] %vm665, %v1302
  %1367 = vst.msk [vmem:[%s4 + $0x108] sm:$0xff] %vm665, %v1303
  %1368 = vst.msk [vmem:[%s4 + $0x110] sm:$0xff] %vm665, %v1304
  %1369 = vst.msk [vmem:[%s4 + $0x118] sm:$0xff] %vm665, %v1305
  %1370 = vst.msk [vmem:[%s4 + $0x120] sm:$0xff] %vm665, %v1306
  %1371 = vst.msk [vmem:[%s4 + $0x128] sm:$0xff] %vm665, %v1307
  %1372 = vst.msk [vmem:[%s4 + $0x130] sm:$0xff] %vm665, %v1308
  %1373 = vst.msk [vmem:[%s4 + $0x138] sm:$0xff] %vm665, %v1309
  %1374 = vst.msk [vmem:[%s4 + $0x140] sm:$0xff] %vm665, %v1310
  %1375 = vst.msk [vmem:[%s4 + $0x148] sm:$0xff] %vm665, %v1311
  %1376 = vst.msk [vmem:[%s4 + $0x150] sm:$0xff] %vm665, %v1312
  %1377 = vst.msk [vmem:[%s4 + $0x158] sm:$0xff] %vm665, %v1313
  %1378 = vst.msk [vmem:[%s4 + $0x160] sm:$0xff] %vm665, %v1314
  %1379 = vst.msk [vmem:[%s4 + $0x168] sm:$0xff] %vm665, %v1315
  %1380 = vst.msk [vmem:[%s4 + $0x170] sm:$0xff] %vm665, %v1316
  %1381 = vst.msk [vmem:[%s4 + $0x178] sm:$0xff] %vm665, %v1317
  %1382 = vst.msk [vmem:[%s4 + $0x180] sm:$0xff] %vm665, %v1318
  %1383 = vst.msk [vmem:[%s4 + $0x188] sm:$0xff] %vm665, %v1319
  %1384 = vst.msk [vmem:[%s4 + $0x190] sm:$0xff] %vm665, %v1320
  %1385 = vst.msk [vmem:[%s4 + $0x198] sm:$0xff] %vm665, %v1321
  %1386 = vst.msk [vmem:[%s4 + $0x1a0] sm:$0xff] %vm665, %v1322
  %1387 = vst.msk [vmem:[%s4 + $0x1a8] sm:$0xff] %vm665, %v1323
  %1388 = vst.msk [vmem:[%s4 + $0x1b0] sm:$0xff] %vm665, %v1324
  %1389 = vst.msk [vmem:[%s4 + $0x1b8] sm:$0xff] %vm665, %v1325
  %1390 = vst.msk [vmem:[%s4 + $0x1c0] sm:$0xff] %vm665, %v1326
  %1391 = vst.msk [vmem:[%s4 + $0x1c8] sm:$0xff] %vm665, %v1327
  %1392 = vst.msk [vmem:[%s4 + $0x1d0] sm:$0xff] %vm665, %v1328
  %1393 = vst.msk [vmem:[%s4 + $0x1d8] sm:$0xff] %vm665, %v1329
  %1394 = vst.msk [vmem:[%s4 + $0x1e0] sm:$0xff] %vm665, %v1330
  %1395 = vst.msk [vmem:[%s4 + $0x1e8] sm:$0xff] %vm665, %v1331
  %1396 = vst.msk [vmem:[%s4 + $0x1f0] sm:$0xff] %vm665, %v1332
  %1397 = vst.msk [vmem:[%s4 + $0x1f8] sm:$0xff] %vm665, %v1333
  // Predicated region
  $region18: #{rcvae_forward.13} parent=0 // pred_check
    _
  $region19: #{rcvae_forward.13} parent=0 // pred_check_branch
    %1399 = sbr.rel (0) target = $region21
  $region20: #{rcvae_forward.13} parent=0 // pred_region
    _
  $region21: #{rcvae_forward.13} parent=0 // pred_fallthru
    _
  // Predicated region
  $region22: #{rcvae_forward.13} parent=0 // pred_check
    _
  $region23: #{rcvae_forward.13} parent=0 // pred_check_branch
    %1401 = sbr.rel (0) target = $region25
  $region24: #{rcvae_forward.13} parent=0 // pred_region
    _
  $region25: #{rcvae_forward.13} parent=0 // pred_fallthru
    _

// kernel: rcvae_forward.14
$region0: #{rcvae_forward.14}
  #allocation0 [shape = 'u32[]', space=smem, size = 0x4, offset = 0x4, fixed_abs, tag = 'smem constant byte address 0x4 - core index']
  #allocation1 [shape = 'u32[144,128]{1,0:T(1,128)}', space=vmem, size = 0x12000, scoped, tag = 'internal scratch']
  %s0 = inlined_call_operand.vmem [shape: f32[128,64], index: 0, kind: input, shape index: {}]
  %s1 = inlined_call_operand.vmem [shape: f32[64,8], index: 1, kind: input, shape index: {}]
  %s2 = inlined_call_operand.vmem [shape: f32[1,8], index: 2, kind: input, shape index: {}]
  %s3 = inlined_call_operand.vmem [shape: f32[1,8], index: 3, kind: input, shape index: {}]
  %s4 = inlined_call_operand.vmem [shape: f32[128,8], index: 4, kind: output, shape index: {}]
  %s5 = sld [smem:[#allocation0]]
  $region26: #{rcvae_forward.14} parent=0
    _
  %s7 = ssub.s32 1, %s5
  %s8 = scalar_select 0, %s7, %s5
  // Predicated region
  $region2: #{rcvae_forward.14} parent=0 // pred_check
    _
  $region3: #{rcvae_forward.14} parent=0 // pred_check_branch
    %10 = sbr.rel (0) target = $region5
  $region4: #{rcvae_forward.14} parent=0 // pred_region
    _
  $region5: #{rcvae_forward.14} parent=0 // pred_fallthru
    _
  // Predicated region
  $region6: #{rcvae_forward.14} parent=0 // pred_check
    _
  $region7: #{rcvae_forward.14} parent=0 // pred_check_branch
    %12 = sbr.rel (0) target = $region9
  $region8: #{rcvae_forward.14} parent=0 // pred_region
    _
  $region9: #{rcvae_forward.14} parent=0 // pred_fallthru
    _
  // Predicated region
  $region10: #{rcvae_forward.14} parent=0 // pred_check
    _
  $region11: #{rcvae_forward.14} parent=0 // pred_check_branch
    %14 = sbr.rel (0) target = $region13
  $region12: #{rcvae_forward.14} parent=0 // pred_region
    _
  $region13: #{rcvae_forward.14} parent=0 // pred_fallthru
    _
  // Predicated region
  $region14: #{rcvae_forward.14} parent=0 // pred_check
    _
  $region15: #{rcvae_forward.14} parent=0 // pred_check_branch
    %16 = sbr.rel (0) target = $region17
  $region16: #{rcvae_forward.14} parent=0 // pred_region
    _
  $region17: #{rcvae_forward.14} parent=0 // pred_fallthru
    _
  %v17 = vld [vmem:[%s0] sm:$0xff]
  %v18 = vld [vmem:[%s0 + $0x8] sm:$0xff]
  %v19 = vld [vmem:[%s0 + $0x10] sm:$0xff]
  %v20 = vld [vmem:[%s0 + $0x18] sm:$0xff]
  %v21 = vld [vmem:[%s0 + $0x20] sm:$0xff]
  %v22 = vld [vmem:[%s0 + $0x28] sm:$0xff]
  %v23 = vld [vmem:[%s0 + $0x30] sm:$0xff]
  %v24 = vld [vmem:[%s0 + $0x38] sm:$0xff]
  %v25 = vld [vmem:[%s0 + $0x40] sm:$0xff]
  %v26 = vld [vmem:[%s0 + $0x48] sm:$0xff]
  %v27 = vld [vmem:[%s0 + $0x50] sm:$0xff]
  %v28 = vld [vmem:[%s0 + $0x58] sm:$0xff]
  %v29 = vld [vmem:[%s0 + $0x60] sm:$0xff]
  %v30 = vld [vmem:[%s0 + $0x68] sm:$0xff]
  %v31 = vld [vmem:[%s0 + $0x70] sm:$0xff]
  %v32 = vld [vmem:[%s0 + $0x78] sm:$0xff]
  %v33 = vld [vmem:[%s1] sm:$0xff]
  %v34 = vld [vmem:[%s1 + $0x8] sm:$0xff]
  %v35 = vld [vmem:[%s1 + $0x10] sm:$0xff]
  %v36 = vld [vmem:[%s1 + $0x18] sm:$0xff]
  %v37 = vld [vmem:[%s1 + $0x20] sm:$0xff]
  %v38 = vld [vmem:[%s1 + $0x28] sm:$0xff]
  %v39 = vld [vmem:[%s1 + $0x30] sm:$0xff]
  %v40 = vld [vmem:[%s1 + $0x38] sm:$0xff]
  %vm41 = vcmask 523264
  %v43 = vsel %vm41, %v17, 0
  %v46 = vsel %vm41, %v18, 0
  %v49 = vsel %vm41, %v19, 0
  %v52 = vsel %vm41, %v20, 0
  %v55 = vsel %vm41, %v21, 0
  %v58 = vsel %vm41, %v22, 0
  %v61 = vsel %vm41, %v23, 0
  %v64 = vsel %vm41, %v24, 0
  %v67 = vsel %vm41, %v25, 0
  %v70 = vsel %vm41, %v26, 0
  %v73 = vsel %vm41, %v27, 0
  %v76 = vsel %vm41, %v28, 0
  %v79 = vsel %vm41, %v29, 0
  %v82 = vsel %vm41, %v30, 0
  %v85 = vsel %vm41, %v31, 0
  %v88 = vsel %vm41, %v32, 0
  %90 = vmatprep.subr.mxu0 0.0
  %91 = vmatpush1.msra.mxu0 %v33
  %92 = vmatprep.subr.mxu0 0.0
  %93 = vmatpush1.msra.mxu0 %v34
  %94 = vmatprep.subr.mxu0 0.0
  %95 = vmatpush1.msra.mxu0 %v35
  %96 = vmatprep.subr.mxu0 0.0
  %97 = vmatpush1.msra.mxu0 %v36
  %98 = vmatprep.subr.mxu0 0.0
  %99 = vmatpush1.msra.mxu0 %v37
  %100 = vmatprep.subr.mxu0 0.0
  %101 = vmatpush1.msra.mxu0 %v38
  %102 = vmatprep.subr.mxu0 0.0
  %103 = vmatpush1.msra.mxu0 %v39
  %104 = vmatprep.subr.mxu0 0.0
  %105 = vmatpush1.msra.mxu0 %v40
  %106 = vmatprep.subr.mxu0 0.0
  %107 = vmatpush1.msra.mxu0 0.0
  %108 = vmatprep.subr.mxu0 0.0
  %109 = vmatpush1.msra.mxu0 0.0
  %110 = vmatprep.subr.mxu0 0.0
  %111 = vmatpush1.msra.mxu0 0.0
  %112 = vmatprep.subr.mxu0 0.0
  %113 = vmatpush1.msra.mxu0 0.0
  %114 = vmatprep.subr.mxu0 0.0
  %115 = vmatpush1.msra.mxu0 0.0
  %116 = vmatprep.subr.mxu0 0.0
  %117 = vmatpush1.msra.mxu0 0.0
  %118 = vmatprep.subr.mxu0 0.0
  %119 = vmatpush1.msra.mxu0 0.0
  %120 = vmatprep.subr.mxu0 0.0
  %121 = vmatpush1.msra.mxu0 0.0
  %122 = vmatprep.subr.mxu0 0.0
  %123 = vmatpush1.msra.mxu0 0.0
  %124 = vmatprep.subr.mxu0 0.0
  %125 = vmatpush1.msra.mxu0 0.0
  %126 = vmatprep.subr.mxu0 0.0
  %127 = vmatpush1.msra.mxu0 0.0
  %128 = vmatprep.subr.mxu0 0.0
  %129 = vmatpush1.msra.mxu0 0.0
  %130 = vmatprep.subr.mxu0 0.0
  %131 = vmatpush1.msra.mxu0 0.0
  %132 = vmatprep.subr.mxu0 0.0
  %133 = vmatpush1.msra.mxu0 0.0
  %134 = vmatprep.subr.mxu0 0.0
  %135 = vmatpush1.msra.mxu0 0.0
  %136 = vmatprep.subr.mxu0 0.0
  %137 = vmatpush1.msra.mxu0 0.0
  %138 = vmatprep.subr.mxu0 0.0
  %139 = vmatpush1.msra.mxu0 0.0
  %140 = vmatprep.subr.mxu0 0.0
  %141 = vmatpush1.msra.mxu0 0.0
  %142 = vmatprep.subr.mxu0 0.0
  %143 = vmatpush1.msra.mxu0 0.0
  %144 = vmatprep.subr.mxu0 0.0
  %145 = vmatpush1.msra.mxu0 0.0
  %146 = vmatprep.subr.mxu0 0.0
  %147 = vmatpush1.msra.mxu0 0.0
  %148 = vmatprep.subr.mxu0 0.0
  %149 = vmatpush1.msra.mxu0 0.0
  %150 = vmatprep.subr.mxu0 0.0
  %151 = vmatpush1.msra.mxu0 0.0
  %152 = vmatprep.subr.mxu0 0.0
  %153 = vmatpush1.msra.mxu0 0.0
  %154 = vmatprep.mubr.f32.mxu0 0.0
  %155 = vmatmul.mubr.f32.gmra.mrb[0].mxu0 %v43
  %v156 = vpop.f32.mrb[0].mxu0
  %v157 = vadd.f32 0.0, %v156
  %v158 = vpop.f32.mrb[0].mxu0
  %159 = vmatprep.mubr.f32.mxu0 0.0
  %160 = vmatmul.mubr.f32.gmra.mrb[0].mxu0 %v46
  %v161 = vpop.f32.mrb[0].mxu0
  %v162 = vadd.f32 0.0, %v161
  %v163 = vpop.f32.mrb[0].mxu0
  %164 = vmatprep.mubr.f32.mxu0 0.0
  %165 = vmatmul.mubr.f32.gmra.mrb[0].mxu0 %v49
  %v166 = vpop.f32.mrb[0].mxu0
  %v167 = vadd.f32 0.0, %v166
  %v168 = vpop.f32.mrb[0].mxu0
  %169 = vmatprep.mubr.f32.mxu0 0.0
  %170 = vmatmul.mubr.f32.gmra.mrb[0].mxu0 %v52
  %v171 = vpop.f32.mrb[0].mxu0
  %v172 = vadd.f32 0.0, %v171
  %v173 = vpop.f32.mrb[0].mxu0
  %174 = vmatprep.mubr.f32.mxu0 0.0
  %175 = vmatmul.mubr.f32.gmra.mrb[0].mxu0 %v55
  %v176 = vpop.f32.mrb[0].mxu0
  %v177 = vadd.f32 0.0, %v176
  %v178 = vpop.f32.mrb[0].mxu0
  %179 = vmatprep.mubr.f32.mxu0 0.0
  %180 = vmatmul.mubr.f32.gmra.mrb[0].mxu0 %v58
  %v181 = vpop.f32.mrb[0].mxu0
  %v182 = vadd.f32 0.0, %v181
  %v183 = vpop.f32.mrb[0].mxu0
  %184 = vmatprep.mubr.f32.mxu0 0.0
  %185 = vmatmul.mubr.f32.gmra.mrb[0].mxu0 %v61
  %v186 = vpop.f32.mrb[0].mxu0
  %v187 = vadd.f32 0.0, %v186
  %v188 = vpop.f32.mrb[0].mxu0
  %189 = vmatprep.mubr.f32.mxu0 0.0
  %190 = vmatmul.mubr.f32.gmra.mrb[0].mxu0 %v64
  %v191 = vpop.f32.mrb[0].mxu0
  %v192 = vadd.f32 0.0, %v191
  %v193 = vpop.f32.mrb[0].mxu0
  %194 = vmatprep.mubr.f32.mxu0 0.0
  %195 = vmatmul.mubr.f32.gmra.mrb[0].mxu0 %v67
  %v196 = vpop.f32.mrb[0].mxu0
  %v197 = vadd.f32 0.0, %v196
  %v198 = vpop.f32.mrb[0].mxu0
  %199 = vmatprep.mubr.f32.mxu0 0.0
  %200 = vmatmul.mubr.f32.gmra.mrb[0].mxu0 %v70
  %v201 = vpop.f32.mrb[0].mxu0
  %v202 = vadd.f32 0.0, %v201
  %v203 = vpop.f32.mrb[0].mxu0
  %204 = vmatprep.mubr.f32.mxu0 0.0
  %205 = vmatmul.mubr.f32.gmra.mrb[0].mxu0 %v73
  %v206 = vpop.f32.mrb[0].mxu0
  %v207 = vadd.f32 0.0, %v206
  %v208 = vpop.f32.mrb[0].mxu0
  %209 = vmatprep.mubr.f32.mxu0 0.0
  %210 = vmatmul.mubr.f32.gmra.mrb[0].mxu0 %v76
  %v211 = vpop.f32.mrb[0].mxu0
  %v212 = vadd.f32 0.0, %v211
  %v213 = vpop.f32.mrb[0].mxu0
  %214 = vmatprep.mubr.f32.mxu0 0.0
  %215 = vmatmul.mubr.f32.gmra.mrb[0].mxu0 %v79
  %v216 = vpop.f32.mrb[0].mxu0
  %v217 = vadd.f32 0.0, %v216
  %v218 = vpop.f32.mrb[0].mxu0
  %219 = vmatprep.mubr.f32.mxu0 0.0
  %220 = vmatmul.mubr.f32.gmra.mrb[0].mxu0 %v82
  %v221 = vpop.f32.mrb[0].mxu0
  %v222 = vadd.f32 0.0, %v221
  %v223 = vpop.f32.mrb[0].mxu0
  %224 = vmatprep.mubr.f32.mxu0 0.0
  %225 = vmatmul.mubr.f32.gmra.mrb[0].mxu0 %v85
  %v226 = vpop.f32.mrb[0].mxu0
  %v227 = vadd.f32 0.0, %v226
  %v228 = vpop.f32.mrb[0].mxu0
  %229 = vmatprep.mubr.f32.mxu0 0.0
  %230 = vmatmul.mubr.f32.gmra.mrb[0].mxu0 %v88
  %v231 = vpop.f32.mrb[0].mxu0
  %v232 = vadd.f32 0.0, %v231
  %v233 = vpop.f32.mrb[0].mxu0
  %234 = vdwg.mxu0
  %vm235 = vcmask 64512
  %v236 = vsel %vm235, %v157, 0.0
  %v237 = vsel %vm235, %v162, 0.0
  %v238 = vadd.f32 %v236, %v237
  %v239 = vsel %vm235, %v167, 0.0
  %v240 = vadd.f32 %v238, %v239
  %v241 = vsel %vm235, %v172, 0.0
  %v242 = vadd.f32 %v240, %v241
  %v243 = vsel %vm235, %v177, 0.0
  %v244 = vadd.f32 %v242, %v243
  %v245 = vsel %vm235, %v182, 0.0
  %v246 = vadd.f32 %v244, %v245
  %v247 = vsel %vm235, %v187, 0.0
  %v248 = vadd.f32 %v246, %v247
  %v249 = vsel %vm235, %v192, 0.0
  %v250 = vadd.f32 %v248, %v249
  %v251 = vsel %vm235, %v197, 0.0
  %v252 = vadd.f32 %v250, %v251
  %v253 = vsel %vm235, %v202, 0.0
  %v254 = vadd.f32 %v252, %v253
  %v255 = vsel %vm235, %v207, 0.0
  %v256 = vadd.f32 %v254, %v255
  %v257 = vsel %vm235, %v212, 0.0
  %v258 = vadd.f32 %v256, %v257
  %v259 = vsel %vm235, %v217, 0.0
  %v260 = vadd.f32 %v258, %v259
  %v261 = vsel %vm235, %v222, 0.0
  %v262 = vadd.f32 %v260, %v261
  %v263 = vsel %vm235, %v227, 0.0
  %v264 = vadd.f32 %v262, %v263
  %v265 = vsel %vm235, %v232, 0.0
  %v266 = vadd.f32 %v264, %v265
  %v267 = vrot.slane %v266, 4
  %v268 = vadd.f32 %v266, %v267
  %v269 = vrot.slane %v268, 2
  %v270 = vadd.f32 %v268, %v269
  %v271 = vrot.slane %v270, 1
  %v272 = vadd.f32 %v270, %v271
  %v273 = vmul.f32 %v272, 0.0078125
  %v274 = vsub.f32 %v157, %v273
  %v275 = vsub.f32 %v162, %v273
  %v276 = vsub.f32 %v167, %v273
  %v277 = vsub.f32 %v172, %v273
  %v278 = vsub.f32 %v177, %v273
  %v279 = vsub.f32 %v182, %v273
  %v280 = vsub.f32 %v187, %v273
  %v281 = vsub.f32 %v192, %v273
  %v282 = vsub.f32 %v197, %v273
  %v283 = vsub.f32 %v202, %v273
  %v284 = vsub.f32 %v207, %v273
  %v285 = vsub.f32 %v212, %v273
  %v286 = vsub.f32 %v217, %v273
  %v287 = vsub.f32 %v222, %v273
  %v288 = vsub.f32 %v227, %v273
  %v289 = vsub.f32 %v232, %v273
  %v290 = vmul.f32 %v274, %v274
  %v291 = vmul.f32 %v275, %v275
  %v292 = vmul.f32 %v276, %v276
  %v293 = vmul.f32 %v277, %v277
  %v294 = vmul.f32 %v278, %v278
  %v295 = vmul.f32 %v279, %v279
  %v296 = vmul.f32 %v280, %v280
  %v297 = vmul.f32 %v281, %v281
  %v298 = vmul.f32 %v282, %v282
  %v299 = vmul.f32 %v283, %v283
  %v300 = vmul.f32 %v284, %v284
  %v301 = vmul.f32 %v285, %v285
  %v302 = vmul.f32 %v286, %v286
  %v303 = vmul.f32 %v287, %v287
  %v304 = vmul.f32 %v288, %v288
  %v305 = vmul.f32 %v289, %v289
  %v306 = vsel %vm235, %v290, 0.0
  %v307 = vsel %vm235, %v291, 0.0
  %v308 = vadd.f32 %v306, %v307
  %v309 = vsel %vm235, %v292, 0.0
  %v310 = vadd.f32 %v308, %v309
  %v311 = vsel %vm235, %v293, 0.0
  %v312 = vadd.f32 %v310, %v311
  %v313 = vsel %vm235, %v294, 0.0
  %v314 = vadd.f32 %v312, %v313
  %v315 = vsel %vm235, %v295, 0.0
  %v316 = vadd.f32 %v314, %v315
  %v317 = vsel %vm235, %v296, 0.0
  %v318 = vadd.f32 %v316, %v317
  %v319 = vsel %vm235, %v297, 0.0
  %v320 = vadd.f32 %v318, %v319
  %v321 = vsel %vm235, %v298, 0.0
  %v322 = vadd.f32 %v320, %v321
  %v323 = vsel %vm235, %v299, 0.0
  %v324 = vadd.f32 %v322, %v323
  %v325 = vsel %vm235, %v300, 0.0
  %v326 = vadd.f32 %v324, %v325
  %v327 = vsel %vm235, %v301, 0.0
  %v328 = vadd.f32 %v326, %v327
  %v329 = vsel %vm235, %v302, 0.0
  %v330 = vadd.f32 %v328, %v329
  %v331 = vsel %vm235, %v303, 0.0
  %v332 = vadd.f32 %v330, %v331
  %v333 = vsel %vm235, %v304, 0.0
  %v334 = vadd.f32 %v332, %v333
  %v335 = vsel %vm235, %v305, 0.0
  %v336 = vadd.f32 %v334, %v335
  %v337 = vrot.slane %v336, 4
  %v338 = vadd.f32 %v336, %v337
  %v339 = vrot.slane %v338, 2
  %v340 = vadd.f32 %v338, %v339
  %v341 = vrot.slane %v340, 1
  %v342 = vadd.f32 %v340, %v341
  %v343 = vmul.f32 %v342, 0.0078125
  %v344 = vadd.f32 %v343, 1e-05
  %v345 = vrsqrt.pop %v344
  %v346 = vmul.f32 %v274, %v345
  %v347 = vmul.f32 %v275, %v345
  %v348 = vmul.f32 %v276, %v345
  %v349 = vmul.f32 %v277, %v345
  %v350 = vmul.f32 %v278, %v345
  %v351 = vmul.f32 %v279, %v345
  %v352 = vmul.f32 %v280, %v345
  %v353 = vmul.f32 %v281, %v345
  %v354 = vmul.f32 %v282, %v345
  %v355 = vmul.f32 %v283, %v345
  %v356 = vmul.f32 %v284, %v345
  %v357 = vmul.f32 %v285, %v345
  %v358 = vmul.f32 %v286, %v345
  %v359 = vmul.f32 %v287, %v345
  %v360 = vmul.f32 %v288, %v345
  %v361 = vmul.f32 %v289, %v345
  %v362 = vld [vmem:[%s2] sm:$0x1]
  %v364 = vlaneseq
  %v365 = vshrl.u32 %v364, 7
  %v366 = vsub.s32 0, %v365
  %v367 = vrot.slane %v362, %v366
  %v369 = vmul.f32 %v346, %v367
  %v370 = vmul.f32 %v347, %v367
  %v371 = vmul.f32 %v348, %v367
  %v372 = vmul.f32 %v349, %v367
  %v373 = vmul.f32 %v350, %v367
  %v374 = vmul.f32 %v351, %v367
  %v375 = vmul.f32 %v352, %v367
  %v376 = vmul.f32 %v353, %v367
  %v377 = vmul.f32 %v354, %v367
  %v378 = vmul.f32 %v355, %v367
  %v379 = vmul.f32 %v356, %v367
  %v380 = vmul.f32 %v357, %v367
  %v381 = vmul.f32 %v358, %v367
  %v382 = vmul.f32 %v359, %v367
  %v383 = vmul.f32 %v360, %v367
  %v384 = vmul.f32 %v361, %v367
  %v385 = vld [vmem:[%s3] sm:$0x1]
  %v387 = vlaneseq
  %v388 = vshrl.u32 %v387, 7
  %v389 = vsub.s32 0, %v388
  %v390 = vrot.slane %v385, %v389
  %v392 = vadd.f32 %v369, %v390
  %v393 = vadd.f32 %v370, %v390
  %v394 = vadd.f32 %v371, %v390
  %v395 = vadd.f32 %v372, %v390
  %v396 = vadd.f32 %v373, %v390
  %v397 = vadd.f32 %v374, %v390
  %v398 = vadd.f32 %v375, %v390
  %v399 = vadd.f32 %v376, %v390
  %v400 = vadd.f32 %v377, %v390
  %v401 = vadd.f32 %v378, %v390
  %v402 = vadd.f32 %v379, %v390
  %v403 = vadd.f32 %v380, %v390
  %v404 = vadd.f32 %v381, %v390
  %v405 = vadd.f32 %v382, %v390
  %v406 = vadd.f32 %v383, %v390
  %v407 = vadd.f32 %v384, %v390
  %v408 = vmax.f32 %v392, 0.0
  %v409 = vmax.f32 %v393, 0.0
  %v410 = vmax.f32 %v394, 0.0
  %v411 = vmax.f32 %v395, 0.0
  %v412 = vmax.f32 %v396, 0.0
  %v413 = vmax.f32 %v397, 0.0
  %v414 = vmax.f32 %v398, 0.0
  %v415 = vmax.f32 %v399, 0.0
  %v416 = vmax.f32 %v400, 0.0
  %v417 = vmax.f32 %v401, 0.0
  %v418 = vmax.f32 %v402, 0.0
  %v419 = vmax.f32 %v403, 0.0
  %v420 = vmax.f32 %v404, 0.0
  %v421 = vmax.f32 %v405, 0.0
  %v422 = vmax.f32 %v406, 0.0
  %v423 = vmax.f32 %v407, 0.0
  %424 = vst.msk [vmem:[%s4] sm:$0xff] %vm235, %v408
  %425 = vst.msk [vmem:[%s4 + $0x8] sm:$0xff] %vm235, %v409
  %426 = vst.msk [vmem:[%s4 + $0x10] sm:$0xff] %vm235, %v410
  %427 = vst.msk [vmem:[%s4 + $0x18] sm:$0xff] %vm235, %v411
  %428 = vst.msk [vmem:[%s4 + $0x20] sm:$0xff] %vm235, %v412
  %429 = vst.msk [vmem:[%s4 + $0x28] sm:$0xff] %vm235, %v413
  %430 = vst.msk [vmem:[%s4 + $0x30] sm:$0xff] %vm235, %v414
  %431 = vst.msk [vmem:[%s4 + $0x38] sm:$0xff] %vm235, %v415
  %432 = vst.msk [vmem:[%s4 + $0x40] sm:$0xff] %vm235, %v416
  %433 = vst.msk [vmem:[%s4 + $0x48] sm:$0xff] %vm235, %v417
  %434 = vst.msk [vmem:[%s4 + $0x50] sm:$0xff] %vm235, %v418
  %435 = vst.msk [vmem:[%s4 + $0x58] sm:$0xff] %vm235, %v419
  %436 = vst.msk [vmem:[%s4 + $0x60] sm:$0xff] %vm235, %v420
  %437 = vst.msk [vmem:[%s4 + $0x68] sm:$0xff] %vm235, %v421
  %438 = vst.msk [vmem:[%s4 + $0x70] sm:$0xff] %vm235, %v422
  %439 = vst.msk [vmem:[%s4 + $0x78] sm:$0xff] %vm235, %v423
  // Predicated region
  $region18: #{rcvae_forward.14} parent=0 // pred_check
    _
  $region19: #{rcvae_forward.14} parent=0 // pred_check_branch
    %441 = sbr.rel (0) target = $region21
  $region20: #{rcvae_forward.14} parent=0 // pred_region
    _
  $region21: #{rcvae_forward.14} parent=0 // pred_fallthru
    _
  // Predicated region
  $region22: #{rcvae_forward.14} parent=0 // pred_check
    _
  $region23: #{rcvae_forward.14} parent=0 // pred_check_branch
    %443 = sbr.rel (0) target = $region25
  $region24: #{rcvae_forward.14} parent=0 // pred_region
    _
  $region25: #{rcvae_forward.14} parent=0 // pred_fallthru
    _

// kernel: rcvae_forward.16
$region0: #{rcvae_forward.16}
  #allocation0 [shape = 'u32[]', space=smem, size = 0x4, offset = 0x4, fixed_abs, tag = 'smem constant byte address 0x4 - core index']
  #allocation1 [shape = 'u32[144,128]{1,0:T(1,128)}', space=vmem, size = 0x12000, scoped, tag = 'internal scratch']
  %s0 = inlined_call_operand.vmem [shape: f32[128,8], index: 0, kind: input, shape index: {}]
  %s1 = inlined_call_operand.vmem [shape: f32[8,8], index: 1, kind: input, shape index: {}]
  %s2 = inlined_call_operand.vmem [shape: f32[1,8], index: 2, kind: input, shape index: {}]
  %s3 = inlined_call_operand.vmem [shape: f32[128,8], index: 3, kind: input, shape index: {}]
  %s4 = inlined_call_operand.vmem [shape: f32[1,8], index: 4, kind: input, shape index: {}]
  %s5 = inlined_call_operand.vmem [shape: f32[1,8], index: 5, kind: input, shape index: {}]
  %s6 = inlined_call_operand.vmem [shape: f32[128,8], index: 6, kind: output, shape index: {}]
  %s7 = sld [smem:[#allocation0]]
  $region34: #{rcvae_forward.16} parent=0
    _
  %s9 = ssub.s32 1, %s7
  %s10 = scalar_select 0, %s9, %s7
  // Predicated region
  $region2: #{rcvae_forward.16} parent=0 // pred_check
    _
  $region3: #{rcvae_forward.16} parent=0 // pred_check_branch
    %12 = sbr.rel (0) target = $region5
  $region4: #{rcvae_forward.16} parent=0 // pred_region
    _
  $region5: #{rcvae_forward.16} parent=0 // pred_fallthru
    _
  // Predicated region
  $region6: #{rcvae_forward.16} parent=0 // pred_check
    _
  $region7: #{rcvae_forward.16} parent=0 // pred_check_branch
    %14 = sbr.rel (0) target = $region9
  $region8: #{rcvae_forward.16} parent=0 // pred_region
    _
  $region9: #{rcvae_forward.16} parent=0 // pred_fallthru
    _
  // Predicated region
  $region10: #{rcvae_forward.16} parent=0 // pred_check
    _
  $region11: #{rcvae_forward.16} parent=0 // pred_check_branch
    %16 = sbr.rel (0) target = $region13
  $region12: #{rcvae_forward.16} parent=0 // pred_region
    _
  $region13: #{rcvae_forward.16} parent=0 // pred_fallthru
    _
  // Predicated region
  $region14: #{rcvae_forward.16} parent=0 // pred_check
    _
  $region15: #{rcvae_forward.16} parent=0 // pred_check_branch
    %18 = sbr.rel (0) target = $region17
  $region16: #{rcvae_forward.16} parent=0 // pred_region
    _
  $region17: #{rcvae_forward.16} parent=0 // pred_fallthru
    _
  // Predicated region
  $region18: #{rcvae_forward.16} parent=0 // pred_check
    _
  $region19: #{rcvae_forward.16} parent=0 // pred_check_branch
    %20 = sbr.rel (0) target = $region21
  $region20: #{rcvae_forward.16} parent=0 // pred_region
    _
  $region21: #{rcvae_forward.16} parent=0 // pred_fallthru
    _
  // Predicated region
  $region22: #{rcvae_forward.16} parent=0 // pred_check
    _
  $region23: #{rcvae_forward.16} parent=0 // pred_check_branch
    %22 = sbr.rel (0) target = $region25
  $region24: #{rcvae_forward.16} parent=0 // pred_region
    _
  $region25: #{rcvae_forward.16} parent=0 // pred_fallthru
    _
  %v23 = vld [vmem:[%s0] sm:$0xff]
  %v24 = vld [vmem:[%s0 + $0x8] sm:$0xff]
  %v25 = vld [vmem:[%s0 + $0x10] sm:$0xff]
  %v26 = vld [vmem:[%s0 + $0x18] sm:$0xff]
  %v27 = vld [vmem:[%s0 + $0x20] sm:$0xff]
  %v28 = vld [vmem:[%s0 + $0x28] sm:$0xff]
  %v29 = vld [vmem:[%s0 + $0x30] sm:$0xff]
  %v30 = vld [vmem:[%s0 + $0x38] sm:$0xff]
  %v31 = vld [vmem:[%s0 + $0x40] sm:$0xff]
  %v32 = vld [vmem:[%s0 + $0x48] sm:$0xff]
  %v33 = vld [vmem:[%s0 + $0x50] sm:$0xff]
  %v34 = vld [vmem:[%s0 + $0x58] sm:$0xff]
  %v35 = vld [vmem:[%s0 + $0x60] sm:$0xff]
  %v36 = vld [vmem:[%s0 + $0x68] sm:$0xff]
  %v37 = vld [vmem:[%s0 + $0x70] sm:$0xff]
  %v38 = vld [vmem:[%s0 + $0x78] sm:$0xff]
  %v39 = vld [vmem:[%s1] sm:$0xff]
  %v40 = vld [vmem:[%s2] sm:$0x1]
  %v42 = vlaneseq
  %v43 = vshrl.u32 %v42, 7
  %v44 = vsub.s32 0, %v43
  %v45 = vrot.slane %v40, %v44
  %vm47 = vcmask 64512
  %v49 = vsel %vm47, %v23, 0
  %v52 = vsel %vm47, %v24, 0
  %v55 = vsel %vm47, %v25, 0
  %v58 = vsel %vm47, %v26, 0
  %v61 = vsel %vm47, %v27, 0
  %v64 = vsel %vm47, %v28, 0
  %v67 = vsel %vm47, %v29, 0
  %v70 = vsel %vm47, %v30, 0
  %v73 = vsel %vm47, %v31, 0
  %v76 = vsel %vm47, %v32, 0
  %v79 = vsel %vm47, %v33, 0
  %v82 = vsel %vm47, %v34, 0
  %v85 = vsel %vm47, %v35, 0
  %v88 = vsel %vm47, %v36, 0
  %v91 = vsel %vm47, %v37, 0
  %v94 = vsel %vm47, %v38, 0
  %96 = vmatprep.subr.mxu0 0.0
  %97 = vmatpush1.msra.mxu0 %v39
  %98 = vmatprep.subr.mxu0 0.0
  %99 = vmatpush1.msra.mxu0 0.0
  %100 = vmatprep.subr.mxu0 0.0
  %101 = vmatpush1.msra.mxu0 0.0
  %102 = vmatprep.subr.mxu0 0.0
  %103 = vmatpush1.msra.mxu0 0.0
  %104 = vmatprep.subr.mxu0 0.0
  %105 = vmatpush1.msra.mxu0 0.0
  %106 = vmatprep.subr.mxu0 0.0
  %107 = vmatpush1.msra.mxu0 0.0
  %108 = vmatprep.subr.mxu0 0.0
  %109 = vmatpush1.msra.mxu0 0.0
  %110 = vmatprep.subr.mxu0 0.0
  %111 = vmatpush1.msra.mxu0 0.0
  %112 = vmatprep.subr.mxu0 0.0
  %113 = vmatpush1.msra.mxu0 0.0
  %114 = vmatprep.subr.mxu0 0.0
  %115 = vmatpush1.msra.mxu0 0.0
  %116 = vmatprep.subr.mxu0 0.0
  %117 = vmatpush1.msra.mxu0 0.0
  %118 = vmatprep.subr.mxu0 0.0
  %119 = vmatpush1.msra.mxu0 0.0
  %120 = vmatprep.subr.mxu0 0.0
  %121 = vmatpush1.msra.mxu0 0.0
  %122 = vmatprep.subr.mxu0 0.0
  %123 = vmatpush1.msra.mxu0 0.0
  %124 = vmatprep.subr.mxu0 0.0
  %125 = vmatpush1.msra.mxu0 0.0
  %126 = vmatprep.subr.mxu0 0.0
  %127 = vmatpush1.msra.mxu0 0.0
  %128 = vmatprep.subr.mxu0 0.0
  %129 = vmatpush1.msra.mxu0 0.0
  %130 = vmatprep.subr.mxu0 0.0
  %131 = vmatpush1.msra.mxu0 0.0
  %132 = vmatprep.subr.mxu0 0.0
  %133 = vmatpush1.msra.mxu0 0.0
  %134 = vmatprep.subr.mxu0 0.0
  %135 = vmatpush1.msra.mxu0 0.0
  %136 = vmatprep.subr.mxu0 0.0
  %137 = vmatpush1.msra.mxu0 0.0
  %138 = vmatprep.subr.mxu0 0.0
  %139 = vmatpush1.msra.mxu0 0.0
  %140 = vmatprep.subr.mxu0 0.0
  %141 = vmatpush1.msra.mxu0 0.0
  %142 = vmatprep.subr.mxu0 0.0
  %143 = vmatpush1.msra.mxu0 0.0
  %144 = vmatprep.subr.mxu0 0.0
  %145 = vmatpush1.msra.mxu0 0.0
  %146 = vmatprep.subr.mxu0 0.0
  %147 = vmatpush1.msra.mxu0 0.0
  %148 = vmatprep.subr.mxu0 0.0
  %149 = vmatpush1.msra.mxu0 0.0
  %150 = vmatprep.subr.mxu0 0.0
  %151 = vmatpush1.msra.mxu0 0.0
  %152 = vmatprep.subr.mxu0 0.0
  %153 = vmatpush1.msra.mxu0 0.0
  %154 = vmatprep.subr.mxu0 0.0
  %155 = vmatpush1.msra.mxu0 0.0
  %156 = vmatprep.subr.mxu0 0.0
  %157 = vmatpush1.msra.mxu0 0.0
  %158 = vmatprep.subr.mxu0 0.0
  %159 = vmatpush1.msra.mxu0 0.0
  %160 = vmatprep.mubr.f32.mxu0 0.0
  %161 = vmatmul.mubr.f32.gmra.mrb[0].mxu0 %v49
  %v162 = vpop.f32.mrb[0].mxu0
  %v163 = vadd.f32 %v45, %v162
  %v164 = vpop.f32.mrb[0].mxu0
  %165 = vmatprep.mubr.f32.mxu0 0.0
  %166 = vmatmul.mubr.f32.gmra.mrb[0].mxu0 %v52
  %v167 = vpop.f32.mrb[0].mxu0
  %v168 = vadd.f32 %v45, %v167
  %v169 = vpop.f32.mrb[0].mxu0
  %170 = vmatprep.mubr.f32.mxu0 0.0
  %171 = vmatmul.mubr.f32.gmra.mrb[0].mxu0 %v55
  %v172 = vpop.f32.mrb[0].mxu0
  %v173 = vadd.f32 %v45, %v172
  %v174 = vpop.f32.mrb[0].mxu0
  %175 = vmatprep.mubr.f32.mxu0 0.0
  %176 = vmatmul.mubr.f32.gmra.mrb[0].mxu0 %v58
  %v177 = vpop.f32.mrb[0].mxu0
  %v178 = vadd.f32 %v45, %v177
  %v179 = vpop.f32.mrb[0].mxu0
  %180 = vmatprep.mubr.f32.mxu0 0.0
  %181 = vmatmul.mubr.f32.gmra.mrb[0].mxu0 %v61
  %v182 = vpop.f32.mrb[0].mxu0
  %v183 = vadd.f32 %v45, %v182
  %v184 = vpop.f32.mrb[0].mxu0
  %185 = vmatprep.mubr.f32.mxu0 0.0
  %186 = vmatmul.mubr.f32.gmra.mrb[0].mxu0 %v64
  %v187 = vpop.f32.mrb[0].mxu0
  %v188 = vadd.f32 %v45, %v187
  %v189 = vpop.f32.mrb[0].mxu0
  %190 = vmatprep.mubr.f32.mxu0 0.0
  %191 = vmatmul.mubr.f32.gmra.mrb[0].mxu0 %v67
  %v192 = vpop.f32.mrb[0].mxu0
  %v193 = vadd.f32 %v45, %v192
  %v194 = vpop.f32.mrb[0].mxu0
  %195 = vmatprep.mubr.f32.mxu0 0.0
  %196 = vmatmul.mubr.f32.gmra.mrb[0].mxu0 %v70
  %v197 = vpop.f32.mrb[0].mxu0
  %v198 = vadd.f32 %v45, %v197
  %v199 = vpop.f32.mrb[0].mxu0
  %200 = vmatprep.mubr.f32.mxu0 0.0
  %201 = vmatmul.mubr.f32.gmra.mrb[0].mxu0 %v73
  %v202 = vpop.f32.mrb[0].mxu0
  %v203 = vadd.f32 %v45, %v202
  %v204 = vpop.f32.mrb[0].mxu0
  %205 = vmatprep.mubr.f32.mxu0 0.0
  %206 = vmatmul.mubr.f32.gmra.mrb[0].mxu0 %v76
  %v207 = vpop.f32.mrb[0].mxu0
  %v208 = vadd.f32 %v45, %v207
  %v209 = vpop.f32.mrb[0].mxu0
  %210 = vmatprep.mubr.f32.mxu0 0.0
  %211 = vmatmul.mubr.f32.gmra.mrb[0].mxu0 %v79
  %v212 = vpop.f32.mrb[0].mxu0
  %v213 = vadd.f32 %v45, %v212
  %v214 = vpop.f32.mrb[0].mxu0
  %215 = vmatprep.mubr.f32.mxu0 0.0
  %216 = vmatmul.mubr.f32.gmra.mrb[0].mxu0 %v82
  %v217 = vpop.f32.mrb[0].mxu0
  %v218 = vadd.f32 %v45, %v217
  %v219 = vpop.f32.mrb[0].mxu0
  %220 = vmatprep.mubr.f32.mxu0 0.0
  %221 = vmatmul.mubr.f32.gmra.mrb[0].mxu0 %v85
  %v222 = vpop.f32.mrb[0].mxu0
  %v223 = vadd.f32 %v45, %v222
  %v224 = vpop.f32.mrb[0].mxu0
  %225 = vmatprep.mubr.f32.mxu0 0.0
  %226 = vmatmul.mubr.f32.gmra.mrb[0].mxu0 %v88
  %v227 = vpop.f32.mrb[0].mxu0
  %v228 = vadd.f32 %v45, %v227
  %v229 = vpop.f32.mrb[0].mxu0
  %230 = vmatprep.mubr.f32.mxu0 0.0
  %231 = vmatmul.mubr.f32.gmra.mrb[0].mxu0 %v91
  %v232 = vpop.f32.mrb[0].mxu0
  %v233 = vadd.f32 %v45, %v232
  %v234 = vpop.f32.mrb[0].mxu0
  %235 = vmatprep.mubr.f32.mxu0 0.0
  %236 = vmatmul.mubr.f32.gmra.mrb[0].mxu0 %v94
  %v237 = vpop.f32.mrb[0].mxu0
  %v238 = vadd.f32 %v45, %v237
  %v239 = vpop.f32.mrb[0].mxu0
  %240 = vdwg.mxu0
  %v241 = vld [vmem:[%s3] sm:$0xff]
  %v242 = vld [vmem:[%s3 + $0x8] sm:$0xff]
  %v243 = vld [vmem:[%s3 + $0x10] sm:$0xff]
  %v244 = vld [vmem:[%s3 + $0x18] sm:$0xff]
  %v245 = vld [vmem:[%s3 + $0x20] sm:$0xff]
  %v246 = vld [vmem:[%s3 + $0x28] sm:$0xff]
  %v247 = vld [vmem:[%s3 + $0x30] sm:$0xff]
  %v248 = vld [vmem:[%s3 + $0x38] sm:$0xff]
  %v249 = vld [vmem:[%s3 + $0x40] sm:$0xff]
  %v250 = vld [vmem:[%s3 + $0x48] sm:$0xff]
  %v251 = vld [vmem:[%s3 + $0x50] sm:$0xff]
  %v252 = vld [vmem:[%s3 + $0x58] sm:$0xff]
  %v253 = vld [vmem:[%s3 + $0x60] sm:$0xff]
  %v254 = vld [vmem:[%s3 + $0x68] sm:$0xff]
  %v255 = vld [vmem:[%s3 + $0x70] sm:$0xff]
  %v256 = vld [vmem:[%s3 + $0x78] sm:$0xff]
  %v257 = vadd.f32 %v163, %v241
  %v258 = vadd.f32 %v168, %v242
  %v259 = vadd.f32 %v173, %v243
  %v260 = vadd.f32 %v178, %v244
  %v261 = vadd.f32 %v183, %v245
  %v262 = vadd.f32 %v188, %v246
  %v263 = vadd.f32 %v193, %v247
  %v264 = vadd.f32 %v198, %v248
  %v265 = vadd.f32 %v203, %v249
  %v266 = vadd.f32 %v208, %v250
  %v267 = vadd.f32 %v213, %v251
  %v268 = vadd.f32 %v218, %v252
  %v269 = vadd.f32 %v223, %v253
  %v270 = vadd.f32 %v228, %v254
  %v271 = vadd.f32 %v233, %v255
  %v272 = vadd.f32 %v238, %v256
  %v273 = vsel %vm47, %v257, 0.0
  %v274 = vsel %vm47, %v258, 0.0
  %v275 = vadd.f32 %v273, %v274
  %v276 = vsel %vm47, %v259, 0.0
  %v277 = vadd.f32 %v275, %v276
  %v278 = vsel %vm47, %v260, 0.0
  %v279 = vadd.f32 %v277, %v278
  %v280 = vsel %vm47, %v261, 0.0
  %v281 = vadd.f32 %v279, %v280
  %v282 = vsel %vm47, %v262, 0.0
  %v283 = vadd.f32 %v281, %v282
  %v284 = vsel %vm47, %v263, 0.0
  %v285 = vadd.f32 %v283, %v284
  %v286 = vsel %vm47, %v264, 0.0
  %v287 = vadd.f32 %v285, %v286
  %v288 = vsel %vm47, %v265, 0.0
  %v289 = vadd.f32 %v287, %v288
  %v290 = vsel %vm47, %v266, 0.0
  %v291 = vadd.f32 %v289, %v290
  %v292 = vsel %vm47, %v267, 0.0
  %v293 = vadd.f32 %v291, %v292
  %v294 = vsel %vm47, %v268, 0.0
  %v295 = vadd.f32 %v293, %v294
  %v296 = vsel %vm47, %v269, 0.0
  %v297 = vadd.f32 %v295, %v296
  %v298 = vsel %vm47, %v270, 0.0
  %v299 = vadd.f32 %v297, %v298
  %v300 = vsel %vm47, %v271, 0.0
  %v301 = vadd.f32 %v299, %v300
  %v302 = vsel %vm47, %v272, 0.0
  %v303 = vadd.f32 %v301, %v302
  %v304 = vrot.slane %v303, 4
  %v305 = vadd.f32 %v303, %v304
  %v306 = vrot.slane %v305, 2
  %v307 = vadd.f32 %v305, %v306
  %v308 = vrot.slane %v307, 1
  %v309 = vadd.f32 %v307, %v308
  %v310 = vmul.f32 %v309, 0.0078125
  %v311 = vsub.f32 %v257, %v310
  %v312 = vsub.f32 %v258, %v310
  %v313 = vsub.f32 %v259, %v310
  %v314 = vsub.f32 %v260, %v310
  %v315 = vsub.f32 %v261, %v310
  %v316 = vsub.f32 %v262, %v310
  %v317 = vsub.f32 %v263, %v310
  %v318 = vsub.f32 %v264, %v310
  %v319 = vsub.f32 %v265, %v310
  %v320 = vsub.f32 %v266, %v310
  %v321 = vsub.f32 %v267, %v310
  %v322 = vsub.f32 %v268, %v310
  %v323 = vsub.f32 %v269, %v310
  %v324 = vsub.f32 %v270, %v310
  %v325 = vsub.f32 %v271, %v310
  %v326 = vsub.f32 %v272, %v310
  %v327 = vmul.f32 %v311, %v311
  %v328 = vmul.f32 %v312, %v312
  %v329 = vmul.f32 %v313, %v313
  %v330 = vmul.f32 %v314, %v314
  %v331 = vmul.f32 %v315, %v315
  %v332 = vmul.f32 %v316, %v316
  %v333 = vmul.f32 %v317, %v317
  %v334 = vmul.f32 %v318, %v318
  %v335 = vmul.f32 %v319, %v319
  %v336 = vmul.f32 %v320, %v320
  %v337 = vmul.f32 %v321, %v321
  %v338 = vmul.f32 %v322, %v322
  %v339 = vmul.f32 %v323, %v323
  %v340 = vmul.f32 %v324, %v324
  %v341 = vmul.f32 %v325, %v325
  %v342 = vmul.f32 %v326, %v326
  %v343 = vsel %vm47, %v327, 0.0
  %v344 = vsel %vm47, %v328, 0.0
  %v345 = vadd.f32 %v343, %v344
  %v346 = vsel %vm47, %v329, 0.0
  %v347 = vadd.f32 %v345, %v346
  %v348 = vsel %vm47, %v330, 0.0
  %v349 = vadd.f32 %v347, %v348
  %v350 = vsel %vm47, %v331, 0.0
  %v351 = vadd.f32 %v349, %v350
  %v352 = vsel %vm47, %v332, 0.0
  %v353 = vadd.f32 %v351, %v352
  %v354 = vsel %vm47, %v333, 0.0
  %v355 = vadd.f32 %v353, %v354
  %v356 = vsel %vm47, %v334, 0.0
  %v357 = vadd.f32 %v355, %v356
  %v358 = vsel %vm47, %v335, 0.0
  %v359 = vadd.f32 %v357, %v358
  %v360 = vsel %vm47, %v336, 0.0
  %v361 = vadd.f32 %v359, %v360
  %v362 = vsel %vm47, %v337, 0.0
  %v363 = vadd.f32 %v361, %v362
  %v364 = vsel %vm47, %v338, 0.0
  %v365 = vadd.f32 %v363, %v364
  %v366 = vsel %vm47, %v339, 0.0
  %v367 = vadd.f32 %v365, %v366
  %v368 = vsel %vm47, %v340, 0.0
  %v369 = vadd.f32 %v367, %v368
  %v370 = vsel %vm47, %v341, 0.0
  %v371 = vadd.f32 %v369, %v370
  %v372 = vsel %vm47, %v342, 0.0
  %v373 = vadd.f32 %v371, %v372
  %v374 = vrot.slane %v373, 4
  %v375 = vadd.f32 %v373, %v374
  %v376 = vrot.slane %v375, 2
  %v377 = vadd.f32 %v375, %v376
  %v378 = vrot.slane %v377, 1
  %v379 = vadd.f32 %v377, %v378
  %v380 = vmul.f32 %v379, 0.0078125
  %v381 = vadd.f32 %v380, 1e-05
  %v382 = vrsqrt.pop %v381
  %v383 = vmul.f32 %v311, %v382
  %v384 = vmul.f32 %v312, %v382
  %v385 = vmul.f32 %v313, %v382
  %v386 = vmul.f32 %v314, %v382
  %v387 = vmul.f32 %v315, %v382
  %v388 = vmul.f32 %v316, %v382
  %v389 = vmul.f32 %v317, %v382
  %v390 = vmul.f32 %v318, %v382
  %v391 = vmul.f32 %v319, %v382
  %v392 = vmul.f32 %v320, %v382
  %v393 = vmul.f32 %v321, %v382
  %v394 = vmul.f32 %v322, %v382
  %v395 = vmul.f32 %v323, %v382
  %v396 = vmul.f32 %v324, %v382
  %v397 = vmul.f32 %v325, %v382
  %v398 = vmul.f32 %v326, %v382
  %v399 = vld [vmem:[%s4] sm:$0x1]
  %v401 = vlaneseq
  %v402 = vshrl.u32 %v401, 7
  %v403 = vsub.s32 0, %v402
  %v404 = vrot.slane %v399, %v403
  %v406 = vmul.f32 %v383, %v404
  %v407 = vmul.f32 %v384, %v404
  %v408 = vmul.f32 %v385, %v404
  %v409 = vmul.f32 %v386, %v404
  %v410 = vmul.f32 %v387, %v404
  %v411 = vmul.f32 %v388, %v404
  %v412 = vmul.f32 %v389, %v404
  %v413 = vmul.f32 %v390, %v404
  %v414 = vmul.f32 %v391, %v404
  %v415 = vmul.f32 %v392, %v404
  %v416 = vmul.f32 %v393, %v404
  %v417 = vmul.f32 %v394, %v404
  %v418 = vmul.f32 %v395, %v404
  %v419 = vmul.f32 %v396, %v404
  %v420 = vmul.f32 %v397, %v404
  %v421 = vmul.f32 %v398, %v404
  %v422 = vld [vmem:[%s5] sm:$0x1]
  %v424 = vlaneseq
  %v425 = vshrl.u32 %v424, 7
  %v426 = vsub.s32 0, %v425
  %v427 = vrot.slane %v422, %v426
  %v429 = vadd.f32 %v406, %v427
  %v430 = vadd.f32 %v407, %v427
  %v431 = vadd.f32 %v408, %v427
  %v432 = vadd.f32 %v409, %v427
  %v433 = vadd.f32 %v410, %v427
  %v434 = vadd.f32 %v411, %v427
  %v435 = vadd.f32 %v412, %v427
  %v436 = vadd.f32 %v413, %v427
  %v437 = vadd.f32 %v414, %v427
  %v438 = vadd.f32 %v415, %v427
  %v439 = vadd.f32 %v416, %v427
  %v440 = vadd.f32 %v417, %v427
  %v441 = vadd.f32 %v418, %v427
  %v442 = vadd.f32 %v419, %v427
  %v443 = vadd.f32 %v420, %v427
  %v444 = vadd.f32 %v421, %v427
  %445 = vst.msk [vmem:[%s6] sm:$0xff] %vm47, %v429
  %446 = vst.msk [vmem:[%s6 + $0x8] sm:$0xff] %vm47, %v430
  %447 = vst.msk [vmem:[%s6 + $0x10] sm:$0xff] %vm47, %v431
  %448 = vst.msk [vmem:[%s6 + $0x18] sm:$0xff] %vm47, %v432
  %449 = vst.msk [vmem:[%s6 + $0x20] sm:$0xff] %vm47, %v433
  %450 = vst.msk [vmem:[%s6 + $0x28] sm:$0xff] %vm47, %v434
  %451 = vst.msk [vmem:[%s6 + $0x30] sm:$0xff] %vm47, %v435
  %452 = vst.msk [vmem:[%s6 + $0x38] sm:$0xff] %vm47, %v436
  %453 = vst.msk [vmem:[%s6 + $0x40] sm:$0xff] %vm47, %v437
  %454 = vst.msk [vmem:[%s6 + $0x48] sm:$0xff] %vm47, %v438
  %455 = vst.msk [vmem:[%s6 + $0x50] sm:$0xff] %vm47, %v439
  %456 = vst.msk [vmem:[%s6 + $0x58] sm:$0xff] %vm47, %v440
  %457 = vst.msk [vmem:[%s6 + $0x60] sm:$0xff] %vm47, %v441
  %458 = vst.msk [vmem:[%s6 + $0x68] sm:$0xff] %vm47, %v442
  %459 = vst.msk [vmem:[%s6 + $0x70] sm:$0xff] %vm47, %v443
  %460 = vst.msk [vmem:[%s6 + $0x78] sm:$0xff] %vm47, %v444
  // Predicated region
  $region26: #{rcvae_forward.16} parent=0 // pred_check
    _
  $region27: #{rcvae_forward.16} parent=0 // pred_check_branch
    %462 = sbr.rel (0) target = $region29
  $region28: #{rcvae_forward.16} parent=0 // pred_region
    _
  $region29: #{rcvae_forward.16} parent=0 // pred_fallthru
    _
  // Predicated region
  $region30: #{rcvae_forward.16} parent=0 // pred_check
    _
  $region31: #{rcvae_forward.16} parent=0 // pred_check_branch
    %464 = sbr.rel (0) target = $region33
  $region32: #{rcvae_forward.16} parent=0 // pred_region
    _
  $region33: #{rcvae_forward.16} parent=0 // pred_fallthru
    _

// kernel: rcvae_forward.15
$region0: #{rcvae_forward.15}
  #allocation0 [shape = 'u32[]', space=smem, size = 0x4, offset = 0x4, fixed_abs, tag = 'smem constant byte address 0x4 - core index']
  #allocation1 [shape = 'u32[144,128]{1,0:T(1,128)}', space=vmem, size = 0x12000, scoped, tag = 'internal scratch']
  %s0 = inlined_call_operand.vmem [shape: f32[128,72], index: 0, kind: input, shape index: {}]
  %s1 = inlined_call_operand.vmem [shape: f32[72,8], index: 1, kind: input, shape index: {}]
  %s2 = inlined_call_operand.vmem [shape: f32[1,8], index: 2, kind: input, shape index: {}]
  %s3 = inlined_call_operand.vmem [shape: f32[1,8], index: 3, kind: input, shape index: {}]
  %s4 = inlined_call_operand.vmem [shape: f32[1,8], index: 4, kind: input, shape index: {}]
  %s5 = inlined_call_operand.vmem [shape: f32[128,8], index: 5, kind: output, shape index: {}]
  %s6 = sld [smem:[#allocation0]]
  $region30: #{rcvae_forward.15} parent=0
    _
  %s8 = ssub.s32 1, %s6
  %s9 = scalar_select 0, %s8, %s6
  // Predicated region
  $region2: #{rcvae_forward.15} parent=0 // pred_check
    _
  $region3: #{rcvae_forward.15} parent=0 // pred_check_branch
    %11 = sbr.rel (0) target = $region5
  $region4: #{rcvae_forward.15} parent=0 // pred_region
    _
  $region5: #{rcvae_forward.15} parent=0 // pred_fallthru
    _
  // Predicated region
  $region6: #{rcvae_forward.15} parent=0 // pred_check
    _
  $region7: #{rcvae_forward.15} parent=0 // pred_check_branch
    %13 = sbr.rel (0) target = $region9
  $region8: #{rcvae_forward.15} parent=0 // pred_region
    _
  $region9: #{rcvae_forward.15} parent=0 // pred_fallthru
    _
  // Predicated region
  $region10: #{rcvae_forward.15} parent=0 // pred_check
    _
  $region11: #{rcvae_forward.15} parent=0 // pred_check_branch
    %15 = sbr.rel (0) target = $region13
  $region12: #{rcvae_forward.15} parent=0 // pred_region
    _
  $region13: #{rcvae_forward.15} parent=0 // pred_fallthru
    _
  // Predicated region
  $region14: #{rcvae_forward.15} parent=0 // pred_check
    _
  $region15: #{rcvae_forward.15} parent=0 // pred_check_branch
    %17 = sbr.rel (0) target = $region17
  $region16: #{rcvae_forward.15} parent=0 // pred_region
    _
  $region17: #{rcvae_forward.15} parent=0 // pred_fallthru
    _
  // Predicated region
  $region18: #{rcvae_forward.15} parent=0 // pred_check
    _
  $region19: #{rcvae_forward.15} parent=0 // pred_check_branch
    %19 = sbr.rel (0) target = $region21
  $region20: #{rcvae_forward.15} parent=0 // pred_region
    _
  $region21: #{rcvae_forward.15} parent=0 // pred_fallthru
    _
  %v20 = vld [vmem:[%s0] sm:$0xff]
  %v21 = vld [vmem:[%s0 + $0x8] sm:$0xff]
  %v22 = vld [vmem:[%s0 + $0x10] sm:$0xff]
  %v23 = vld [vmem:[%s0 + $0x18] sm:$0xff]
  %v24 = vld [vmem:[%s0 + $0x20] sm:$0xff]
  %v25 = vld [vmem:[%s0 + $0x28] sm:$0xff]
  %v26 = vld [vmem:[%s0 + $0x30] sm:$0xff]
  %v27 = vld [vmem:[%s0 + $0x38] sm:$0xff]
  %v28 = vld [vmem:[%s0 + $0x40] sm:$0xff]
  %v29 = vld [vmem:[%s0 + $0x48] sm:$0xff]
  %v30 = vld [vmem:[%s0 + $0x50] sm:$0xff]
  %v31 = vld [vmem:[%s0 + $0x58] sm:$0xff]
  %v32 = vld [vmem:[%s0 + $0x60] sm:$0xff]
  %v33 = vld [vmem:[%s0 + $0x68] sm:$0xff]
  %v34 = vld [vmem:[%s0 + $0x70] sm:$0xff]
  %v35 = vld [vmem:[%s0 + $0x78] sm:$0xff]
  %vm36 = vcmp.gt.f32.partialorder %v20, 0.0
  %vm37 = vcmp.gt.f32.partialorder %v21, 0.0
  %vm38 = vcmp.gt.f32.partialorder %v22, 0.0
  %vm39 = vcmp.gt.f32.partialorder %v23, 0.0
  %vm40 = vcmp.gt.f32.partialorder %v24, 0.0
  %vm41 = vcmp.gt.f32.partialorder %v25, 0.0
  %vm42 = vcmp.gt.f32.partialorder %v26, 0.0
  %vm43 = vcmp.gt.f32.partialorder %v27, 0.0
  %vm44 = vcmp.gt.f32.partialorder %v28, 0.0
  %vm45 = vcmp.gt.f32.partialorder %v29, 0.0
  %vm46 = vcmp.gt.f32.partialorder %v30, 0.0
  %vm47 = vcmp.gt.f32.partialorder %v31, 0.0
  %vm48 = vcmp.gt.f32.partialorder %v32, 0.0
  %vm49 = vcmp.gt.f32.partialorder %v33, 0.0
  %vm50 = vcmp.gt.f32.partialorder %v34, 0.0
  %vm51 = vcmp.gt.f32.partialorder %v35, 0.0
  %v52 = vmul.f32 %v20, 0.01
  %v53 = vmul.f32 %v21, 0.01
  %v54 = vmul.f32 %v22, 0.01
  %v55 = vmul.f32 %v23, 0.01
  %v56 = vmul.f32 %v24, 0.01
  %v57 = vmul.f32 %v25, 0.01
  %v58 = vmul.f32 %v26, 0.01
  %v59 = vmul.f32 %v27, 0.01
  %v60 = vmul.f32 %v28, 0.01
  %v61 = vmul.f32 %v29, 0.01
  %v62 = vmul.f32 %v30, 0.01
  %v63 = vmul.f32 %v31, 0.01
  %v64 = vmul.f32 %v32, 0.01
  %v65 = vmul.f32 %v33, 0.01
  %v66 = vmul.f32 %v34, 0.01
  %v67 = vmul.f32 %v35, 0.01
  %v68 = vsel %vm36, %v20, %v52
  %v69 = vsel %vm37, %v21, %v53
  %v70 = vsel %vm38, %v22, %v54
  %v71 = vsel %vm39, %v23, %v55
  %v72 = vsel %vm40, %v24, %v56
  %v73 = vsel %vm41, %v25, %v57
  %v74 = vsel %vm42, %v26, %v58
  %v75 = vsel %vm43, %v27, %v59
  %v76 = vsel %vm44, %v28, %v60
  %v77 = vsel %vm45, %v29, %v61
  %v78 = vsel %vm46, %v30, %v62
  %v79 = vsel %vm47, %v31, %v63
  %v80 = vsel %vm48, %v32, %v64
  %v81 = vsel %vm49, %v33, %v65
  %v82 = vsel %vm50, %v34, %v66
  %v83 = vsel %vm51, %v35, %v67
  %v84 = vld [vmem:[%s1] sm:$0xff]
  %v85 = vld [vmem:[%s1 + $0x8] sm:$0xff]
  %v86 = vld [vmem:[%s1 + $0x10] sm:$0xff]
  %v87 = vld [vmem:[%s1 + $0x18] sm:$0xff]
  %v88 = vld [vmem:[%s1 + $0x20] sm:$0xff]
  %v89 = vld [vmem:[%s1 + $0x28] sm:$0xff]
  %v90 = vld [vmem:[%s1 + $0x30] sm:$0xff]
  %v91 = vld [vmem:[%s1 + $0x38] sm:$0xff]
  %v92 = vld [vmem:[%s1 + $0x40] sm:$0xff]
  %v93 = vld [vmem:[%s2] sm:$0x1]
  %v95 = vlaneseq
  %v96 = vshrl.u32 %v95, 7
  %v97 = vsub.s32 0, %v96
  %v98 = vrot.slane %v93, %v97
  %vm100 = vcmask 588800
  %v102 = vsel %vm100, %v68, 0
  %v105 = vsel %vm100, %v69, 0
  %v108 = vsel %vm100, %v70, 0
  %v111 = vsel %vm100, %v71, 0
  %v114 = vsel %vm100, %v72, 0
  %v117 = vsel %vm100, %v73, 0
  %v120 = vsel %vm100, %v74, 0
  %v123 = vsel %vm100, %v75, 0
  %v126 = vsel %vm100, %v76, 0
  %v129 = vsel %vm100, %v77, 0
  %v132 = vsel %vm100, %v78, 0
  %v135 = vsel %vm100, %v79, 0
  %v138 = vsel %vm100, %v80, 0
  %v141 = vsel %vm100, %v81, 0
  %v144 = vsel %vm100, %v82, 0
  %v147 = vsel %vm100, %v83, 0
  %149 = vmatprep.subr.mxu0 0.0
  %150 = vmatpush1.msra.mxu0 %v84
  %151 = vmatprep.subr.mxu0 0.0
  %152 = vmatpush1.msra.mxu0 %v85
  %153 = vmatprep.subr.mxu0 0.0
  %154 = vmatpush1.msra.mxu0 %v86
  %155 = vmatprep.subr.mxu0 0.0
  %156 = vmatpush1.msra.mxu0 %v87
  %157 = vmatprep.subr.mxu0 0.0
  %158 = vmatpush1.msra.mxu0 %v88
  %159 = vmatprep.subr.mxu0 0.0
  %160 = vmatpush1.msra.mxu0 %v89
  %161 = vmatprep.subr.mxu0 0.0
  %162 = vmatpush1.msra.mxu0 %v90
  %163 = vmatprep.subr.mxu0 0.0
  %164 = vmatpush1.msra.mxu0 %v91
  %165 = vmatprep.subr.mxu0 0.0
  %166 = vmatpush1.msra.mxu0 %v92
  %167 = vmatprep.subr.mxu0 0.0
  %168 = vmatpush1.msra.mxu0 0.0
  %169 = vmatprep.subr.mxu0 0.0
  %170 = vmatpush1.msra.mxu0 0.0
  %171 = vmatprep.subr.mxu0 0.0
  %172 = vmatpush1.msra.mxu0 0.0
  %173 = vmatprep.subr.mxu0 0.0
  %174 = vmatpush1.msra.mxu0 0.0
  %175 = vmatprep.subr.mxu0 0.0
  %176 = vmatpush1.msra.mxu0 0.0
  %177 = vmatprep.subr.mxu0 0.0
  %178 = vmatpush1.msra.mxu0 0.0
  %179 = vmatprep.subr.mxu0 0.0
  %180 = vmatpush1.msra.mxu0 0.0
  %181 = vmatprep.subr.mxu0 0.0
  %182 = vmatpush1.msra.mxu0 0.0
  %183 = vmatprep.subr.mxu0 0.0
  %184 = vmatpush1.msra.mxu0 0.0
  %185 = vmatprep.subr.mxu0 0.0
  %186 = vmatpush1.msra.mxu0 0.0
  %187 = vmatprep.subr.mxu0 0.0
  %188 = vmatpush1.msra.mxu0 0.0
  %189 = vmatprep.subr.mxu0 0.0
  %190 = vmatpush1.msra.mxu0 0.0
  %191 = vmatprep.subr.mxu0 0.0
  %192 = vmatpush1.msra.mxu0 0.0
  %193 = vmatprep.subr.mxu0 0.0
  %194 = vmatpush1.msra.mxu0 0.0
  %195 = vmatprep.subr.mxu0 0.0
  %196 = vmatpush1.msra.mxu0 0.0
  %197 = vmatprep.subr.mxu0 0.0
  %198 = vmatpush1.msra.mxu0 0.0
  %199 = vmatprep.subr.mxu0 0.0
  %200 = vmatpush1.msra.mxu0 0.0
  %201 = vmatprep.subr.mxu0 0.0
  %202 = vmatpush1.msra.mxu0 0.0
  %203 = vmatprep.subr.mxu0 0.0
  %204 = vmatpush1.msra.mxu0 0.0
  %205 = vmatprep.subr.mxu0 0.0
  %206 = vmatpush1.msra.mxu0 0.0
  %207 = vmatprep.subr.mxu0 0.0
  %208 = vmatpush1.msra.mxu0 0.0
  %209 = vmatprep.subr.mxu0 0.0
  %210 = vmatpush1.msra.mxu0 0.0
  %211 = vmatprep.subr.mxu0 0.0
  %212 = vmatpush1.msra.mxu0 0.0
  %213 = vmatprep.mubr.f32.mxu0 0.0
  %214 = vmatmul.mubr.f32.gmra.mrb[0].mxu0 %v102
  %v215 = vpop.f32.mrb[0].mxu0
  %v216 = vadd.f32 %v98, %v215
  %v217 = vpop.f32.mrb[0].mxu0
  %218 = vmatprep.mubr.f32.mxu0 0.0
  %219 = vmatmul.mubr.f32.gmra.mrb[0].mxu0 %v105
  %v220 = vpop.f32.mrb[0].mxu0
  %v221 = vadd.f32 %v98, %v220
  %v222 = vpop.f32.mrb[0].mxu0
  %223 = vmatprep.mubr.f32.mxu0 0.0
  %224 = vmatmul.mubr.f32.gmra.mrb[0].mxu0 %v108
  %v225 = vpop.f32.mrb[0].mxu0
  %v226 = vadd.f32 %v98, %v225
  %v227 = vpop.f32.mrb[0].mxu0
  %228 = vmatprep.mubr.f32.mxu0 0.0
  %229 = vmatmul.mubr.f32.gmra.mrb[0].mxu0 %v111
  %v230 = vpop.f32.mrb[0].mxu0
  %v231 = vadd.f32 %v98, %v230
  %v232 = vpop.f32.mrb[0].mxu0
  %233 = vmatprep.mubr.f32.mxu0 0.0
  %234 = vmatmul.mubr.f32.gmra.mrb[0].mxu0 %v114
  %v235 = vpop.f32.mrb[0].mxu0
  %v236 = vadd.f32 %v98, %v235
  %v237 = vpop.f32.mrb[0].mxu0
  %238 = vmatprep.mubr.f32.mxu0 0.0
  %239 = vmatmul.mubr.f32.gmra.mrb[0].mxu0 %v117
  %v240 = vpop.f32.mrb[0].mxu0
  %v241 = vadd.f32 %v98, %v240
  %v242 = vpop.f32.mrb[0].mxu0
  %243 = vmatprep.mubr.f32.mxu0 0.0
  %244 = vmatmul.mubr.f32.gmra.mrb[0].mxu0 %v120
  %v245 = vpop.f32.mrb[0].mxu0
  %v246 = vadd.f32 %v98, %v245
  %v247 = vpop.f32.mrb[0].mxu0
  %248 = vmatprep.mubr.f32.mxu0 0.0
  %249 = vmatmul.mubr.f32.gmra.mrb[0].mxu0 %v123
  %v250 = vpop.f32.mrb[0].mxu0
  %v251 = vadd.f32 %v98, %v250
  %v252 = vpop.f32.mrb[0].mxu0
  %253 = vmatprep.mubr.f32.mxu0 0.0
  %254 = vmatmul.mubr.f32.gmra.mrb[0].mxu0 %v126
  %v255 = vpop.f32.mrb[0].mxu0
  %v256 = vadd.f32 %v98, %v255
  %v257 = vpop.f32.mrb[0].mxu0
  %258 = vmatprep.mubr.f32.mxu0 0.0
  %259 = vmatmul.mubr.f32.gmra.mrb[0].mxu0 %v129
  %v260 = vpop.f32.mrb[0].mxu0
  %v261 = vadd.f32 %v98, %v260
  %v262 = vpop.f32.mrb[0].mxu0
  %263 = vmatprep.mubr.f32.mxu0 0.0
  %264 = vmatmul.mubr.f32.gmra.mrb[0].mxu0 %v132
  %v265 = vpop.f32.mrb[0].mxu0
  %v266 = vadd.f32 %v98, %v265
  %v267 = vpop.f32.mrb[0].mxu0
  %268 = vmatprep.mubr.f32.mxu0 0.0
  %269 = vmatmul.mubr.f32.gmra.mrb[0].mxu0 %v135
  %v270 = vpop.f32.mrb[0].mxu0
  %v271 = vadd.f32 %v98, %v270
  %v272 = vpop.f32.mrb[0].mxu0
  %273 = vmatprep.mubr.f32.mxu0 0.0
  %274 = vmatmul.mubr.f32.gmra.mrb[0].mxu0 %v138
  %v275 = vpop.f32.mrb[0].mxu0
  %v276 = vadd.f32 %v98, %v275
  %v277 = vpop.f32.mrb[0].mxu0
  %278 = vmatprep.mubr.f32.mxu0 0.0
  %279 = vmatmul.mubr.f32.gmra.mrb[0].mxu0 %v141
  %v280 = vpop.f32.mrb[0].mxu0
  %v281 = vadd.f32 %v98, %v280
  %v282 = vpop.f32.mrb[0].mxu0
  %283 = vmatprep.mubr.f32.mxu0 0.0
  %284 = vmatmul.mubr.f32.gmra.mrb[0].mxu0 %v144
  %v285 = vpop.f32.mrb[0].mxu0
  %v286 = vadd.f32 %v98, %v285
  %v287 = vpop.f32.mrb[0].mxu0
  %288 = vmatprep.mubr.f32.mxu0 0.0
  %289 = vmatmul.mubr.f32.gmra.mrb[0].mxu0 %v147
  %v290 = vpop.f32.mrb[0].mxu0
  %v291 = vadd.f32 %v98, %v290
  %v292 = vpop.f32.mrb[0].mxu0
  %293 = vdwg.mxu0
  %vm294 = vcmask 64512
  %v295 = vsel %vm294, %v216, 0.0
  %v296 = vsel %vm294, %v221, 0.0
  %v297 = vadd.f32 %v295, %v296
  %v298 = vsel %vm294, %v226, 0.0
  %v299 = vadd.f32 %v297, %v298
  %v300 = vsel %vm294, %v231, 0.0
  %v301 = vadd.f32 %v299, %v300
  %v302 = vsel %vm294, %v236, 0.0
  %v303 = vadd.f32 %v301, %v302
  %v304 = vsel %vm294, %v241, 0.0
  %v305 = vadd.f32 %v303, %v304
  %v306 = vsel %vm294, %v246, 0.0
  %v307 = vadd.f32 %v305, %v306
  %v308 = vsel %vm294, %v251, 0.0
  %v309 = vadd.f32 %v307, %v308
  %v310 = vsel %vm294, %v256, 0.0
  %v311 = vadd.f32 %v309, %v310
  %v312 = vsel %vm294, %v261, 0.0
  %v313 = vadd.f32 %v311, %v312
  %v314 = vsel %vm294, %v266, 0.0
  %v315 = vadd.f32 %v313, %v314
  %v316 = vsel %vm294, %v271, 0.0
  %v317 = vadd.f32 %v315, %v316
  %v318 = vsel %vm294, %v276, 0.0
  %v319 = vadd.f32 %v317, %v318
  %v320 = vsel %vm294, %v281, 0.0
  %v321 = vadd.f32 %v319, %v320
  %v322 = vsel %vm294, %v286, 0.0
  %v323 = vadd.f32 %v321, %v322
  %v324 = vsel %vm294, %v291, 0.0
  %v325 = vadd.f32 %v323, %v324
  %v326 = vrot.slane %v325, 4
  %v327 = vadd.f32 %v325, %v326
  %v328 = vrot.slane %v327, 2
  %v329 = vadd.f32 %v327, %v328
  %v330 = vrot.slane %v329, 1
  %v331 = vadd.f32 %v329, %v330
  %v332 = vmul.f32 %v331, 0.0078125
  %v333 = vsub.f32 %v216, %v332
  %v334 = vsub.f32 %v221, %v332
  %v335 = vsub.f32 %v226, %v332
  %v336 = vsub.f32 %v231, %v332
  %v337 = vsub.f32 %v236, %v332
  %v338 = vsub.f32 %v241, %v332
  %v339 = vsub.f32 %v246, %v332
  %v340 = vsub.f32 %v251, %v332
  %v341 = vsub.f32 %v256, %v332
  %v342 = vsub.f32 %v261, %v332
  %v343 = vsub.f32 %v266, %v332
  %v344 = vsub.f32 %v271, %v332
  %v345 = vsub.f32 %v276, %v332
  %v346 = vsub.f32 %v281, %v332
  %v347 = vsub.f32 %v286, %v332
  %v348 = vsub.f32 %v291, %v332
  %v349 = vmul.f32 %v333, %v333
  %v350 = vmul.f32 %v334, %v334
  %v351 = vmul.f32 %v335, %v335
  %v352 = vmul.f32 %v336, %v336
  %v353 = vmul.f32 %v337, %v337
  %v354 = vmul.f32 %v338, %v338
  %v355 = vmul.f32 %v339, %v339
  %v356 = vmul.f32 %v340, %v340
  %v357 = vmul.f32 %v341, %v341
  %v358 = vmul.f32 %v342, %v342
  %v359 = vmul.f32 %v343, %v343
  %v360 = vmul.f32 %v344, %v344
  %v361 = vmul.f32 %v345, %v345
  %v362 = vmul.f32 %v346, %v346
  %v363 = vmul.f32 %v347, %v347
  %v364 = vmul.f32 %v348, %v348
  %v365 = vsel %vm294, %v349, 0.0
  %v366 = vsel %vm294, %v350, 0.0
  %v367 = vadd.f32 %v365, %v366
  %v368 = vsel %vm294, %v351, 0.0
  %v369 = vadd.f32 %v367, %v368
  %v370 = vsel %vm294, %v352, 0.0
  %v371 = vadd.f32 %v369, %v370
  %v372 = vsel %vm294, %v353, 0.0
  %v373 = vadd.f32 %v371, %v372
  %v374 = vsel %vm294, %v354, 0.0
  %v375 = vadd.f32 %v373, %v374
  %v376 = vsel %vm294, %v355, 0.0
  %v377 = vadd.f32 %v375, %v376
  %v378 = vsel %vm294, %v356, 0.0
  %v379 = vadd.f32 %v377, %v378
  %v380 = vsel %vm294, %v357, 0.0
  %v381 = vadd.f32 %v379, %v380
  %v382 = vsel %vm294, %v358, 0.0
  %v383 = vadd.f32 %v381, %v382
  %v384 = vsel %vm294, %v359, 0.0
  %v385 = vadd.f32 %v383, %v384
  %v386 = vsel %vm294, %v360, 0.0
  %v387 = vadd.f32 %v385, %v386
  %v388 = vsel %vm294, %v361, 0.0
  %v389 = vadd.f32 %v387, %v388
  %v390 = vsel %vm294, %v362, 0.0
  %v391 = vadd.f32 %v389, %v390
  %v392 = vsel %vm294, %v363, 0.0
  %v393 = vadd.f32 %v391, %v392
  %v394 = vsel %vm294, %v364, 0.0
  %v395 = vadd.f32 %v393, %v394
  %v396 = vrot.slane %v395, 4
  %v397 = vadd.f32 %v395, %v396
  %v398 = vrot.slane %v397, 2
  %v399 = vadd.f32 %v397, %v398
  %v400 = vrot.slane %v399, 1
  %v401 = vadd.f32 %v399, %v400
  %v402 = vmul.f32 %v401, 0.0078125
  %v403 = vadd.f32 %v402, 1e-05
  %v404 = vrsqrt.pop %v403
  %v405 = vmul.f32 %v333, %v404
  %v406 = vmul.f32 %v334, %v404
  %v407 = vmul.f32 %v335, %v404
  %v408 = vmul.f32 %v336, %v404
  %v409 = vmul.f32 %v337, %v404
  %v410 = vmul.f32 %v338, %v404
  %v411 = vmul.f32 %v339, %v404
  %v412 = vmul.f32 %v340, %v404
  %v413 = vmul.f32 %v341, %v404
  %v414 = vmul.f32 %v342, %v404
  %v415 = vmul.f32 %v343, %v404
  %v416 = vmul.f32 %v344, %v404
  %v417 = vmul.f32 %v345, %v404
  %v418 = vmul.f32 %v346, %v404
  %v419 = vmul.f32 %v347, %v404
  %v420 = vmul.f32 %v348, %v404
  %v421 = vld [vmem:[%s3] sm:$0x1]
  %v423 = vlaneseq
  %v424 = vshrl.u32 %v423, 7
  %v425 = vsub.s32 0, %v424
  %v426 = vrot.slane %v421, %v425
  %v428 = vmul.f32 %v405, %v426
  %v429 = vmul.f32 %v406, %v426
  %v430 = vmul.f32 %v407, %v426
  %v431 = vmul.f32 %v408, %v426
  %v432 = vmul.f32 %v409, %v426
  %v433 = vmul.f32 %v410, %v426
  %v434 = vmul.f32 %v411, %v426
  %v435 = vmul.f32 %v412, %v426
  %v436 = vmul.f32 %v413, %v426
  %v437 = vmul.f32 %v414, %v426
  %v438 = vmul.f32 %v415, %v426
  %v439 = vmul.f32 %v416, %v426
  %v440 = vmul.f32 %v417, %v426
  %v441 = vmul.f32 %v418, %v426
  %v442 = vmul.f32 %v419, %v426
  %v443 = vmul.f32 %v420, %v426
  %v444 = vld [vmem:[%s4] sm:$0x1]
  %v446 = vlaneseq
  %v447 = vshrl.u32 %v446, 7
  %v448 = vsub.s32 0, %v447
  %v449 = vrot.slane %v444, %v448
  %v451 = vadd.f32 %v428, %v449
  %v452 = vadd.f32 %v429, %v449
  %v453 = vadd.f32 %v430, %v449
  %v454 = vadd.f32 %v431, %v449
  %v455 = vadd.f32 %v432, %v449
  %v456 = vadd.f32 %v433, %v449
  %v457 = vadd.f32 %v434, %v449
  %v458 = vadd.f32 %v435, %v449
  %v459 = vadd.f32 %v436, %v449
  %v460 = vadd.f32 %v437, %v449
  %v461 = vadd.f32 %v438, %v449
  %v462 = vadd.f32 %v439, %v449
  %v463 = vadd.f32 %v440, %v449
  %v464 = vadd.f32 %v441, %v449
  %v465 = vadd.f32 %v442, %v449
  %v466 = vadd.f32 %v443, %v449
  %vm467 = vcmp.gt.f32.partialorder %v451, 0.0
  %vm468 = vcmp.gt.f32.partialorder %v452, 0.0
  %vm469 = vcmp.gt.f32.partialorder %v453, 0.0
  %vm470 = vcmp.gt.f32.partialorder %v454, 0.0
  %vm471 = vcmp.gt.f32.partialorder %v455, 0.0
  %vm472 = vcmp.gt.f32.partialorder %v456, 0.0
  %vm473 = vcmp.gt.f32.partialorder %v457, 0.0
  %vm474 = vcmp.gt.f32.partialorder %v458, 0.0
  %vm475 = vcmp.gt.f32.partialorder %v459, 0.0
  %vm476 = vcmp.gt.f32.partialorder %v460, 0.0
  %vm477 = vcmp.gt.f32.partialorder %v461, 0.0
  %vm478 = vcmp.gt.f32.partialorder %v462, 0.0
  %vm479 = vcmp.gt.f32.partialorder %v463, 0.0
  %vm480 = vcmp.gt.f32.partialorder %v464, 0.0
  %vm481 = vcmp.gt.f32.partialorder %v465, 0.0
  %vm482 = vcmp.gt.f32.partialorder %v466, 0.0
  %v483 = vmul.f32 %v451, 0.01
  %v484 = vmul.f32 %v452, 0.01
  %v485 = vmul.f32 %v453, 0.01
  %v486 = vmul.f32 %v454, 0.01
  %v487 = vmul.f32 %v455, 0.01
  %v488 = vmul.f32 %v456, 0.01
  %v489 = vmul.f32 %v457, 0.01
  %v490 = vmul.f32 %v458, 0.01
  %v491 = vmul.f32 %v459, 0.01
  %v492 = vmul.f32 %v460, 0.01
  %v493 = vmul.f32 %v461, 0.01
  %v494 = vmul.f32 %v462, 0.01
  %v495 = vmul.f32 %v463, 0.01
  %v496 = vmul.f32 %v464, 0.01
  %v497 = vmul.f32 %v465, 0.01
  %v498 = vmul.f32 %v466, 0.01
  %v499 = vsel %vm467, %v451, %v483
  %v500 = vsel %vm468, %v452, %v484
  %v501 = vsel %vm469, %v453, %v485
  %v502 = vsel %vm470, %v454, %v486
  %v503 = vsel %vm471, %v455, %v487
  %v504 = vsel %vm472, %v456, %v488
  %v505 = vsel %vm473, %v457, %v489
  %v506 = vsel %vm474, %v458, %v490
  %v507 = vsel %vm475, %v459, %v491
  %v508 = vsel %vm476, %v460, %v492
  %v509 = vsel %vm477, %v461, %v493
  %v510 = vsel %vm478, %v462, %v494
  %v511 = vsel %vm479, %v463, %v495
  %v512 = vsel %vm480, %v464, %v496
  %v513 = vsel %vm481, %v465, %v497
  %v514 = vsel %vm482, %v466, %v498
  %515 = vst.msk [vmem:[%s5] sm:$0xff] %vm294, %v499
  %516 = vst.msk [vmem:[%s5 + $0x8] sm:$0xff] %vm294, %v500
  %517 = vst.msk [vmem:[%s5 + $0x10] sm:$0xff] %vm294, %v501
  %518 = vst.msk [vmem:[%s5 + $0x18] sm:$0xff] %vm294, %v502
  %519 = vst.msk [vmem:[%s5 + $0x20] sm:$0xff] %vm294, %v503
  %520 = vst.msk [vmem:[%s5 + $0x28] sm:$0xff] %vm294, %v504
  %521 = vst.msk [vmem:[%s5 + $0x30] sm:$0xff] %vm294, %v505
  %522 = vst.msk [vmem:[%s5 + $0x38] sm:$0xff] %vm294, %v506
  %523 = vst.msk [vmem:[%s5 + $0x40] sm:$0xff] %vm294, %v507
  %524 = vst.msk [vmem:[%s5 + $0x48] sm:$0xff] %vm294, %v508
  %525 = vst.msk [vmem:[%s5 + $0x50] sm:$0xff] %vm294, %v509
  %526 = vst.msk [vmem:[%s5 + $0x58] sm:$0xff] %vm294, %v510
  %527 = vst.msk [vmem:[%s5 + $0x60] sm:$0xff] %vm294, %v511
  %528 = vst.msk [vmem:[%s5 + $0x68] sm:$0xff] %vm294, %v512
  %529 = vst.msk [vmem:[%s5 + $0x70] sm:$0xff] %vm294, %v513
  %530 = vst.msk [vmem:[%s5 + $0x78] sm:$0xff] %vm294, %v514
  // Predicated region
  $region22: #{rcvae_forward.15} parent=0 // pred_check
    _
  $region23: #{rcvae_forward.15} parent=0 // pred_check_branch
    %532 = sbr.rel (0) target = $region25
  $region24: #{rcvae_forward.15} parent=0 // pred_region
    _
  $region25: #{rcvae_forward.15} parent=0 // pred_fallthru
    _
  // Predicated region
  $region26: #{rcvae_forward.15} parent=0 // pred_check
    _
  $region27: #{rcvae_forward.15} parent=0 // pred_check_branch
    %534 = sbr.rel (0) target = $region29
  $region28: #{rcvae_forward.15} parent=0 // pred_region
    _
  $region29: #{rcvae_forward.15} parent=0 // pred_fallthru
    _

// kernel: rcvae_forward.18
$region0: #{rcvae_forward.18}
  #allocation0 [shape = 'u32[]', space=smem, size = 0x4, offset = 0x4, fixed_abs, tag = 'smem constant byte address 0x4 - core index']
  #allocation1 [shape = 'u32[144,128]{1,0:T(1,128)}', space=vmem, size = 0x12000, scoped, tag = 'internal scratch']
  %s0 = inlined_call_operand.vmem [shape: f32[128,8], index: 0, kind: input, shape index: {}]
  %s1 = inlined_call_operand.vmem [shape: f32[8,8], index: 1, kind: input, shape index: {}]
  %s2 = inlined_call_operand.vmem [shape: f32[1,8], index: 2, kind: input, shape index: {}]
  %s3 = inlined_call_operand.vmem [shape: f32[128,8], index: 3, kind: input, shape index: {}]
  %s4 = inlined_call_operand.vmem [shape: f32[128,8], index: 4, kind: output, shape index: {}]
  %s5 = sld [smem:[#allocation0]]
  $region26: #{rcvae_forward.18} parent=0
    _
  %s7 = ssub.s32 1, %s5
  %s8 = scalar_select 0, %s7, %s5
  // Predicated region
  $region2: #{rcvae_forward.18} parent=0 // pred_check
    _
  $region3: #{rcvae_forward.18} parent=0 // pred_check_branch
    %10 = sbr.rel (0) target = $region5
  $region4: #{rcvae_forward.18} parent=0 // pred_region
    _
  $region5: #{rcvae_forward.18} parent=0 // pred_fallthru
    _
  // Predicated region
  $region6: #{rcvae_forward.18} parent=0 // pred_check
    _
  $region7: #{rcvae_forward.18} parent=0 // pred_check_branch
    %12 = sbr.rel (0) target = $region9
  $region8: #{rcvae_forward.18} parent=0 // pred_region
    _
  $region9: #{rcvae_forward.18} parent=0 // pred_fallthru
    _
  // Predicated region
  $region10: #{rcvae_forward.18} parent=0 // pred_check
    _
  $region11: #{rcvae_forward.18} parent=0 // pred_check_branch
    %14 = sbr.rel (0) target = $region13
  $region12: #{rcvae_forward.18} parent=0 // pred_region
    _
  $region13: #{rcvae_forward.18} parent=0 // pred_fallthru
    _
  // Predicated region
  $region14: #{rcvae_forward.18} parent=0 // pred_check
    _
  $region15: #{rcvae_forward.18} parent=0 // pred_check_branch
    %16 = sbr.rel (0) target = $region17
  $region16: #{rcvae_forward.18} parent=0 // pred_region
    _
  $region17: #{rcvae_forward.18} parent=0 // pred_fallthru
    _
  %v17 = vld [vmem:[%s0] sm:$0xff]
  %v18 = vld [vmem:[%s0 + $0x8] sm:$0xff]
  %v19 = vld [vmem:[%s0 + $0x10] sm:$0xff]
  %v20 = vld [vmem:[%s0 + $0x18] sm:$0xff]
  %v21 = vld [vmem:[%s0 + $0x20] sm:$0xff]
  %v22 = vld [vmem:[%s0 + $0x28] sm:$0xff]
  %v23 = vld [vmem:[%s0 + $0x30] sm:$0xff]
  %v24 = vld [vmem:[%s0 + $0x38] sm:$0xff]
  %v25 = vld [vmem:[%s0 + $0x40] sm:$0xff]
  %v26 = vld [vmem:[%s0 + $0x48] sm:$0xff]
  %v27 = vld [vmem:[%s0 + $0x50] sm:$0xff]
  %v28 = vld [vmem:[%s0 + $0x58] sm:$0xff]
  %v29 = vld [vmem:[%s0 + $0x60] sm:$0xff]
  %v30 = vld [vmem:[%s0 + $0x68] sm:$0xff]
  %v31 = vld [vmem:[%s0 + $0x70] sm:$0xff]
  %v32 = vld [vmem:[%s0 + $0x78] sm:$0xff]
  %v33 = vld [vmem:[%s1] sm:$0xff]
  %v34 = vld [vmem:[%s2] sm:$0x1]
  %v36 = vlaneseq
  %v37 = vshrl.u32 %v36, 7
  %v38 = vsub.s32 0, %v37
  %v39 = vrot.slane %v34, %v38
  %vm41 = vcmask 64512
  %v43 = vsel %vm41, %v17, 0
  %v46 = vsel %vm41, %v18, 0
  %v49 = vsel %vm41, %v19, 0
  %v52 = vsel %vm41, %v20, 0
  %v55 = vsel %vm41, %v21, 0
  %v58 = vsel %vm41, %v22, 0
  %v61 = vsel %vm41, %v23, 0
  %v64 = vsel %vm41, %v24, 0
  %v67 = vsel %vm41, %v25, 0
  %v70 = vsel %vm41, %v26, 0
  %v73 = vsel %vm41, %v27, 0
  %v76 = vsel %vm41, %v28, 0
  %v79 = vsel %vm41, %v29, 0
  %v82 = vsel %vm41, %v30, 0
  %v85 = vsel %vm41, %v31, 0
  %v88 = vsel %vm41, %v32, 0
  %90 = vmatprep.subr.mxu0 0.0
  %91 = vmatpush1.msra.mxu0 %v33
  %92 = vmatprep.subr.mxu0 0.0
  %93 = vmatpush1.msra.mxu0 0.0
  %94 = vmatprep.subr.mxu0 0.0
  %95 = vmatpush1.msra.mxu0 0.0
  %96 = vmatprep.subr.mxu0 0.0
  %97 = vmatpush1.msra.mxu0 0.0
  %98 = vmatprep.subr.mxu0 0.0
  %99 = vmatpush1.msra.mxu0 0.0
  %100 = vmatprep.subr.mxu0 0.0
  %101 = vmatpush1.msra.mxu0 0.0
  %102 = vmatprep.subr.mxu0 0.0
  %103 = vmatpush1.msra.mxu0 0.0
  %104 = vmatprep.subr.mxu0 0.0
  %105 = vmatpush1.msra.mxu0 0.0
  %106 = vmatprep.subr.mxu0 0.0
  %107 = vmatpush1.msra.mxu0 0.0
  %108 = vmatprep.subr.mxu0 0.0
  %109 = vmatpush1.msra.mxu0 0.0
  %110 = vmatprep.subr.mxu0 0.0
  %111 = vmatpush1.msra.mxu0 0.0
  %112 = vmatprep.subr.mxu0 0.0
  %113 = vmatpush1.msra.mxu0 0.0
  %114 = vmatprep.subr.mxu0 0.0
  %115 = vmatpush1.msra.mxu0 0.0
  %116 = vmatprep.subr.mxu0 0.0
  %117 = vmatpush1.msra.mxu0 0.0
  %118 = vmatprep.subr.mxu0 0.0
  %119 = vmatpush1.msra.mxu0 0.0
  %120 = vmatprep.subr.mxu0 0.0
  %121 = vmatpush1.msra.mxu0 0.0
  %122 = vmatprep.subr.mxu0 0.0
  %123 = vmatpush1.msra.mxu0 0.0
  %124 = vmatprep.subr.mxu0 0.0
  %125 = vmatpush1.msra.mxu0 0.0
  %126 = vmatprep.subr.mxu0 0.0
  %127 = vmatpush1.msra.mxu0 0.0
  %128 = vmatprep.subr.mxu0 0.0
  %129 = vmatpush1.msra.mxu0 0.0
  %130 = vmatprep.subr.mxu0 0.0
  %131 = vmatpush1.msra.mxu0 0.0
  %132 = vmatprep.subr.mxu0 0.0
  %133 = vmatpush1.msra.mxu0 0.0
  %134 = vmatprep.subr.mxu0 0.0
  %135 = vmatpush1.msra.mxu0 0.0
  %136 = vmatprep.subr.mxu0 0.0
  %137 = vmatpush1.msra.mxu0 0.0
  %138 = vmatprep.subr.mxu0 0.0
  %139 = vmatpush1.msra.mxu0 0.0
  %140 = vmatprep.subr.mxu0 0.0
  %141 = vmatpush1.msra.mxu0 0.0
  %142 = vmatprep.subr.mxu0 0.0
  %143 = vmatpush1.msra.mxu0 0.0
  %144 = vmatprep.subr.mxu0 0.0
  %145 = vmatpush1.msra.mxu0 0.0
  %146 = vmatprep.subr.mxu0 0.0
  %147 = vmatpush1.msra.mxu0 0.0
  %148 = vmatprep.subr.mxu0 0.0
  %149 = vmatpush1.msra.mxu0 0.0
  %150 = vmatprep.subr.mxu0 0.0
  %151 = vmatpush1.msra.mxu0 0.0
  %152 = vmatprep.subr.mxu0 0.0
  %153 = vmatpush1.msra.mxu0 0.0
  %154 = vmatprep.mubr.f32.mxu0 0.0
  %155 = vmatmul.mubr.f32.gmra.mrb[0].mxu0 %v43
  %v156 = vpop.f32.mrb[0].mxu0
  %v157 = vadd.f32 %v39, %v156
  %v158 = vpop.f32.mrb[0].mxu0
  %159 = vmatprep.mubr.f32.mxu0 0.0
  %160 = vmatmul.mubr.f32.gmra.mrb[0].mxu0 %v46
  %v161 = vpop.f32.mrb[0].mxu0
  %v162 = vadd.f32 %v39, %v161
  %v163 = vpop.f32.mrb[0].mxu0
  %164 = vmatprep.mubr.f32.mxu0 0.0
  %165 = vmatmul.mubr.f32.gmra.mrb[0].mxu0 %v49
  %v166 = vpop.f32.mrb[0].mxu0
  %v167 = vadd.f32 %v39, %v166
  %v168 = vpop.f32.mrb[0].mxu0
  %169 = vmatprep.mubr.f32.mxu0 0.0
  %170 = vmatmul.mubr.f32.gmra.mrb[0].mxu0 %v52
  %v171 = vpop.f32.mrb[0].mxu0
  %v172 = vadd.f32 %v39, %v171
  %v173 = vpop.f32.mrb[0].mxu0
  %174 = vmatprep.mubr.f32.mxu0 0.0
  %175 = vmatmul.mubr.f32.gmra.mrb[0].mxu0 %v55
  %v176 = vpop.f32.mrb[0].mxu0
  %v177 = vadd.f32 %v39, %v176
  %v178 = vpop.f32.mrb[0].mxu0
  %179 = vmatprep.mubr.f32.mxu0 0.0
  %180 = vmatmul.mubr.f32.gmra.mrb[0].mxu0 %v58
  %v181 = vpop.f32.mrb[0].mxu0
  %v182 = vadd.f32 %v39, %v181
  %v183 = vpop.f32.mrb[0].mxu0
  %184 = vmatprep.mubr.f32.mxu0 0.0
  %185 = vmatmul.mubr.f32.gmra.mrb[0].mxu0 %v61
  %v186 = vpop.f32.mrb[0].mxu0
  %v187 = vadd.f32 %v39, %v186
  %v188 = vpop.f32.mrb[0].mxu0
  %189 = vmatprep.mubr.f32.mxu0 0.0
  %190 = vmatmul.mubr.f32.gmra.mrb[0].mxu0 %v64
  %v191 = vpop.f32.mrb[0].mxu0
  %v192 = vadd.f32 %v39, %v191
  %v193 = vpop.f32.mrb[0].mxu0
  %194 = vmatprep.mubr.f32.mxu0 0.0
  %195 = vmatmul.mubr.f32.gmra.mrb[0].mxu0 %v67
  %v196 = vpop.f32.mrb[0].mxu0
  %v197 = vadd.f32 %v39, %v196
  %v198 = vpop.f32.mrb[0].mxu0
  %199 = vmatprep.mubr.f32.mxu0 0.0
  %200 = vmatmul.mubr.f32.gmra.mrb[0].mxu0 %v70
  %v201 = vpop.f32.mrb[0].mxu0
  %v202 = vadd.f32 %v39, %v201
  %v203 = vpop.f32.mrb[0].mxu0
  %204 = vmatprep.mubr.f32.mxu0 0.0
  %205 = vmatmul.mubr.f32.gmra.mrb[0].mxu0 %v73
  %v206 = vpop.f32.mrb[0].mxu0
  %v207 = vadd.f32 %v39, %v206
  %v208 = vpop.f32.mrb[0].mxu0
  %209 = vmatprep.mubr.f32.mxu0 0.0
  %210 = vmatmul.mubr.f32.gmra.mrb[0].mxu0 %v76
  %v211 = vpop.f32.mrb[0].mxu0
  %v212 = vadd.f32 %v39, %v211
  %v213 = vpop.f32.mrb[0].mxu0
  %214 = vmatprep.mubr.f32.mxu0 0.0
  %215 = vmatmul.mubr.f32.gmra.mrb[0].mxu0 %v79
  %v216 = vpop.f32.mrb[0].mxu0
  %v217 = vadd.f32 %v39, %v216
  %v218 = vpop.f32.mrb[0].mxu0
  %219 = vmatprep.mubr.f32.mxu0 0.0
  %220 = vmatmul.mubr.f32.gmra.mrb[0].mxu0 %v82
  %v221 = vpop.f32.mrb[0].mxu0
  %v222 = vadd.f32 %v39, %v221
  %v223 = vpop.f32.mrb[0].mxu0
  %224 = vmatprep.mubr.f32.mxu0 0.0
  %225 = vmatmul.mubr.f32.gmra.mrb[0].mxu0 %v85
  %v226 = vpop.f32.mrb[0].mxu0
  %v227 = vadd.f32 %v39, %v226
  %v228 = vpop.f32.mrb[0].mxu0
  %229 = vmatprep.mubr.f32.mxu0 0.0
  %230 = vmatmul.mubr.f32.gmra.mrb[0].mxu0 %v88
  %v231 = vpop.f32.mrb[0].mxu0
  %v232 = vadd.f32 %v39, %v231
  %v233 = vpop.f32.mrb[0].mxu0
  %234 = vdwg.mxu0
  %v235 = vld [vmem:[%s3] sm:$0xff]
  %v236 = vld [vmem:[%s3 + $0x8] sm:$0xff]
  %v237 = vld [vmem:[%s3 + $0x10] sm:$0xff]
  %v238 = vld [vmem:[%s3 + $0x18] sm:$0xff]
  %v239 = vld [vmem:[%s3 + $0x20] sm:$0xff]
  %v240 = vld [vmem:[%s3 + $0x28] sm:$0xff]
  %v241 = vld [vmem:[%s3 + $0x30] sm:$0xff]
  %v242 = vld [vmem:[%s3 + $0x38] sm:$0xff]
  %v243 = vld [vmem:[%s3 + $0x40] sm:$0xff]
  %v244 = vld [vmem:[%s3 + $0x48] sm:$0xff]
  %v245 = vld [vmem:[%s3 + $0x50] sm:$0xff]
  %v246 = vld [vmem:[%s3 + $0x58] sm:$0xff]
  %v247 = vld [vmem:[%s3 + $0x60] sm:$0xff]
  %v248 = vld [vmem:[%s3 + $0x68] sm:$0xff]
  %v249 = vld [vmem:[%s3 + $0x70] sm:$0xff]
  %v250 = vld [vmem:[%s3 + $0x78] sm:$0xff]
  %v251 = vadd.f32 %v157, %v235
  %v252 = vadd.f32 %v162, %v236
  %v253 = vadd.f32 %v167, %v237
  %v254 = vadd.f32 %v172, %v238
  %v255 = vadd.f32 %v177, %v239
  %v256 = vadd.f32 %v182, %v240
  %v257 = vadd.f32 %v187, %v241
  %v258 = vadd.f32 %v192, %v242
  %v259 = vadd.f32 %v197, %v243
  %v260 = vadd.f32 %v202, %v244
  %v261 = vadd.f32 %v207, %v245
  %v262 = vadd.f32 %v212, %v246
  %v263 = vadd.f32 %v217, %v247
  %v264 = vadd.f32 %v222, %v248
  %v265 = vadd.f32 %v227, %v249
  %v266 = vadd.f32 %v232, %v250
  %267 = vst.msk [vmem:[%s4] sm:$0xff] %vm41, %v251
  %268 = vst.msk [vmem:[%s4 + $0x8] sm:$0xff] %vm41, %v252
  %269 = vst.msk [vmem:[%s4 + $0x10] sm:$0xff] %vm41, %v253
  %270 = vst.msk [vmem:[%s4 + $0x18] sm:$0xff] %vm41, %v254
  %271 = vst.msk [vmem:[%s4 + $0x20] sm:$0xff] %vm41, %v255
  %272 = vst.msk [vmem:[%s4 + $0x28] sm:$0xff] %vm41, %v256
  %273 = vst.msk [vmem:[%s4 + $0x30] sm:$0xff] %vm41, %v257
  %274 = vst.msk [vmem:[%s4 + $0x38] sm:$0xff] %vm41, %v258
  %275 = vst.msk [vmem:[%s4 + $0x40] sm:$0xff] %vm41, %v259
  %276 = vst.msk [vmem:[%s4 + $0x48] sm:$0xff] %vm41, %v260
  %277 = vst.msk [vmem:[%s4 + $0x50] sm:$0xff] %vm41, %v261
  %278 = vst.msk [vmem:[%s4 + $0x58] sm:$0xff] %vm41, %v262
  %279 = vst.msk [vmem:[%s4 + $0x60] sm:$0xff] %vm41, %v263
  %280 = vst.msk [vmem:[%s4 + $0x68] sm:$0xff] %vm41, %v264
  %281 = vst.msk [vmem:[%s4 + $0x70] sm:$0xff] %vm41, %v265
  %282 = vst.msk [vmem:[%s4 + $0x78] sm:$0xff] %vm41, %v266
  // Predicated region
  $region18: #{rcvae_forward.18} parent=0 // pred_check
    _
  $region19: #{rcvae_forward.18} parent=0 // pred_check_branch
    %284 = sbr.rel (0) target = $region21
  $region20: #{rcvae_forward.18} parent=0 // pred_region
    _
  $region21: #{rcvae_forward.18} parent=0 // pred_fallthru
    _
  // Predicated region
  $region22: #{rcvae_forward.18} parent=0 // pred_check
    _
  $region23: #{rcvae_forward.18} parent=0 // pred_check_branch
    %286 = sbr.rel (0) target = $region25
  $region24: #{rcvae_forward.18} parent=0 // pred_region
    _
  $region25: #{rcvae_forward.18} parent=0 // pred_fallthru
    _

// kernel: tile.8
$region0: #{tile.8}
  #allocation0 [shape = 's32[1]{0}', space=sflag, size = 0x4, scoped, tag = 'scoped memory for tile.8']
  %s0 = inlined_call_operand.vmem [shape: f32[4,4], index: 0, kind: input, shape index: {}]
  %s1 = inlined_call_operand.vmem [shape: f32[4,4,4,4], index: 1, kind: output, shape index: {}]
  // Predicated region
  $region2: #{tile.8} parent=0 // pred_check
    _
  $region3: #{tile.8} parent=0 // pred_check_branch
    %3 = sbr.rel (0) target = $region5
  $region4: #{tile.8} parent=0 // pred_region
    _
  $region5: #{tile.8} parent=0 // pred_fallthru
    _
  %v4 = vld [vmem:[%s0] ss:$0 sm:$0xff]
  %5 = vst [vmem:[%s1] sm:$0xf] %v4
  %s6 = scalar_lea.vmem %s1, 16
  %7 = vst [vmem:[%s6] sm:$0xf] %v4
  %s8 = scalar_lea.vmem %s1, 32
  %9 = vst [vmem:[%s8] sm:$0xf] %v4
  %s10 = scalar_lea.vmem %s1, 48
  %11 = vst [vmem:[%s10] sm:$0xf] %v4
  %s12 = scalar_lea.vmem %s0, 1
  %v13 = vld [vmem:[%s12] ss:$0 sm:$0xff]
  %s14 = scalar_lea.vmem %s1, 4
  %15 = vst [vmem:[%s14] sm:$0xf] %v13
  %s16 = scalar_lea.vmem %s1, 20
  %17 = vst [vmem:[%s16] sm:$0xf] %v13
  %s18 = scalar_lea.vmem %s1, 36
  %19 = vst [vmem:[%s18] sm:$0xf] %v13
  %s20 = scalar_lea.vmem %s1, 52
  %21 = vst [vmem:[%s20] sm:$0xf] %v13
  %s22 = scalar_lea.vmem %s0, 2
  %v23 = vld [vmem:[%s22] ss:$0 sm:$0xff]
  %s24 = scalar_lea.vmem %s1, 8
  %25 = vst [vmem:[%s24] sm:$0xf] %v23
  %s26 = scalar_lea.vmem %s1, 24
  %27 = vst [vmem:[%s26] sm:$0xf] %v23
  %s28 = scalar_lea.vmem %s1, 40
  %29 = vst [vmem:[%s28] sm:$0xf] %v23
  %s30 = scalar_lea.vmem %s1, 56
  %31 = vst [vmem:[%s30] sm:$0xf] %v23
  %s32 = scalar_lea.vmem %s0, 3
  %v33 = vld [vmem:[%s32] ss:$0 sm:$0xff]
  %s34 = scalar_lea.vmem %s1, 12
  %35 = vst [vmem:[%s34] sm:$0xf] %v33
  %s36 = scalar_lea.vmem %s1, 28
  %37 = vst [vmem:[%s36] sm:$0xf] %v33
  %s38 = scalar_lea.vmem %s1, 44
  %39 = vst [vmem:[%s38] sm:$0xf] %v33
  %s40 = scalar_lea.vmem %s1, 60
  %41 = vst [vmem:[%s40] sm:$0xf] %v33

// kernel: tile.9
$region0: #{tile.9}
  %s0 = inlined_call_operand.vmem [shape: f32[4,4,4,4], index: 0, kind: input, shape index: {}]
  %s1 = inlined_call_operand.vmem [shape: f32[16,16], index: 1, kind: output, shape index: {}]
  $region1: #{tile.9} parent=0
    #allocation0 [shape = 'u8[65536]{0}', space=vmem, size = 0x10000, scoped, tag = 'scoped mem for input reshape']
    %s3 = sshllo.u32 0, 4
    %s4 = smul.addr 4, 15
    %s5 = scalar_lea.vmem %s0, %s4
    %v6 = vld [vmem:[%s5] sm:%s3]
    %s7 = scalar_lea.vmem [#allocation0], 120
    %8 = vst [vmem:[%s7] sm:%s3] %v6
    %s9 = smul.addr 4, 14
    %s10 = scalar_lea.vmem %s0, %s9
    %v11 = vld [vmem:[%s10] sm:%s3]
    %s12 = scalar_lea.vmem [#allocation0], 112
    %13 = vst [vmem:[%s12] sm:%s3] %v11
    %s14 = smul.addr 4, 13
    %s15 = scalar_lea.vmem %s0, %s14
    %v16 = vld [vmem:[%s15] sm:%s3]
    %s17 = scalar_lea.vmem [#allocation0], 104
    %18 = vst [vmem:[%s17] sm:%s3] %v16
    %s19 = smul.addr 4, 12
    %s20 = scalar_lea.vmem %s0, %s19
    %v21 = vld [vmem:[%s20] sm:%s3]
    %s22 = scalar_lea.vmem [#allocation0], 96
    %23 = vst [vmem:[%s22] sm:%s3] %v21
    %s24 = smul.addr 4, 11
    %s25 = scalar_lea.vmem %s0, %s24
    %v26 = vld [vmem:[%s25] sm:%s3]
    %s27 = scalar_lea.vmem [#allocation0], 88
    %28 = vst [vmem:[%s27] sm:%s3] %v26
    %s29 = smul.addr 4, 10
    %s30 = scalar_lea.vmem %s0, %s29
    %v31 = vld [vmem:[%s30] sm:%s3]
    %s32 = scalar_lea.vmem [#allocation0], 80
    %33 = vst [vmem:[%s32] sm:%s3] %v31
    %s34 = smul.addr 4, 9
    %s35 = scalar_lea.vmem %s0, %s34
    %v36 = vld [vmem:[%s35] sm:%s3]
    %s37 = scalar_lea.vmem [#allocation0], 72
    %38 = vst [vmem:[%s37] sm:%s3] %v36
    %s39 = smul.addr 4, 8
    %s40 = scalar_lea.vmem %s0, %s39
    %v41 = vld [vmem:[%s40] sm:%s3]
    %s42 = scalar_lea.vmem [#allocation0], 64
    %43 = vst [vmem:[%s42] sm:%s3] %v41
    %s44 = smul.addr 4, 7
    %s45 = scalar_lea.vmem %s0, %s44
    %v46 = vld [vmem:[%s45] sm:%s3]
    %s47 = scalar_lea.vmem [#allocation0], 56
    %48 = vst [vmem:[%s47] sm:%s3] %v46
    %s49 = smul.addr 4, 6
    %s50 = scalar_lea.vmem %s0, %s49
    %v51 = vld [vmem:[%s50] sm:%s3]
    %s52 = scalar_lea.vmem [#allocation0], 48
    %53 = vst [vmem:[%s52] sm:%s3] %v51
    %s54 = smul.addr 4, 5
    %s55 = scalar_lea.vmem %s0, %s54
    %v56 = vld [vmem:[%s55] sm:%s3]
    %s57 = scalar_lea.vmem [#allocation0], 40
    %58 = vst [vmem:[%s57] sm:%s3] %v56
    %s59 = smul.addr 4, 4
    %s60 = scalar_lea.vmem %s0, %s59
    %v61 = vld [vmem:[%s60] sm:%s3]
    %s62 = scalar_lea.vmem [#allocation0], 32
    %63 = vst [vmem:[%s62] sm:%s3] %v61
    %s64 = smul.addr 4, 3
    %s65 = scalar_lea.vmem %s0, %s64
    %v66 = vld [vmem:[%s65] sm:%s3]
    %s67 = scalar_lea.vmem [#allocation0], 24
    %68 = vst [vmem:[%s67] sm:%s3] %v66
    %s69 = smul.addr 4, 2
    %s70 = scalar_lea.vmem %s0, %s69
    %v71 = vld [vmem:[%s70] sm:%s3]
    %s72 = scalar_lea.vmem [#allocation0], 16
    %73 = vst [vmem:[%s72] sm:%s3] %v71
    %s74 = scalar_lea.vmem %s0, 4
    %v75 = vld [vmem:[%s74] sm:%s3]
    %s76 = scalar_lea.vmem [#allocation0], 8
    %77 = vst [vmem:[%s76] sm:%s3] %v75
    %v78 = vld [vmem:[%s0] sm:%s3]
    %79 = vst [vmem:[#allocation0] sm:%s3] %v78
    %v80 = vld [vmem:[#allocation0] ss:$8 sm:$0xf]
    %v81 = vld [vmem:[#allocation0] ss:$8 sm:$0xf0]
    %vm82 = vcmask 1047556
    %v83 = vsel %vm82, %v81, %v80
    %vm84 = vcmask 31744
    %85 = vst.msk [vmem:[%s1] sm:$0xff] %vm84, %v83
    %s86 = scalar_lea.vmem [#allocation0], 64
    %v87 = vld [vmem:[%s86] ss:$8 sm:$0xf]
    %s88 = scalar_lea.vmem [#allocation0], 64
    %v89 = vld [vmem:[%s88] ss:$8 sm:$0xf0]
    %vm90 = vcmask 1047556
    %v91 = vsel %vm90, %v89, %v87
    %vm92 = vcmask 31744
    %s93 = scalar_lea.vmem %s1, 8
    %94 = vst.msk [vmem:[%s93] sm:$0xff] %vm92, %v91
    %s95 = scalar_lea.vmem [#allocation0], 3
    %v96 = vld [vmem:[%s95] ss:$8 sm:$0xf]
    %s97 = scalar_lea.vmem [#allocation0], 3
    %v98 = vld [vmem:[%s97] ss:$8 sm:$0xf0]
    %vm99 = vcmask 1047556
    %v100 = vsel %vm99, %v98, %v96
    %101 = vrot.lane.b32.xlu0 %v100, 12
    %v102 = vpop.permute.xlu0 %101
    %vm103 = vcmask 130144
    %104 = vst.msk [vmem:[%s1] sm:$0xff] %vm103, %v102
    %s105 = scalar_lea.vmem [#allocation0], 67
    %v106 = vld [vmem:[%s105] ss:$8 sm:$0xf]
    %s107 = scalar_lea.vmem [#allocation0], 67
    %v108 = vld [vmem:[%s107] ss:$8 sm:$0xf0]
    %vm109 = vcmask 1047556
    %v110 = vsel %vm109, %v108, %v106
    %111 = vrot.lane.b32.xlu0 %v110, 12
    %v112 = vpop.permute.xlu0 %111
    %vm113 = vcmask 130144
    %s114 = scalar_lea.vmem %s1, 8
    %115 = vst.msk [vmem:[%s114] sm:$0xff] %vm113, %v112
    %s116 = scalar_lea.vmem [#allocation0], 2
    %v117 = vld [vmem:[%s116] ss:$8 sm:$0xf]
    %s118 = scalar_lea.vmem [#allocation0], 2
    %v119 = vld [vmem:[%s118] ss:$8 sm:$0xf0]
    %vm120 = vcmask 1047556
    %v121 = vsel %vm120, %v119, %v117
    %122 = vrot.lane.b32.xlu0 %v121, 8
    %v123 = vpop.permute.xlu0 %122
    %vm124 = vcmask 97344
    %125 = vst.msk [vmem:[%s1] sm:$0xff] %vm124, %v123
    %s126 = scalar_lea.vmem [#allocation0], 66
    %v127 = vld [vmem:[%s126] ss:$8 sm:$0xf]
    %s128 = scalar_lea.vmem [#allocation0], 66
    %v129 = vld [vmem:[%s128] ss:$8 sm:$0xf0]
    %vm130 = vcmask 1047556
    %v131 = vsel %vm130, %v129, %v127
    %132 = vrot.lane.b32.xlu0 %v131, 8
    %v133 = vpop.permute.xlu0 %132
    %vm134 = vcmask 97344
    %s135 = scalar_lea.vmem %s1, 8
    %136 = vst.msk [vmem:[%s135] sm:$0xff] %vm134, %v133
    %s137 = scalar_lea.vmem [#allocation0], 1
    %v138 = vld [vmem:[%s137] ss:$8 sm:$0xf]
    %s139 = scalar_lea.vmem [#allocation0], 1
    %v140 = vld [vmem:[%s139] ss:$8 sm:$0xf0]
    %vm141 = vcmask 1047556
    %v142 = vsel %vm141, %v140, %v138
    %143 = vrot.lane.b32.xlu0 %v142, 4
    %v144 = vpop.permute.xlu0 %143
    %vm145 = vcmask 64544
    %146 = vst.msk [vmem:[%s1] sm:$0xff] %vm145, %v144
    %s147 = scalar_lea.vmem [#allocation0], 65
    %v148 = vld [vmem:[%s147] ss:$8 sm:$0xf]
    %s149 = scalar_lea.vmem [#allocation0], 65
    %v150 = vld [vmem:[%s149] ss:$8 sm:$0xf0]
    %vm151 = vcmask 1047556
    %v152 = vsel %vm151, %v150, %v148
    %153 = vrot.lane.b32.xlu0 %v152, 4
    %v154 = vpop.permute.xlu0 %153
    %vm155 = vcmask 64544
    %s156 = scalar_lea.vmem %s1, 8
    %157 = vst.msk [vmem:[%s156] sm:$0xff] %vm155, %v154

// kernel: rcvae_forward.19
$region0: #{rcvae_forward.19}
  #allocation0 [shape = 'u32[]', space=smem, size = 0x4, offset = 0x4, fixed_abs, tag = 'smem constant byte address 0x4 - core index']
  #allocation1 [shape = 'u32[144,128]{1,0:T(1,128)}', space=vmem, size = 0x12000, scoped, tag = 'internal scratch']
  %s0 = inlined_call_operand.vmem [shape: f32[2,512], index: 0, kind: input, shape index: {}]
  %s1 = inlined_call_operand.vmem [shape: f32[512,32], index: 1, kind: input, shape index: {}]
  %s2 = inlined_call_operand.vmem [shape: f32[1,32], index: 2, kind: input, shape index: {}]
  %s3 = inlined_call_operand.vmem [shape: f32[2,16], index: 3, kind: input, shape index: {}]
  %s4 = inlined_call_operand.vmem [shape: f32[16,512], index: 4, kind: input, shape index: {}]
  %s5 = inlined_call_operand.vmem [shape: f32[1,512], index: 5, kind: input, shape index: {}]
  %s6 = inlined_call_operand.hbm [shape: f32[2,16], index: 6, kind: output, shape index: {0}]
  %s7 = inlined_call_operand.hbm [shape: f32[2,16], index: 7, kind: output, shape index: {1}]
  %s8 = inlined_call_operand.hbm [shape: f32[2,16], index: 8, kind: output, shape index: {2}]
  %s9 = inlined_call_operand.vmem [shape: f32[2,512], index: 9, kind: output, shape index: {3}]
  %10 = xla_tuple %s6, %s7, %s8, %s9
  %s11 = sld [smem:[#allocation0]]
  $region58: #{rcvae_forward.19} parent=0
    _
  %s13 = ssub.s32 1, %s11
  %s14 = scalar_select 0, %s13, %s11
  $region1: #{rcvae_forward.19} parent=0
    #allocation2 [shape = 'u8[1024]{0}', space=vmem, size = 0x400, scoped, tag = 'output window, operand 0, single buffered']
    #allocation3 [shape = 's32[1]{0}', space=sflag, size = 0x4, scoped, tag = 'scoped memory for rcvae_forward.19']
    #allocation4 [shape = 'u8[1024]{0}', space=vmem, size = 0x400, scoped, tag = 'output window, operand 1, single buffered']
    #allocation5 [shape = 's32[1]{0}', space=sflag, size = 0x4, scoped, tag = 'scoped memory for rcvae_forward.19']
    #allocation6 [shape = 'u8[1024]{0}', space=vmem, size = 0x400, scoped, tag = 'output window, operand 2, single buffered']
    %15 = vsyncpa [#allocation3], 0
    %16 = vsyncpa [#allocation5], 0
    // Predicated region
    $region2: #{rcvae_forward.19} parent=1 // pred_check
      _
    $region3: #{rcvae_forward.19} parent=1 // pred_check_branch
      %18 = sbr.rel (0) target = $region5
    $region4: #{rcvae_forward.19} parent=1 // pred_region
      _
    $region5: #{rcvae_forward.19} parent=1 // pred_fallthru
      _
    // Predicated region
    $region6: #{rcvae_forward.19} parent=1 // pred_check
      _
    $region7: #{rcvae_forward.19} parent=1 // pred_check_branch
      %20 = sbr.rel (0) target = $region9
    $region8: #{rcvae_forward.19} parent=1 // pred_region
      _
    $region9: #{rcvae_forward.19} parent=1 // pred_fallthru
      _
    // Predicated region
    $region10: #{rcvae_forward.19} parent=1 // pred_check
      _
    $region11: #{rcvae_forward.19} parent=1 // pred_check_branch
      %22 = sbr.rel (0) target = $region13
    $region12: #{rcvae_forward.19} parent=1 // pred_region
      _
    $region13: #{rcvae_forward.19} parent=1 // pred_fallthru
      _
    // Predicated region
    $region14: #{rcvae_forward.19} parent=1 // pred_check
      _
    $region15: #{rcvae_forward.19} parent=1 // pred_check_branch
      %24 = sbr.rel (0) target = $region17
    $region16: #{rcvae_forward.19} parent=1 // pred_region
      _
    $region17: #{rcvae_forward.19} parent=1 // pred_fallthru
      _
    // Predicated region
    $region18: #{rcvae_forward.19} parent=1 // pred_check
      _
    $region19: #{rcvae_forward.19} parent=1 // pred_check_branch
      %26 = sbr.rel (0) target = $region21
    $region20: #{rcvae_forward.19} parent=1 // pred_region
      _
    $region21: #{rcvae_forward.19} parent=1 // pred_fallthru
      _
    // Predicated region
    $region22: #{rcvae_forward.19} parent=1 // pred_check
      _
    $region23: #{rcvae_forward.19} parent=1 // pred_check_branch
      %28 = sbr.rel (0) target = $region25
    $region24: #{rcvae_forward.19} parent=1 // pred_region
      _
    $region25: #{rcvae_forward.19} parent=1 // pred_fallthru
      _
    %v29 = vld [vmem:[%s0] sm:$0xff]
    %v30 = vld [vmem:[%s1] sm:$0xff]
    %v31 = vld [vmem:[%s1 + $0x8] sm:$0xff]
    %v32 = vld [vmem:[%s1 + $0x10] sm:$0xff]
    %v33 = vld [vmem:[%s1 + $0x18] sm:$0xff]
    %v34 = vld [vmem:[%s1 + $0x20] sm:$0xff]
    %v35 = vld [vmem:[%s1 + $0x28] sm:$0xff]
    %v36 = vld [vmem:[%s1 + $0x30] sm:$0xff]
    %v37 = vld [vmem:[%s1 + $0x38] sm:$0xff]
    %v38 = vld [vmem:[%s1 + $0x40] sm:$0xff]
    %v39 = vld [vmem:[%s1 + $0x48] sm:$0xff]
    %v40 = vld [vmem:[%s1 + $0x50] sm:$0xff]
    %v41 = vld [vmem:[%s1 + $0x58] sm:$0xff]
    %v42 = vld [vmem:[%s1 + $0x60] sm:$0xff]
    %v43 = vld [vmem:[%s1 + $0x68] sm:$0xff]
    %v44 = vld [vmem:[%s1 + $0x70] sm:$0xff]
    %v45 = vld [vmem:[%s1 + $0x78] sm:$0xff]
    %v46 = vld [vmem:[%s1 + $0x80] sm:$0xff]
    %v47 = vld [vmem:[%s1 + $0x88] sm:$0xff]
    %v48 = vld [vmem:[%s1 + $0x90] sm:$0xff]
    %v49 = vld [vmem:[%s1 + $0x98] sm:$0xff]
    %v50 = vld [vmem:[%s1 + $0xa0] sm:$0xff]
    %v51 = vld [vmem:[%s1 + $0xa8] sm:$0xff]
    %v52 = vld [vmem:[%s1 + $0xb0] sm:$0xff]
    %v53 = vld [vmem:[%s1 + $0xb8] sm:$0xff]
    %v54 = vld [vmem:[%s1 + $0xc0] sm:$0xff]
    %v55 = vld [vmem:[%s1 + $0xc8] sm:$0xff]
    %v56 = vld [vmem:[%s1 + $0xd0] sm:$0xff]
    %v57 = vld [vmem:[%s1 + $0xd8] sm:$0xff]
    %v58 = vld [vmem:[%s1 + $0xe0] sm:$0xff]
    %v59 = vld [vmem:[%s1 + $0xe8] sm:$0xff]
    %v60 = vld [vmem:[%s1 + $0xf0] sm:$0xff]
    %v61 = vld [vmem:[%s1 + $0xf8] sm:$0xff]
    %v62 = vld [vmem:[%s1 + $0x100] sm:$0xff]
    %v63 = vld [vmem:[%s1 + $0x108] sm:$0xff]
    %v64 = vld [vmem:[%s1 + $0x110] sm:$0xff]
    %v65 = vld [vmem:[%s1 + $0x118] sm:$0xff]
    %v66 = vld [vmem:[%s1 + $0x120] sm:$0xff]
    %v67 = vld [vmem:[%s1 + $0x128] sm:$0xff]
    %v68 = vld [vmem:[%s1 + $0x130] sm:$0xff]
    %v69 = vld [vmem:[%s1 + $0x138] sm:$0xff]
    %v70 = vld [vmem:[%s1 + $0x140] sm:$0xff]
    %v71 = vld [vmem:[%s1 + $0x148] sm:$0xff]
    %v72 = vld [vmem:[%s1 + $0x150] sm:$0xff]
    %v73 = vld [vmem:[%s1 + $0x158] sm:$0xff]
    %v74 = vld [vmem:[%s1 + $0x160] sm:$0xff]
    %v75 = vld [vmem:[%s1 + $0x168] sm:$0xff]
    %v76 = vld [vmem:[%s1 + $0x170] sm:$0xff]
    %v77 = vld [vmem:[%s1 + $0x178] sm:$0xff]
    %v78 = vld [vmem:[%s1 + $0x180] sm:$0xff]
    %v79 = vld [vmem:[%s1 + $0x188] sm:$0xff]
    %v80 = vld [vmem:[%s1 + $0x190] sm:$0xff]
    %v81 = vld [vmem:[%s1 + $0x198] sm:$0xff]
    %v82 = vld [vmem:[%s1 + $0x1a0] sm:$0xff]
    %v83 = vld [vmem:[%s1 + $0x1a8] sm:$0xff]
    %v84 = vld [vmem:[%s1 + $0x1b0] sm:$0xff]
    %v85 = vld [vmem:[%s1 + $0x1b8] sm:$0xff]
    %v86 = vld [vmem:[%s1 + $0x1c0] sm:$0xff]
    %v87 = vld [vmem:[%s1 + $0x1c8] sm:$0xff]
    %v88 = vld [vmem:[%s1 + $0x1d0] sm:$0xff]
    %v89 = vld [vmem:[%s1 + $0x1d8] sm:$0xff]
    %v90 = vld [vmem:[%s1 + $0x1e0] sm:$0xff]
    %v91 = vld [vmem:[%s1 + $0x1e8] sm:$0xff]
    %v92 = vld [vmem:[%s1 + $0x1f0] sm:$0xff]
    %v93 = vld [vmem:[%s1 + $0x1f8] sm:$0xff]
    %v94 = vld [vmem:[%s2] sm:$0x1]
    %v96 = vlaneseq
    %v97 = vshrl.u32 %v96, 7
    %v98 = vsub.s32 0, %v97
    %v99 = vrot.slane %v94, %v98
    %v102 = vcombine.high %v29, %v29
    %v104 = vunpack.c.l.s4 1983009808
    %v105 = vunpack.c.0.s8 %v104
    %v106 = vlaneseq
    %v107 = vshrl.u32 %v106, 7
    %v108 = vsub.s32 %v105, %v107
    %v109 = vrot.slane %v29, %v108
    %v111 = vunpack.c.l.s4 1983009808
    %v112 = vunpack.c.0.s8 %v111
    %v113 = vlaneseq
    %v114 = vshrl.u32 %v113, 7
    %v115 = vsub.s32 %v112, %v114
    %v116 = vrot.slane %v102, %v115
    %v117 = vcombine.high %v109, %v109
    %v118 = vcombine.high %v116, %v116
    %123 = vmatprep.subr.mxu0 0.0
    %124 = vmatpush1.msra.mxu0 %v30
    %125 = vmatprep.subr.mxu0 0.0
    %126 = vmatpush1.msra.mxu0 %v31
    %127 = vmatprep.subr.mxu0 0.0
    %128 = vmatpush1.msra.mxu0 %v32
    %129 = vmatprep.subr.mxu0 0.0
    %130 = vmatpush1.msra.mxu0 %v33
    %131 = vmatprep.subr.mxu0 0.0
    %132 = vmatpush1.msra.mxu0 %v34
    %133 = vmatprep.subr.mxu0 0.0
    %134 = vmatpush1.msra.mxu0 %v35
    %135 = vmatprep.subr.mxu0 0.0
    %136 = vmatpush1.msra.mxu0 %v36
    %137 = vmatprep.subr.mxu0 0.0
    %138 = vmatpush1.msra.mxu0 %v37
    %139 = vmatprep.subr.mxu0 0.0
    %140 = vmatpush1.msra.mxu0 %v38
    %141 = vmatprep.subr.mxu0 0.0
    %142 = vmatpush1.msra.mxu0 %v39
    %143 = vmatprep.subr.mxu0 0.0
    %144 = vmatpush1.msra.mxu0 %v40
    %145 = vmatprep.subr.mxu0 0.0
    %146 = vmatpush1.msra.mxu0 %v41
    %147 = vmatprep.subr.mxu0 0.0
    %148 = vmatpush1.msra.mxu0 %v42
    %149 = vmatprep.subr.mxu0 0.0
    %150 = vmatpush1.msra.mxu0 %v43
    %151 = vmatprep.subr.mxu0 0.0
    %152 = vmatpush1.msra.mxu0 %v44
    %153 = vmatprep.subr.mxu0 0.0
    %154 = vmatpush1.msra.mxu0 %v45
    %155 = vmatprep.subr.mxu0 0.0
    %156 = vmatpush1.msra.mxu0 %v46
    %157 = vmatprep.subr.mxu0 0.0
    %158 = vmatpush1.msra.mxu0 %v47
    %159 = vmatprep.subr.mxu0 0.0
    %160 = vmatpush1.msra.mxu0 %v48
    %161 = vmatprep.subr.mxu0 0.0
    %162 = vmatpush1.msra.mxu0 %v49
    %163 = vmatprep.subr.mxu0 0.0
    %164 = vmatpush1.msra.mxu0 %v50
    %165 = vmatprep.subr.mxu0 0.0
    %166 = vmatpush1.msra.mxu0 %v51
    %167 = vmatprep.subr.mxu0 0.0
    %168 = vmatpush1.msra.mxu0 %v52
    %169 = vmatprep.subr.mxu0 0.0
    %170 = vmatpush1.msra.mxu0 %v53
    %171 = vmatprep.subr.mxu0 0.0
    %172 = vmatpush1.msra.mxu0 %v54
    %173 = vmatprep.subr.mxu0 0.0
    %174 = vmatpush1.msra.mxu0 %v55
    %175 = vmatprep.subr.mxu0 0.0
    %176 = vmatpush1.msra.mxu0 %v56
    %177 = vmatprep.subr.mxu0 0.0
    %178 = vmatpush1.msra.mxu0 %v57
    %179 = vmatprep.subr.mxu0 0.0
    %180 = vmatpush1.msra.mxu0 %v58
    %181 = vmatprep.subr.mxu0 0.0
    %182 = vmatpush1.msra.mxu0 %v59
    %183 = vmatprep.subr.mxu0 0.0
    %184 = vmatpush1.msra.mxu0 %v60
    %185 = vmatprep.subr.mxu0 0.0
    %186 = vmatpush1.msra.mxu0 %v61
    %187 = vmatprep.mubr.f32.mxu0 %v117
    %188 = vmatmul.mubr.f32.gmra.mrb[0].mxu0 %v109
    %v189 = vpop.f32.mrb[0].mxu0
    %v190 = vadd.f32 %v99, %v189
    %v191 = vpop.f32.mrb[0].mxu0
    %192 = vdwg.mxu0
    %193 = vmatprep.subr.mxu0 0.0
    %194 = vmatpush1.msra.mxu0 %v62
    %195 = vmatprep.subr.mxu0 0.0
    %196 = vmatpush1.msra.mxu0 %v63
    %197 = vmatprep.subr.mxu0 0.0
    %198 = vmatpush1.msra.mxu0 %v64
    %199 = vmatprep.subr.mxu0 0.0
    %200 = vmatpush1.msra.mxu0 %v65
    %201 = vmatprep.subr.mxu0 0.0
    %202 = vmatpush1.msra.mxu0 %v66
    %203 = vmatprep.subr.mxu0 0.0
    %204 = vmatpush1.msra.mxu0 %v67
    %205 = vmatprep.subr.mxu0 0.0
    %206 = vmatpush1.msra.mxu0 %v68
    %207 = vmatprep.subr.mxu0 0.0
    %208 = vmatpush1.msra.mxu0 %v69
    %209 = vmatprep.subr.mxu0 0.0
    %210 = vmatpush1.msra.mxu0 %v70
    %211 = vmatprep.subr.mxu0 0.0
    %212 = vmatpush1.msra.mxu0 %v71
    %213 = vmatprep.subr.mxu0 0.0
    %214 = vmatpush1.msra.mxu0 %v72
    %215 = vmatprep.subr.mxu0 0.0
    %216 = vmatpush1.msra.mxu0 %v73
    %217 = vmatprep.subr.mxu0 0.0
    %218 = vmatpush1.msra.mxu0 %v74
    %219 = vmatprep.subr.mxu0 0.0
    %220 = vmatpush1.msra.mxu0 %v75
    %221 = vmatprep.subr.mxu0 0.0
    %222 = vmatpush1.msra.mxu0 %v76
    %223 = vmatprep.subr.mxu0 0.0
    %224 = vmatpush1.msra.mxu0 %v77
    %225 = vmatprep.subr.mxu0 0.0
    %226 = vmatpush1.msra.mxu0 %v78
    %227 = vmatprep.subr.mxu0 0.0
    %228 = vmatpush1.msra.mxu0 %v79
    %229 = vmatprep.subr.mxu0 0.0
    %230 = vmatpush1.msra.mxu0 %v80
    %231 = vmatprep.subr.mxu0 0.0
    %232 = vmatpush1.msra.mxu0 %v81
    %233 = vmatprep.subr.mxu0 0.0
    %234 = vmatpush1.msra.mxu0 %v82
    %235 = vmatprep.subr.mxu0 0.0
    %236 = vmatpush1.msra.mxu0 %v83
    %237 = vmatprep.subr.mxu0 0.0
    %238 = vmatpush1.msra.mxu0 %v84
    %239 = vmatprep.subr.mxu0 0.0
    %240 = vmatpush1.msra.mxu0 %v85
    %241 = vmatprep.subr.mxu0 0.0
    %242 = vmatpush1.msra.mxu0 %v86
    %243 = vmatprep.subr.mxu0 0.0
    %244 = vmatpush1.msra.mxu0 %v87
    %245 = vmatprep.subr.mxu0 0.0
    %246 = vmatpush1.msra.mxu0 %v88
    %247 = vmatprep.subr.mxu0 0.0
    %248 = vmatpush1.msra.mxu0 %v89
    %249 = vmatprep.subr.mxu0 0.0
    %250 = vmatpush1.msra.mxu0 %v90
    %251 = vmatprep.subr.mxu0 0.0
    %252 = vmatpush1.msra.mxu0 %v91
    %253 = vmatprep.subr.mxu0 0.0
    %254 = vmatpush1.msra.mxu0 %v92
    %255 = vmatprep.subr.mxu0 0.0
    %256 = vmatpush1.msra.mxu0 %v93
    %257 = vmatprep.mubr.f32.mxu0 %v118
    %258 = vmatmul.mubr.f32.gmra.mrb[0].mxu0 %v116
    %v259 = vpop.f32.mrb[0].mxu0
    %v260 = vadd.f32 %v190, %v259
    %v261 = vpop.f32.mrb[0].mxu0
    %262 = vdwg.mxu0
    %v263 = vld [vmem:[%s3] sm:$0x3]
    %v264 = vmul.f32 %v260, 0.5
    %v265 = vmul.f32 %v264, 1.442695
    %v266 = vpow.pop %v265
    %268 = vrot.lane.b32.xlu0 %v266, 112
    %v269 = vpop.permute.xlu0 %268
    %v271 = vmul.f32 %v263, %v269
    %v272 = vadd.f32 %v271, %v260
    %v273 = vld [vmem:[%s4] sm:$0xff]
    %v274 = vld [vmem:[%s4 + $0x8] sm:$0xff]
    %v275 = vld [vmem:[%s4 + $0x10] sm:$0xff]
    %v276 = vld [vmem:[%s4 + $0x18] sm:$0xff]
    %v277 = vld [vmem:[%s4 + $0x20] sm:$0xff]
    %v278 = vld [vmem:[%s4 + $0x28] sm:$0xff]
    %v279 = vld [vmem:[%s4 + $0x30] sm:$0xff]
    %v280 = vld [vmem:[%s4 + $0x38] sm:$0xff]
    %v281 = vld [vmem:[%s5] sm:$0xf]
    %v283 = vlaneseq
    %v284 = vshrl.u32 %v283, 7
    %v285 = vsub.s32 0, %v284
    %v286 = vrot.slane %v281, %v285
    %v287 = vlaneseq
    %v288 = vshrl.u32 %v287, 7
    %v289 = vsub.s32 1, %v288
    %v290 = vrot.slane %v281, %v289
    %v291 = vlaneseq
    %v292 = vshrl.u32 %v291, 7
    %v293 = vsub.s32 2, %v292
    %v294 = vrot.slane %v281, %v293
    %v295 = vlaneseq
    %v296 = vshrl.u32 %v295, 7
    %v297 = vsub.s32 3, %v296
    %v298 = vrot.slane %v281, %v297
    %vm303 = vcmask 130048
    %v305 = vsel %vm303, %v272, 0
    %307 = vmatprep.subr.mxu0 %v274
    %308 = vmatpush1.msra.mxu0 %v273
    %309 = vmatprep.subr.mxu0 %v278
    %310 = vmatpush1.msra.mxu0 %v277
    %311 = vmatprep.subr.mxu0 0.0
    %312 = vmatpush1.msra.mxu0 0.0
    %313 = vmatprep.subr.mxu0 0.0
    %314 = vmatpush1.msra.mxu0 0.0
    %315 = vmatprep.subr.mxu0 0.0
    %316 = vmatpush1.msra.mxu0 0.0
    %317 = vmatprep.subr.mxu0 0.0
    %318 = vmatpush1.msra.mxu0 0.0
    %319 = vmatprep.subr.mxu0 0.0
    %320 = vmatpush1.msra.mxu0 0.0
    %321 = vmatprep.subr.mxu0 0.0
    %322 = vmatpush1.msra.mxu0 0.0
    %323 = vmatprep.subr.mxu0 0.0
    %324 = vmatpush1.msra.mxu0 0.0
    %325 = vmatprep.subr.mxu0 0.0
    %326 = vmatpush1.msra.mxu0 0.0
    %327 = vmatprep.subr.mxu0 0.0
    %328 = vmatpush1.msra.mxu0 0.0
    %329 = vmatprep.subr.mxu0 0.0
    %330 = vmatpush1.msra.mxu0 0.0
    %331 = vmatprep.subr.mxu0 0.0
    %332 = vmatpush1.msra.mxu0 0.0
    %333 = vmatprep.subr.mxu0 0.0
    %334 = vmatpush1.msra.mxu0 0.0
    %335 = vmatprep.subr.mxu0 0.0
    %336 = vmatpush1.msra.mxu0 0.0
    %337 = vmatprep.subr.mxu0 0.0
    %338 = vmatpush1.msra.mxu0 0.0
    %339 = vmatprep.subr.mxu0 0.0
    %340 = vmatpush1.msra.mxu0 0.0
    %341 = vmatprep.subr.mxu0 0.0
    %342 = vmatpush1.msra.mxu0 0.0
    %343 = vmatprep.subr.mxu0 0.0
    %344 = vmatpush1.msra.mxu0 0.0
    %345 = vmatprep.subr.mxu0 0.0
    %346 = vmatpush1.msra.mxu0 0.0
    %347 = vmatprep.subr.mxu0 0.0
    %348 = vmatpush1.msra.mxu0 0.0
    %349 = vmatprep.subr.mxu0 0.0
    %350 = vmatpush1.msra.mxu0 0.0
    %351 = vmatprep.subr.mxu0 0.0
    %352 = vmatpush1.msra.mxu0 0.0
    %353 = vmatprep.subr.mxu0 0.0
    %354 = vmatpush1.msra.mxu0 0.0
    %355 = vmatprep.subr.mxu0 0.0
    %356 = vmatpush1.msra.mxu0 0.0
    %357 = vmatprep.subr.mxu0 0.0
    %358 = vmatpush1.msra.mxu0 0.0
    %359 = vmatprep.subr.mxu0 0.0
    %360 = vmatpush1.msra.mxu0 0.0
    %361 = vmatprep.subr.mxu0 0.0
    %362 = vmatpush1.msra.mxu0 0.0
    %363 = vmatprep.subr.mxu0 0.0
    %364 = vmatpush1.msra.mxu0 0.0
    %365 = vmatprep.subr.mxu0 0.0
    %366 = vmatpush1.msra.mxu0 0.0
    %367 = vmatprep.subr.mxu0 0.0
    %368 = vmatpush1.msra.mxu0 0.0
    %369 = vmatprep.subr.mxu0 0.0
    %370 = vmatpush1.msra.mxu0 0.0
    %371 = vmatprep.mubr.f32.mxu0 0.0
    %372 = vmatmul.mubr.f32.gmra.mrb[0].mxu0 %v305
    %v373 = vpop.f32.mrb[0].mxu0
    %v374 = vadd.f32 %v286, %v373
    %v375 = vpop.f32.mrb[0].mxu0
    %v376 = vadd.f32 %v290, %v375
    %377 = vdwg.mxu0
    %378 = vmatprep.subr.mxu0 %v276
    %379 = vmatpush1.msra.mxu0 %v275
    %380 = vmatprep.subr.mxu0 %v280
    %381 = vmatpush1.msra.mxu0 %v279
    %382 = vmatprep.subr.mxu0 0.0
    %383 = vmatpush1.msra.mxu0 0.0
    %384 = vmatprep.subr.mxu0 0.0
    %385 = vmatpush1.msra.mxu0 0.0
    %386 = vmatprep.subr.mxu0 0.0
    %387 = vmatpush1.msra.mxu0 0.0
    %388 = vmatprep.subr.mxu0 0.0
    %389 = vmatpush1.msra.mxu0 0.0
    %390 = vmatprep.subr.mxu0 0.0
    %391 = vmatpush1.msra.mxu0 0.0
    %392 = vmatprep.subr.mxu0 0.0
    %393 = vmatpush1.msra.mxu0 0.0
    %394 = vmatprep.subr.mxu0 0.0
    %395 = vmatpush1.msra.mxu0 0.0
    %396 = vmatprep.subr.mxu0 0.0
    %397 = vmatpush1.msra.mxu0 0.0
    %398 = vmatprep.subr.mxu0 0.0
    %399 = vmatpush1.msra.mxu0 0.0
    %400 = vmatprep.subr.mxu0 0.0
    %401 = vmatpush1.msra.mxu0 0.0
    %402 = vmatprep.subr.mxu0 0.0
    %403 = vmatpush1.msra.mxu0 0.0
    %404 = vmatprep.subr.mxu0 0.0
    %405 = vmatpush1.msra.mxu0 0.0
    %406 = vmatprep.subr.mxu0 0.0
    %407 = vmatpush1.msra.mxu0 0.0
    %408 = vmatprep.subr.mxu0 0.0
    %409 = vmatpush1.msra.mxu0 0.0
    %410 = vmatprep.subr.mxu0 0.0
    %411 = vmatpush1.msra.mxu0 0.0
    %412 = vmatprep.subr.mxu0 0.0
    %413 = vmatpush1.msra.mxu0 0.0
    %414 = vmatprep.subr.mxu0 0.0
    %415 = vmatpush1.msra.mxu0 0.0
    %416 = vmatprep.subr.mxu0 0.0
    %417 = vmatpush1.msra.mxu0 0.0
    %418 = vmatprep.subr.mxu0 0.0
    %419 = vmatpush1.msra.mxu0 0.0
    %420 = vmatprep.subr.mxu0 0.0
    %421 = vmatpush1.msra.mxu0 0.0
    %422 = vmatprep.subr.mxu0 0.0
    %423 = vmatpush1.msra.mxu0 0.0
    %424 = vmatprep.subr.mxu0 0.0
    %425 = vmatpush1.msra.mxu0 0.0
    %426 = vmatprep.subr.mxu0 0.0
    %427 = vmatpush1.msra.mxu0 0.0
    %428 = vmatprep.subr.mxu0 0.0
    %429 = vmatpush1.msra.mxu0 0.0
    %430 = vmatprep.subr.mxu0 0.0
    %431 = vmatpush1.msra.mxu0 0.0
    %432 = vmatprep.subr.mxu0 0.0
    %433 = vmatpush1.msra.mxu0 0.0
    %434 = vmatprep.subr.mxu0 0.0
    %435 = vmatpush1.msra.mxu0 0.0
    %436 = vmatprep.subr.mxu0 0.0
    %437 = vmatpush1.msra.mxu0 0.0
    %438 = vmatprep.subr.mxu0 0.0
    %439 = vmatpush1.msra.mxu0 0.0
    %440 = vmatprep.subr.mxu0 0.0
    %441 = vmatpush1.msra.mxu0 0.0
    %442 = vmatprep.mubr.f32.mxu0 0.0
    %443 = vmatmul.mubr.f32.gmra.mrb[0].mxu0 %v305
    %v444 = vpop.f32.mrb[0].mxu0
    %v445 = vadd.f32 %v294, %v444
    %v446 = vpop.f32.mrb[0].mxu0
    %v447 = vadd.f32 %v298, %v446
    %448 = vdwg.mxu0
    %vm449 = vcmask 123904
    %450 = vst.msk [vmem:[#allocation2] sm:$0x3] %vm449, %v260
    %452 = vrot.lane.b32.xlu0 %v260, 112
    %v453 = vpop.permute.xlu0 %452
    %455 = vst.msk [vmem:[#allocation4] sm:$0x3] %vm449, %v453
    %456 = vst.msk [vmem:[#allocation6] sm:$0x3] %vm449, %v272
    %v461 = vcombine.low %v374, %v376
    %v462 = vcombine.low %v445, %v447
    %v464 = vunpack.c.l.s4 1983009808
    %v465 = vunpack.c.0.s8 %v464
    %v466 = vlaneseq
    %v467 = vshrl.u32 %v466, 7
    %v468 = vsub.s32 %v465, %v467
    %v469 = vrot.slane %v461, %v468
    %v471 = vunpack.c.l.s4 1983009808
    %v472 = vunpack.c.0.s8 %v471
    %v473 = vlaneseq
    %v474 = vshrl.u32 %v473, 7
    %v475 = vsub.s32 %v472, %v474
    %v476 = vrot.slane %v462, %v475
    %v477 = vcombine.low %v469, %v476
    %479 = vst [vmem:[%s9] sm:$0xff] %v477
    // Predicated region
    $region26: #{rcvae_forward.19} parent=1 // pred_check
      _
    $region27: #{rcvae_forward.19} parent=1 // pred_check_branch
      %481 = sbr.rel (0) target = $region29
    $region28: #{rcvae_forward.19} parent=1 // pred_region
      %s483 = ssub.s32 32, 32
      %484 = vsyncadd [#allocation3], %s483
      %s486 = sshll.u32 [#allocation2], 4
      %s487 = int_to_ptr.vmem [resolvable:$true] %s486
      %489 = dma.vmem_to_hbm [thread:$0]  %s487, 32, %s6, [#allocation3]
    $region29: #{rcvae_forward.19} parent=1 // pred_fallthru
      _
    // Predicated region
    $region30: #{rcvae_forward.19} parent=1 // pred_check
      _
    $region31: #{rcvae_forward.19} parent=1 // pred_check_branch
      %491 = sbr.rel (0) target = $region33
    $region32: #{rcvae_forward.19} parent=1 // pred_region
      %s493 = ssub.s32 32, 32
      %494 = vsyncadd [#allocation5], %s493
      %s496 = sshll.u32 [#allocation4], 4
      %s497 = int_to_ptr.vmem [resolvable:$true] %s496
      %499 = dma.vmem_to_hbm [thread:$0]  %s497, 32, %s7, [#allocation5]
    $region33: #{rcvae_forward.19} parent=1 // pred_fallthru
      _
    // Predicated region
    $region34: #{rcvae_forward.19} parent=1 // pred_check
      _
    $region35: #{rcvae_forward.19} parent=1 // pred_check_branch
      %501 = sbr.rel (0) target = $region37
    $region36: #{rcvae_forward.19} parent=1 // pred_region
      %s503 = ssub.s32 32, 32
      %504 = vsyncadd [#allocation5], %s503
      %s506 = sshll.u32 [#allocation6], 4
      %s507 = int_to_ptr.vmem [resolvable:$true] %s506
      %509 = dma.vmem_to_hbm [thread:$0]  %s507, 32, %s8, [#allocation5]
    $region37: #{rcvae_forward.19} parent=1 // pred_fallthru
      _
    // Predicated region
    $region38: #{rcvae_forward.19} parent=1 // pred_check
      _
    $region39: #{rcvae_forward.19} parent=1 // pred_check_branch
      %511 = sbr.rel (0) target = $region41
    $region40: #{rcvae_forward.19} parent=1 // pred_region
      _
    $region41: #{rcvae_forward.19} parent=1 // pred_fallthru
      _
    // Predicated region
    $region42: #{rcvae_forward.19} parent=1 // pred_check
      _
    $region43: #{rcvae_forward.19} parent=1 // pred_check_branch
      %513 = sbr.rel (0) target = $region45
    $region44: #{rcvae_forward.19} parent=1 // pred_region
      %514 = dma.done [#allocation3], 32
    $region45: #{rcvae_forward.19} parent=1 // pred_fallthru
      _
    // Predicated region
    $region46: #{rcvae_forward.19} parent=1 // pred_check
      _
    $region47: #{rcvae_forward.19} parent=1 // pred_check_branch
      %516 = sbr.rel (0) target = $region49
    $region48: #{rcvae_forward.19} parent=1 // pred_region
      %517 = dma.done [#allocation5], 32
    $region49: #{rcvae_forward.19} parent=1 // pred_fallthru
      _
    // Predicated region
    $region50: #{rcvae_forward.19} parent=1 // pred_check
      _
    $region51: #{rcvae_forward.19} parent=1 // pred_check_branch
      %519 = sbr.rel (0) target = $region53
    $region52: #{rcvae_forward.19} parent=1 // pred_region
      %520 = dma.done [#allocation5], 32
    $region53: #{rcvae_forward.19} parent=1 // pred_fallthru
      _
    // Predicated region
    $region54: #{rcvae_forward.19} parent=1 // pred_check
      _
    $region55: #{rcvae_forward.19} parent=1 // pred_check_branch
      %522 = sbr.rel (0) target = $region57
    $region56: #{rcvae_forward.19} parent=1 // pred_region
      _
    $region57: #{rcvae_forward.19} parent=1 // pred_fallthru
      _
    %523 = vsyncpa [#allocation3], 1
    %524 = vsyncpa [#allocation5], 1

// kernel: rcvae_forward.24
$region0: #{rcvae_forward.24}
  #allocation0 [shape = 'u32[]', space=smem, size = 0x4, offset = 0x4, fixed_abs, tag = 'smem constant byte address 0x4 - core index']
  #allocation1 [shape = 'u32[144,128]{1,0:T(1,128)}', space=vmem, size = 0x12000, scoped, tag = 'internal scratch']
  %s0 = inlined_call_operand.vmem [shape: f32[128,72], index: 0, kind: input, shape index: {}]
  %s1 = inlined_call_operand.vmem [shape: f32[72,16], index: 1, kind: input, shape index: {}]
  %s2 = inlined_call_operand.vmem [shape: f32[1,16], index: 2, kind: input, shape index: {}]
  %s3 = inlined_call_operand.vmem [shape: f32[1,16], index: 3, kind: input, shape index: {}]
  %s4 = inlined_call_operand.vmem [shape: f32[16,16], index: 4, kind: input, shape index: {}]
  %s5 = inlined_call_operand.vmem [shape: f32[128,16], index: 5, kind: output, shape index: {}]
  %s6 = sld [smem:[#allocation0]]
  $region30: #{rcvae_forward.24} parent=0
    _
  %s8 = ssub.s32 1, %s6
  %s9 = scalar_select 0, %s8, %s6
  // Predicated region
  $region2: #{rcvae_forward.24} parent=0 // pred_check
    _
  $region3: #{rcvae_forward.24} parent=0 // pred_check_branch
    %11 = sbr.rel (0) target = $region5
  $region4: #{rcvae_forward.24} parent=0 // pred_region
    _
  $region5: #{rcvae_forward.24} parent=0 // pred_fallthru
    _
  // Predicated region
  $region6: #{rcvae_forward.24} parent=0 // pred_check
    _
  $region7: #{rcvae_forward.24} parent=0 // pred_check_branch
    %13 = sbr.rel (0) target = $region9
  $region8: #{rcvae_forward.24} parent=0 // pred_region
    _
  $region9: #{rcvae_forward.24} parent=0 // pred_fallthru
    _
  // Predicated region
  $region10: #{rcvae_forward.24} parent=0 // pred_check
    _
  $region11: #{rcvae_forward.24} parent=0 // pred_check_branch
    %15 = sbr.rel (0) target = $region13
  $region12: #{rcvae_forward.24} parent=0 // pred_region
    _
  $region13: #{rcvae_forward.24} parent=0 // pred_fallthru
    _
  // Predicated region
  $region14: #{rcvae_forward.24} parent=0 // pred_check
    _
  $region15: #{rcvae_forward.24} parent=0 // pred_check_branch
    %17 = sbr.rel (0) target = $region17
  $region16: #{rcvae_forward.24} parent=0 // pred_region
    _
  $region17: #{rcvae_forward.24} parent=0 // pred_fallthru
    _
  // Predicated region
  $region18: #{rcvae_forward.24} parent=0 // pred_check
    _
  $region19: #{rcvae_forward.24} parent=0 // pred_check_branch
    %19 = sbr.rel (0) target = $region21
  $region20: #{rcvae_forward.24} parent=0 // pred_region
    _
  $region21: #{rcvae_forward.24} parent=0 // pred_fallthru
    _
  %v20 = vld [vmem:[%s0] sm:$0xff]
  %v21 = vld [vmem:[%s0 + $0x8] sm:$0xff]
  %v22 = vld [vmem:[%s0 + $0x10] sm:$0xff]
  %v23 = vld [vmem:[%s0 + $0x18] sm:$0xff]
  %v24 = vld [vmem:[%s0 + $0x20] sm:$0xff]
  %v25 = vld [vmem:[%s0 + $0x28] sm:$0xff]
  %v26 = vld [vmem:[%s0 + $0x30] sm:$0xff]
  %v27 = vld [vmem:[%s0 + $0x38] sm:$0xff]
  %v28 = vld [vmem:[%s0 + $0x40] sm:$0xff]
  %v29 = vld [vmem:[%s0 + $0x48] sm:$0xff]
  %v30 = vld [vmem:[%s0 + $0x50] sm:$0xff]
  %v31 = vld [vmem:[%s0 + $0x58] sm:$0xff]
  %v32 = vld [vmem:[%s0 + $0x60] sm:$0xff]
  %v33 = vld [vmem:[%s0 + $0x68] sm:$0xff]
  %v34 = vld [vmem:[%s0 + $0x70] sm:$0xff]
  %v35 = vld [vmem:[%s0 + $0x78] sm:$0xff]
  %v36 = vld [vmem:[%s1] sm:$0xff]
  %v37 = vld [vmem:[%s1 + $0x8] sm:$0xff]
  %v38 = vld [vmem:[%s1 + $0x10] sm:$0xff]
  %v39 = vld [vmem:[%s1 + $0x18] sm:$0xff]
  %v40 = vld [vmem:[%s1 + $0x20] sm:$0xff]
  %v41 = vld [vmem:[%s1 + $0x28] sm:$0xff]
  %v42 = vld [vmem:[%s1 + $0x30] sm:$0xff]
  %v43 = vld [vmem:[%s1 + $0x38] sm:$0xff]
  %v44 = vld [vmem:[%s1 + $0x40] sm:$0xff]
  %vm45 = vcmask 588800
  %v47 = vsel %vm45, %v20, 0
  %v50 = vsel %vm45, %v21, 0
  %v53 = vsel %vm45, %v22, 0
  %v56 = vsel %vm45, %v23, 0
  %v59 = vsel %vm45, %v24, 0
  %v62 = vsel %vm45, %v25, 0
  %v65 = vsel %vm45, %v26, 0
  %v68 = vsel %vm45, %v27, 0
  %v71 = vsel %vm45, %v28, 0
  %v74 = vsel %vm45, %v29, 0
  %v77 = vsel %vm45, %v30, 0
  %v80 = vsel %vm45, %v31, 0
  %v83 = vsel %vm45, %v32, 0
  %v86 = vsel %vm45, %v33, 0
  %v89 = vsel %vm45, %v34, 0
  %v92 = vsel %vm45, %v35, 0
  %94 = vmatprep.subr.mxu0 0.0
  %95 = vmatpush1.msra.mxu0 %v36
  %96 = vmatprep.subr.mxu0 0.0
  %97 = vmatpush1.msra.mxu0 %v37
  %98 = vmatprep.subr.mxu0 0.0
  %99 = vmatpush1.msra.mxu0 %v38
  %100 = vmatprep.subr.mxu0 0.0
  %101 = vmatpush1.msra.mxu0 %v39
  %102 = vmatprep.subr.mxu0 0.0
  %103 = vmatpush1.msra.mxu0 %v40
  %104 = vmatprep.subr.mxu0 0.0
  %105 = vmatpush1.msra.mxu0 %v41
  %106 = vmatprep.subr.mxu0 0.0
  %107 = vmatpush1.msra.mxu0 %v42
  %108 = vmatprep.subr.mxu0 0.0
  %109 = vmatpush1.msra.mxu0 %v43
  %110 = vmatprep.subr.mxu0 0.0
  %111 = vmatpush1.msra.mxu0 %v44
  %112 = vmatprep.subr.mxu0 0.0
  %113 = vmatpush1.msra.mxu0 0.0
  %114 = vmatprep.subr.mxu0 0.0
  %115 = vmatpush1.msra.mxu0 0.0
  %116 = vmatprep.subr.mxu0 0.0
  %117 = vmatpush1.msra.mxu0 0.0
  %118 = vmatprep.subr.mxu0 0.0
  %119 = vmatpush1.msra.mxu0 0.0
  %120 = vmatprep.subr.mxu0 0.0
  %121 = vmatpush1.msra.mxu0 0.0
  %122 = vmatprep.subr.mxu0 0.0
  %123 = vmatpush1.msra.mxu0 0.0
  %124 = vmatprep.subr.mxu0 0.0
  %125 = vmatpush1.msra.mxu0 0.0
  %126 = vmatprep.subr.mxu0 0.0
  %127 = vmatpush1.msra.mxu0 0.0
  %128 = vmatprep.subr.mxu0 0.0
  %129 = vmatpush1.msra.mxu0 0.0
  %130 = vmatprep.subr.mxu0 0.0
  %131 = vmatpush1.msra.mxu0 0.0
  %132 = vmatprep.subr.mxu0 0.0
  %133 = vmatpush1.msra.mxu0 0.0
  %134 = vmatprep.subr.mxu0 0.0
  %135 = vmatpush1.msra.mxu0 0.0
  %136 = vmatprep.subr.mxu0 0.0
  %137 = vmatpush1.msra.mxu0 0.0
  %138 = vmatprep.subr.mxu0 0.0
  %139 = vmatpush1.msra.mxu0 0.0
  %140 = vmatprep.subr.mxu0 0.0
  %141 = vmatpush1.msra.mxu0 0.0
  %142 = vmatprep.subr.mxu0 0.0
  %143 = vmatpush1.msra.mxu0 0.0
  %144 = vmatprep.subr.mxu0 0.0
  %145 = vmatpush1.msra.mxu0 0.0
  %146 = vmatprep.subr.mxu0 0.0
  %147 = vmatpush1.msra.mxu0 0.0
  %148 = vmatprep.subr.mxu0 0.0
  %149 = vmatpush1.msra.mxu0 0.0
  %150 = vmatprep.subr.mxu0 0.0
  %151 = vmatpush1.msra.mxu0 0.0
  %152 = vmatprep.subr.mxu0 0.0
  %153 = vmatpush1.msra.mxu0 0.0
  %154 = vmatprep.subr.mxu0 0.0
  %155 = vmatpush1.msra.mxu0 0.0
  %156 = vmatprep.subr.mxu0 0.0
  %157 = vmatpush1.msra.mxu0 0.0
  %158 = vmatprep.mubr.f32.mxu0 0.0
  %159 = vmatmul.mubr.f32.gmra.mrb[0].mxu0 %v47
  %v160 = vpop.f32.mrb[0].mxu0
  %v161 = vadd.f32 0.0, %v160
  %v162 = vpop.f32.mrb[0].mxu0
  %163 = vmatprep.mubr.f32.mxu0 0.0
  %164 = vmatmul.mubr.f32.gmra.mrb[0].mxu0 %v50
  %v165 = vpop.f32.mrb[0].mxu0
  %v166 = vadd.f32 0.0, %v165
  %v167 = vpop.f32.mrb[0].mxu0
  %168 = vmatprep.mubr.f32.mxu0 0.0
  %169 = vmatmul.mubr.f32.gmra.mrb[0].mxu0 %v53
  %v170 = vpop.f32.mrb[0].mxu0
  %v171 = vadd.f32 0.0, %v170
  %v172 = vpop.f32.mrb[0].mxu0
  %173 = vmatprep.mubr.f32.mxu0 0.0
  %174 = vmatmul.mubr.f32.gmra.mrb[0].mxu0 %v56
  %v175 = vpop.f32.mrb[0].mxu0
  %v176 = vadd.f32 0.0, %v175
  %v177 = vpop.f32.mrb[0].mxu0
  %178 = vmatprep.mubr.f32.mxu0 0.0
  %179 = vmatmul.mubr.f32.gmra.mrb[0].mxu0 %v59
  %v180 = vpop.f32.mrb[0].mxu0
  %v181 = vadd.f32 0.0, %v180
  %v182 = vpop.f32.mrb[0].mxu0
  %183 = vmatprep.mubr.f32.mxu0 0.0
  %184 = vmatmul.mubr.f32.gmra.mrb[0].mxu0 %v62
  %v185 = vpop.f32.mrb[0].mxu0
  %v186 = vadd.f32 0.0, %v185
  %v187 = vpop.f32.mrb[0].mxu0
  %188 = vmatprep.mubr.f32.mxu0 0.0
  %189 = vmatmul.mubr.f32.gmra.mrb[0].mxu0 %v65
  %v190 = vpop.f32.mrb[0].mxu0
  %v191 = vadd.f32 0.0, %v190
  %v192 = vpop.f32.mrb[0].mxu0
  %193 = vmatprep.mubr.f32.mxu0 0.0
  %194 = vmatmul.mubr.f32.gmra.mrb[0].mxu0 %v68
  %v195 = vpop.f32.mrb[0].mxu0
  %v196 = vadd.f32 0.0, %v195
  %v197 = vpop.f32.mrb[0].mxu0
  %198 = vmatprep.mubr.f32.mxu0 0.0
  %199 = vmatmul.mubr.f32.gmra.mrb[0].mxu0 %v71
  %v200 = vpop.f32.mrb[0].mxu0
  %v201 = vadd.f32 0.0, %v200
  %v202 = vpop.f32.mrb[0].mxu0
  %203 = vmatprep.mubr.f32.mxu0 0.0
  %204 = vmatmul.mubr.f32.gmra.mrb[0].mxu0 %v74
  %v205 = vpop.f32.mrb[0].mxu0
  %v206 = vadd.f32 0.0, %v205
  %v207 = vpop.f32.mrb[0].mxu0
  %208 = vmatprep.mubr.f32.mxu0 0.0
  %209 = vmatmul.mubr.f32.gmra.mrb[0].mxu0 %v77
  %v210 = vpop.f32.mrb[0].mxu0
  %v211 = vadd.f32 0.0, %v210
  %v212 = vpop.f32.mrb[0].mxu0
  %213 = vmatprep.mubr.f32.mxu0 0.0
  %214 = vmatmul.mubr.f32.gmra.mrb[0].mxu0 %v80
  %v215 = vpop.f32.mrb[0].mxu0
  %v216 = vadd.f32 0.0, %v215
  %v217 = vpop.f32.mrb[0].mxu0
  %218 = vmatprep.mubr.f32.mxu0 0.0
  %219 = vmatmul.mubr.f32.gmra.mrb[0].mxu0 %v83
  %v220 = vpop.f32.mrb[0].mxu0
  %v221 = vadd.f32 0.0, %v220
  %v222 = vpop.f32.mrb[0].mxu0
  %223 = vmatprep.mubr.f32.mxu0 0.0
  %224 = vmatmul.mubr.f32.gmra.mrb[0].mxu0 %v86
  %v225 = vpop.f32.mrb[0].mxu0
  %v226 = vadd.f32 0.0, %v225
  %v227 = vpop.f32.mrb[0].mxu0
  %228 = vmatprep.mubr.f32.mxu0 0.0
  %229 = vmatmul.mubr.f32.gmra.mrb[0].mxu0 %v89
  %v230 = vpop.f32.mrb[0].mxu0
  %v231 = vadd.f32 0.0, %v230
  %v232 = vpop.f32.mrb[0].mxu0
  %233 = vmatprep.mubr.f32.mxu0 0.0
  %234 = vmatmul.mubr.f32.gmra.mrb[0].mxu0 %v92
  %v235 = vpop.f32.mrb[0].mxu0
  %v236 = vadd.f32 0.0, %v235
  %v237 = vpop.f32.mrb[0].mxu0
  %238 = vdwg.mxu0
  %vm239 = vcmask 130048
  %v240 = vsel %vm239, %v161, 0.0
  %v241 = vsel %vm239, %v166, 0.0
  %v242 = vadd.f32 %v240, %v241
  %v243 = vsel %vm239, %v171, 0.0
  %v244 = vadd.f32 %v242, %v243
  %v245 = vsel %vm239, %v176, 0.0
  %v246 = vadd.f32 %v244, %v245
  %v247 = vsel %vm239, %v181, 0.0
  %v248 = vadd.f32 %v246, %v247
  %v249 = vsel %vm239, %v186, 0.0
  %v250 = vadd.f32 %v248, %v249
  %v251 = vsel %vm239, %v191, 0.0
  %v252 = vadd.f32 %v250, %v251
  %v253 = vsel %vm239, %v196, 0.0
  %v254 = vadd.f32 %v252, %v253
  %v255 = vsel %vm239, %v201, 0.0
  %v256 = vadd.f32 %v254, %v255
  %v257 = vsel %vm239, %v206, 0.0
  %v258 = vadd.f32 %v256, %v257
  %v259 = vsel %vm239, %v211, 0.0
  %v260 = vadd.f32 %v258, %v259
  %v261 = vsel %vm239, %v216, 0.0
  %v262 = vadd.f32 %v260, %v261
  %v263 = vsel %vm239, %v221, 0.0
  %v264 = vadd.f32 %v262, %v263
  %v265 = vsel %vm239, %v226, 0.0
  %v266 = vadd.f32 %v264, %v265
  %v267 = vsel %vm239, %v231, 0.0
  %v268 = vadd.f32 %v266, %v267
  %v269 = vsel %vm239, %v236, 0.0
  %v270 = vadd.f32 %v268, %v269
  %v271 = vrot.slane %v270, 4
  %v272 = vadd.f32 %v270, %v271
  %v273 = vrot.slane %v272, 2
  %v274 = vadd.f32 %v272, %v273
  %v275 = vrot.slane %v274, 1
  %v276 = vadd.f32 %v274, %v275
  %v277 = vld [vmem:[%s4] sm:$0xff]
  %v278 = vld [vmem:[%s4 + $0x8] sm:$0xff]
  %v280 = vsel %vm239, %v276, 0
  %282 = vmatprep.subr.mxu0 0.0
  %283 = vmatpush1.msra.mxu0 %v277
  %284 = vmatprep.subr.mxu0 0.0
  %285 = vmatpush1.msra.mxu0 %v278
  %286 = vmatprep.subr.mxu0 0.0
  %287 = vmatpush1.msra.mxu0 0.0
  %288 = vmatprep.subr.mxu0 0.0
  %289 = vmatpush1.msra.mxu0 0.0
  %290 = vmatprep.subr.mxu0 0.0
  %291 = vmatpush1.msra.mxu0 0.0
  %292 = vmatprep.subr.mxu0 0.0
  %293 = vmatpush1.msra.mxu0 0.0
  %294 = vmatprep.subr.mxu0 0.0
  %295 = vmatpush1.msra.mxu0 0.0
  %296 = vmatprep.subr.mxu0 0.0
  %297 = vmatpush1.msra.mxu0 0.0
  %298 = vmatprep.subr.mxu0 0.0
  %299 = vmatpush1.msra.mxu0 0.0
  %300 = vmatprep.subr.mxu0 0.0
  %301 = vmatpush1.msra.mxu0 0.0
  %302 = vmatprep.subr.mxu0 0.0
  %303 = vmatpush1.msra.mxu0 0.0
  %304 = vmatprep.subr.mxu0 0.0
  %305 = vmatpush1.msra.mxu0 0.0
  %306 = vmatprep.subr.mxu0 0.0
  %307 = vmatpush1.msra.mxu0 0.0
  %308 = vmatprep.subr.mxu0 0.0
  %309 = vmatpush1.msra.mxu0 0.0
  %310 = vmatprep.subr.mxu0 0.0
  %311 = vmatpush1.msra.mxu0 0.0
  %312 = vmatprep.subr.mxu0 0.0
  %313 = vmatpush1.msra.mxu0 0.0
  %314 = vmatprep.subr.mxu0 0.0
  %315 = vmatpush1.msra.mxu0 0.0
  %316 = vmatprep.subr.mxu0 0.0
  %317 = vmatpush1.msra.mxu0 0.0
  %318 = vmatprep.subr.mxu0 0.0
  %319 = vmatpush1.msra.mxu0 0.0
  %320 = vmatprep.subr.mxu0 0.0
  %321 = vmatpush1.msra.mxu0 0.0
  %322 = vmatprep.subr.mxu0 0.0
  %323 = vmatpush1.msra.mxu0 0.0
  %324 = vmatprep.subr.mxu0 0.0
  %325 = vmatpush1.msra.mxu0 0.0
  %326 = vmatprep.subr.mxu0 0.0
  %327 = vmatpush1.msra.mxu0 0.0
  %328 = vmatprep.subr.mxu0 0.0
  %329 = vmatpush1.msra.mxu0 0.0
  %330 = vmatprep.subr.mxu0 0.0
  %331 = vmatpush1.msra.mxu0 0.0
  %332 = vmatprep.subr.mxu0 0.0
  %333 = vmatpush1.msra.mxu0 0.0
  %334 = vmatprep.subr.mxu0 0.0
  %335 = vmatpush1.msra.mxu0 0.0
  %336 = vmatprep.subr.mxu0 0.0
  %337 = vmatpush1.msra.mxu0 0.0
  %338 = vmatprep.subr.mxu0 0.0
  %339 = vmatpush1.msra.mxu0 0.0
  %340 = vmatprep.subr.mxu0 0.0
  %341 = vmatpush1.msra.mxu0 0.0
  %342 = vmatprep.subr.mxu0 0.0
  %343 = vmatpush1.msra.mxu0 0.0
  %344 = vmatprep.subr.mxu0 0.0
  %345 = vmatpush1.msra.mxu0 0.0
  %346 = vmatprep.mubr.f32.mxu0 0.0
  %347 = vmatmul.mubr.f32.gmra.mrb[0].mxu0 %v280
  %v348 = vpop.f32.mrb[0].mxu0
  %v349 = vadd.f32 0.0, %v348
  %v350 = vpop.f32.mrb[0].mxu0
  %351 = vdwg.mxu0
  %v352 = vmul.f32 %v349, 0.001953125
  %v353 = vlaneseq
  %v354 = vshrl.u32 %v353, 7
  %v355 = vsub.s32 0, %v354
  %v356 = vrot.slane %v352, %v355
  %v357 = vsub.f32 %v161, %v356
  %v358 = vsub.f32 %v166, %v356
  %v359 = vsub.f32 %v171, %v356
  %v360 = vsub.f32 %v176, %v356
  %v361 = vsub.f32 %v181, %v356
  %v362 = vsub.f32 %v186, %v356
  %v363 = vsub.f32 %v191, %v356
  %v364 = vsub.f32 %v196, %v356
  %v365 = vsub.f32 %v201, %v356
  %v366 = vsub.f32 %v206, %v356
  %v367 = vsub.f32 %v211, %v356
  %v368 = vsub.f32 %v216, %v356
  %v369 = vsub.f32 %v221, %v356
  %v370 = vsub.f32 %v226, %v356
  %v371 = vsub.f32 %v231, %v356
  %v372 = vsub.f32 %v236, %v356
  %v373 = vmul.f32 %v357, %v357
  %v374 = vmul.f32 %v358, %v358
  %v375 = vmul.f32 %v359, %v359
  %v376 = vmul.f32 %v360, %v360
  %v377 = vmul.f32 %v361, %v361
  %v378 = vmul.f32 %v362, %v362
  %v379 = vmul.f32 %v363, %v363
  %v380 = vmul.f32 %v364, %v364
  %v381 = vmul.f32 %v365, %v365
  %v382 = vmul.f32 %v366, %v366
  %v383 = vmul.f32 %v367, %v367
  %v384 = vmul.f32 %v368, %v368
  %v385 = vmul.f32 %v369, %v369
  %v386 = vmul.f32 %v370, %v370
  %v387 = vmul.f32 %v371, %v371
  %v388 = vmul.f32 %v372, %v372
  %v389 = vsel %vm239, %v373, 0.0
  %v390 = vsel %vm239, %v374, 0.0
  %v391 = vadd.f32 %v389, %v390
  %v392 = vsel %vm239, %v375, 0.0
  %v393 = vadd.f32 %v391, %v392
  %v394 = vsel %vm239, %v376, 0.0
  %v395 = vadd.f32 %v393, %v394
  %v396 = vsel %vm239, %v377, 0.0
  %v397 = vadd.f32 %v395, %v396
  %v398 = vsel %vm239, %v378, 0.0
  %v399 = vadd.f32 %v397, %v398
  %v400 = vsel %vm239, %v379, 0.0
  %v401 = vadd.f32 %v399, %v400
  %v402 = vsel %vm239, %v380, 0.0
  %v403 = vadd.f32 %v401, %v402
  %v404 = vsel %vm239, %v381, 0.0
  %v405 = vadd.f32 %v403, %v404
  %v406 = vsel %vm239, %v382, 0.0
  %v407 = vadd.f32 %v405, %v406
  %v408 = vsel %vm239, %v383, 0.0
  %v409 = vadd.f32 %v407, %v408
  %v410 = vsel %vm239, %v384, 0.0
  %v411 = vadd.f32 %v409, %v410
  %v412 = vsel %vm239, %v385, 0.0
  %v413 = vadd.f32 %v411, %v412
  %v414 = vsel %vm239, %v386, 0.0
  %v415 = vadd.f32 %v413, %v414
  %v416 = vsel %vm239, %v387, 0.0
  %v417 = vadd.f32 %v415, %v416
  %v418 = vsel %vm239, %v388, 0.0
  %v419 = vadd.f32 %v417, %v418
  %v420 = vrot.slane %v419, 4
  %v421 = vadd.f32 %v419, %v420
  %v422 = vrot.slane %v421, 2
  %v423 = vadd.f32 %v421, %v422
  %v424 = vrot.slane %v423, 1
  %v425 = vadd.f32 %v423, %v424
  %v427 = vsel %vm239, %v425, 0
  %429 = vmatprep.subr.mxu0 0.0
  %430 = vmatpush1.msra.mxu0 %v277
  %431 = vmatprep.subr.mxu0 0.0
  %432 = vmatpush1.msra.mxu0 %v278
  %433 = vmatprep.subr.mxu0 0.0
  %434 = vmatpush1.msra.mxu0 0.0
  %435 = vmatprep.subr.mxu0 0.0
  %436 = vmatpush1.msra.mxu0 0.0
  %437 = vmatprep.subr.mxu0 0.0
  %438 = vmatpush1.msra.mxu0 0.0
  %439 = vmatprep.subr.mxu0 0.0
  %440 = vmatpush1.msra.mxu0 0.0
  %441 = vmatprep.subr.mxu0 0.0
  %442 = vmatpush1.msra.mxu0 0.0
  %443 = vmatprep.subr.mxu0 0.0
  %444 = vmatpush1.msra.mxu0 0.0
  %445 = vmatprep.subr.mxu0 0.0
  %446 = vmatpush1.msra.mxu0 0.0
  %447 = vmatprep.subr.mxu0 0.0
  %448 = vmatpush1.msra.mxu0 0.0
  %449 = vmatprep.subr.mxu0 0.0
  %450 = vmatpush1.msra.mxu0 0.0
  %451 = vmatprep.subr.mxu0 0.0
  %452 = vmatpush1.msra.mxu0 0.0
  %453 = vmatprep.subr.mxu0 0.0
  %454 = vmatpush1.msra.mxu0 0.0
  %455 = vmatprep.subr.mxu0 0.0
  %456 = vmatpush1.msra.mxu0 0.0
  %457 = vmatprep.subr.mxu0 0.0
  %458 = vmatpush1.msra.mxu0 0.0
  %459 = vmatprep.subr.mxu0 0.0
  %460 = vmatpush1.msra.mxu0 0.0
  %461 = vmatprep.subr.mxu0 0.0
  %462 = vmatpush1.msra.mxu0 0.0
  %463 = vmatprep.subr.mxu0 0.0
  %464 = vmatpush1.msra.mxu0 0.0
  %465 = vmatprep.subr.mxu0 0.0
  %466 = vmatpush1.msra.mxu0 0.0
  %467 = vmatprep.subr.mxu0 0.0
  %468 = vmatpush1.msra.mxu0 0.0
  %469 = vmatprep.subr.mxu0 0.0
  %470 = vmatpush1.msra.mxu0 0.0
  %471 = vmatprep.subr.mxu0 0.0
  %472 = vmatpush1.msra.mxu0 0.0
  %473 = vmatprep.subr.mxu0 0.0
  %474 = vmatpush1.msra.mxu0 0.0
  %475 = vmatprep.subr.mxu0 0.0
  %476 = vmatpush1.msra.mxu0 0.0
  %477 = vmatprep.subr.mxu0 0.0
  %478 = vmatpush1.msra.mxu0 0.0
  %479 = vmatprep.subr.mxu0 0.0
  %480 = vmatpush1.msra.mxu0 0.0
  %481 = vmatprep.subr.mxu0 0.0
  %482 = vmatpush1.msra.mxu0 0.0
  %483 = vmatprep.subr.mxu0 0.0
  %484 = vmatpush1.msra.mxu0 0.0
  %485 = vmatprep.subr.mxu0 0.0
  %486 = vmatpush1.msra.mxu0 0.0
  %487 = vmatprep.subr.mxu0 0.0
  %488 = vmatpush1.msra.mxu0 0.0
  %489 = vmatprep.subr.mxu0 0.0
  %490 = vmatpush1.msra.mxu0 0.0
  %491 = vmatprep.subr.mxu0 0.0
  %492 = vmatpush1.msra.mxu0 0.0
  %493 = vmatprep.mubr.f32.mxu0 0.0
  %494 = vmatmul.mubr.f32.gmra.mrb[0].mxu0 %v427
  %v495 = vpop.f32.mrb[0].mxu0
  %v496 = vadd.f32 0.0, %v495
  %v497 = vpop.f32.mrb[0].mxu0
  %498 = vdwg.mxu0
  %v499 = vmul.f32 %v496, 0.001953125
  %v500 = vadd.f32 %v499, 1e-05
  %v501 = vrsqrt.pop %v500
  %v502 = vlaneseq
  %v503 = vshrl.u32 %v502, 7
  %v504 = vsub.s32 0, %v503
  %v505 = vrot.slane %v501, %v504
  %v506 = vmul.f32 %v357, %v505
  %v507 = vmul.f32 %v358, %v505
  %v508 = vmul.f32 %v359, %v505
  %v509 = vmul.f32 %v360, %v505
  %v510 = vmul.f32 %v361, %v505
  %v511 = vmul.f32 %v362, %v505
  %v512 = vmul.f32 %v363, %v505
  %v513 = vmul.f32 %v364, %v505
  %v514 = vmul.f32 %v365, %v505
  %v515 = vmul.f32 %v366, %v505
  %v516 = vmul.f32 %v367, %v505
  %v517 = vmul.f32 %v368, %v505
  %v518 = vmul.f32 %v369, %v505
  %v519 = vmul.f32 %v370, %v505
  %v520 = vmul.f32 %v371, %v505
  %v521 = vmul.f32 %v372, %v505
  %v522 = vld [vmem:[%s2] sm:$0x1]
  %v524 = vlaneseq
  %v525 = vshrl.u32 %v524, 7
  %v526 = vsub.s32 0, %v525
  %v527 = vrot.slane %v522, %v526
  %v529 = vmul.f32 %v506, %v527
  %v530 = vmul.f32 %v507, %v527
  %v531 = vmul.f32 %v508, %v527
  %v532 = vmul.f32 %v509, %v527
  %v533 = vmul.f32 %v510, %v527
  %v534 = vmul.f32 %v511, %v527
  %v535 = vmul.f32 %v512, %v527
  %v536 = vmul.f32 %v513, %v527
  %v537 = vmul.f32 %v514, %v527
  %v538 = vmul.f32 %v515, %v527
  %v539 = vmul.f32 %v516, %v527
  %v540 = vmul.f32 %v517, %v527
  %v541 = vmul.f32 %v518, %v527
  %v542 = vmul.f32 %v519, %v527
  %v543 = vmul.f32 %v520, %v527
  %v544 = vmul.f32 %v521, %v527
  %v545 = vld [vmem:[%s3] sm:$0x1]
  %v547 = vlaneseq
  %v548 = vshrl.u32 %v547, 7
  %v549 = vsub.s32 0, %v548
  %v550 = vrot.slane %v545, %v549
  %v552 = vadd.f32 %v529, %v550
  %v553 = vadd.f32 %v530, %v550
  %v554 = vadd.f32 %v531, %v550
  %v555 = vadd.f32 %v532, %v550
  %v556 = vadd.f32 %v533, %v550
  %v557 = vadd.f32 %v534, %v550
  %v558 = vadd.f32 %v535, %v550
  %v559 = vadd.f32 %v536, %v550
  %v560 = vadd.f32 %v537, %v550
  %v561 = vadd.f32 %v538, %v550
  %v562 = vadd.f32 %v539, %v550
  %v563 = vadd.f32 %v540, %v550
  %v564 = vadd.f32 %v541, %v550
  %v565 = vadd.f32 %v542, %v550
  %v566 = vadd.f32 %v543, %v550
  %v567 = vadd.f32 %v544, %v550
  %vm568 = vcmp.gt.f32.partialorder %v552, 0.0
  %vm569 = vcmp.gt.f32.partialorder %v553, 0.0
  %vm570 = vcmp.gt.f32.partialorder %v554, 0.0
  %vm571 = vcmp.gt.f32.partialorder %v555, 0.0
  %vm572 = vcmp.gt.f32.partialorder %v556, 0.0
  %vm573 = vcmp.gt.f32.partialorder %v557, 0.0
  %vm574 = vcmp.gt.f32.partialorder %v558, 0.0
  %vm575 = vcmp.gt.f32.partialorder %v559, 0.0
  %vm576 = vcmp.gt.f32.partialorder %v560, 0.0
  %vm577 = vcmp.gt.f32.partialorder %v561, 0.0
  %vm578 = vcmp.gt.f32.partialorder %v562, 0.0
  %vm579 = vcmp.gt.f32.partialorder %v563, 0.0
  %vm580 = vcmp.gt.f32.partialorder %v564, 0.0
  %vm581 = vcmp.gt.f32.partialorder %v565, 0.0
  %vm582 = vcmp.gt.f32.partialorder %v566, 0.0
  %vm583 = vcmp.gt.f32.partialorder %v567, 0.0
  %v584 = vmul.f32 %v552, 0.01
  %v585 = vmul.f32 %v553, 0.01
  %v586 = vmul.f32 %v554, 0.01
  %v587 = vmul.f32 %v555, 0.01
  %v588 = vmul.f32 %v556, 0.01
  %v589 = vmul.f32 %v557, 0.01
  %v590 = vmul.f32 %v558, 0.01
  %v591 = vmul.f32 %v559, 0.01
  %v592 = vmul.f32 %v560, 0.01
  %v593 = vmul.f32 %v561, 0.01
  %v594 = vmul.f32 %v562, 0.01
  %v595 = vmul.f32 %v563, 0.01
  %v596 = vmul.f32 %v564, 0.01
  %v597 = vmul.f32 %v565, 0.01
  %v598 = vmul.f32 %v566, 0.01
  %v599 = vmul.f32 %v567, 0.01
  %v600 = vsel %vm568, %v552, %v584
  %v601 = vsel %vm569, %v553, %v585
  %v602 = vsel %vm570, %v554, %v586
  %v603 = vsel %vm571, %v555, %v587
  %v604 = vsel %vm572, %v556, %v588
  %v605 = vsel %vm573, %v557, %v589
  %v606 = vsel %vm574, %v558, %v590
  %v607 = vsel %vm575, %v559, %v591
  %v608 = vsel %vm576, %v560, %v592
  %v609 = vsel %vm577, %v561, %v593
  %v610 = vsel %vm578, %v562, %v594
  %v611 = vsel %vm579, %v563, %v595
  %v612 = vsel %vm580, %v564, %v596
  %v613 = vsel %vm581, %v565, %v597
  %v614 = vsel %vm582, %v566, %v598
  %v615 = vsel %vm583, %v567, %v599
  %616 = vst.msk [vmem:[%s5] sm:$0xff] %vm239, %v600
  %617 = vst.msk [vmem:[%s5 + $0x8] sm:$0xff] %vm239, %v601
  %618 = vst.msk [vmem:[%s5 + $0x10] sm:$0xff] %vm239, %v602
  %619 = vst.msk [vmem:[%s5 + $0x18] sm:$0xff] %vm239, %v603
  %620 = vst.msk [vmem:[%s5 + $0x20] sm:$0xff] %vm239, %v604
  %621 = vst.msk [vmem:[%s5 + $0x28] sm:$0xff] %vm239, %v605
  %622 = vst.msk [vmem:[%s5 + $0x30] sm:$0xff] %vm239, %v606
  %623 = vst.msk [vmem:[%s5 + $0x38] sm:$0xff] %vm239, %v607
  %624 = vst.msk [vmem:[%s5 + $0x40] sm:$0xff] %vm239, %v608
  %625 = vst.msk [vmem:[%s5 + $0x48] sm:$0xff] %vm239, %v609
  %626 = vst.msk [vmem:[%s5 + $0x50] sm:$0xff] %vm239, %v610
  %627 = vst.msk [vmem:[%s5 + $0x58] sm:$0xff] %vm239, %v611
  %628 = vst.msk [vmem:[%s5 + $0x60] sm:$0xff] %vm239, %v612
  %629 = vst.msk [vmem:[%s5 + $0x68] sm:$0xff] %vm239, %v613
  %630 = vst.msk [vmem:[%s5 + $0x70] sm:$0xff] %vm239, %v614
  %631 = vst.msk [vmem:[%s5 + $0x78] sm:$0xff] %vm239, %v615
  // Predicated region
  $region22: #{rcvae_forward.24} parent=0 // pred_check
    _
  $region23: #{rcvae_forward.24} parent=0 // pred_check_branch
    %633 = sbr.rel (0) target = $region25
  $region24: #{rcvae_forward.24} parent=0 // pred_region
    _
  $region25: #{rcvae_forward.24} parent=0 // pred_fallthru
    _
  // Predicated region
  $region26: #{rcvae_forward.24} parent=0 // pred_check
    _
  $region27: #{rcvae_forward.24} parent=0 // pred_check_branch
    %635 = sbr.rel (0) target = $region29
  $region28: #{rcvae_forward.24} parent=0 // pred_region
    _
  $region29: #{rcvae_forward.24} parent=0 // pred_fallthru
    _

// kernel: rcvae_forward.25
$region0: #{rcvae_forward.25}
  #allocation0 [shape = 'u32[]', space=smem, size = 0x4, offset = 0x4, fixed_abs, tag = 'smem constant byte address 0x4 - core index']
  #allocation1 [shape = 'u32[144,128]{1,0:T(1,128)}', space=vmem, size = 0x12000, scoped, tag = 'internal scratch']
  %s0 = inlined_call_operand.vmem [shape: f32[512,40], index: 0, kind: input, shape index: {}]
  %s1 = inlined_call_operand.vmem [shape: f32[40,12], index: 1, kind: input, shape index: {}]
  %s2 = inlined_call_operand.vmem [shape: f32[512,12], index: 2, kind: output, shape index: {}]
  %s3 = sld [smem:[#allocation0]]
  $region18: #{rcvae_forward.25} parent=0
    _
  %s5 = ssub.s32 1, %s3
  %s6 = scalar_select 0, %s5, %s3
  // Predicated region
  $region2: #{rcvae_forward.25} parent=0 // pred_check
    _
  $region3: #{rcvae_forward.25} parent=0 // pred_check_branch
    %8 = sbr.rel (0) target = $region5
  $region4: #{rcvae_forward.25} parent=0 // pred_region
    _
  $region5: #{rcvae_forward.25} parent=0 // pred_fallthru
    _
  // Predicated region
  $region6: #{rcvae_forward.25} parent=0 // pred_check
    _
  $region7: #{rcvae_forward.25} parent=0 // pred_check_branch
    %10 = sbr.rel (0) target = $region9
  $region8: #{rcvae_forward.25} parent=0 // pred_region
    _
  $region9: #{rcvae_forward.25} parent=0 // pred_fallthru
    _
  %v11 = vld [vmem:[%s0] sm:$0xff]
  %v12 = vld [vmem:[%s0 + $0x8] sm:$0xff]
  %v13 = vld [vmem:[%s0 + $0x10] sm:$0xff]
  %v14 = vld [vmem:[%s0 + $0x18] sm:$0xff]
  %v15 = vld [vmem:[%s0 + $0x20] sm:$0xff]
  %v16 = vld [vmem:[%s0 + $0x28] sm:$0xff]
  %v17 = vld [vmem:[%s0 + $0x30] sm:$0xff]
  %v18 = vld [vmem:[%s0 + $0x38] sm:$0xff]
  %v19 = vld [vmem:[%s0 + $0x40] sm:$0xff]
  %v20 = vld [vmem:[%s0 + $0x48] sm:$0xff]
  %v21 = vld [vmem:[%s0 + $0x50] sm:$0xff]
  %v22 = vld [vmem:[%s0 + $0x58] sm:$0xff]
  %v23 = vld [vmem:[%s0 + $0x60] sm:$0xff]
  %v24 = vld [vmem:[%s0 + $0x68] sm:$0xff]
  %v25 = vld [vmem:[%s0 + $0x70] sm:$0xff]
  %v26 = vld [vmem:[%s0 + $0x78] sm:$0xff]
  %v27 = vld [vmem:[%s0 + $0x80] sm:$0xff]
  %v28 = vld [vmem:[%s0 + $0x88] sm:$0xff]
  %v29 = vld [vmem:[%s0 + $0x90] sm:$0xff]
  %v30 = vld [vmem:[%s0 + $0x98] sm:$0xff]
  %v31 = vld [vmem:[%s0 + $0xa0] sm:$0xff]
  %v32 = vld [vmem:[%s0 + $0xa8] sm:$0xff]
  %v33 = vld [vmem:[%s0 + $0xb0] sm:$0xff]
  %v34 = vld [vmem:[%s0 + $0xb8] sm:$0xff]
  %v35 = vld [vmem:[%s0 + $0xc0] sm:$0xff]
  %v36 = vld [vmem:[%s0 + $0xc8] sm:$0xff]
  %v37 = vld [vmem:[%s0 + $0xd0] sm:$0xff]
  %v38 = vld [vmem:[%s0 + $0xd8] sm:$0xff]
  %v39 = vld [vmem:[%s0 + $0xe0] sm:$0xff]
  %v40 = vld [vmem:[%s0 + $0xe8] sm:$0xff]
  %v41 = vld [vmem:[%s0 + $0xf0] sm:$0xff]
  %v42 = vld [vmem:[%s0 + $0xf8] sm:$0xff]
  %v43 = vld [vmem:[%s0 + $0x100] sm:$0xff]
  %v44 = vld [vmem:[%s0 + $0x108] sm:$0xff]
  %v45 = vld [vmem:[%s0 + $0x110] sm:$0xff]
  %v46 = vld [vmem:[%s0 + $0x118] sm:$0xff]
  %v47 = vld [vmem:[%s0 + $0x120] sm:$0xff]
  %v48 = vld [vmem:[%s0 + $0x128] sm:$0xff]
  %v49 = vld [vmem:[%s0 + $0x130] sm:$0xff]
  %v50 = vld [vmem:[%s0 + $0x138] sm:$0xff]
  %v51 = vld [vmem:[%s0 + $0x140] sm:$0xff]
  %v52 = vld [vmem:[%s0 + $0x148] sm:$0xff]
  %v53 = vld [vmem:[%s0 + $0x150] sm:$0xff]
  %v54 = vld [vmem:[%s0 + $0x158] sm:$0xff]
  %v55 = vld [vmem:[%s0 + $0x160] sm:$0xff]
  %v56 = vld [vmem:[%s0 + $0x168] sm:$0xff]
  %v57 = vld [vmem:[%s0 + $0x170] sm:$0xff]
  %v58 = vld [vmem:[%s0 + $0x178] sm:$0xff]
  %v59 = vld [vmem:[%s0 + $0x180] sm:$0xff]
  %v60 = vld [vmem:[%s0 + $0x188] sm:$0xff]
  %v61 = vld [vmem:[%s0 + $0x190] sm:$0xff]
  %v62 = vld [vmem:[%s0 + $0x198] sm:$0xff]
  %v63 = vld [vmem:[%s0 + $0x1a0] sm:$0xff]
  %v64 = vld [vmem:[%s0 + $0x1a8] sm:$0xff]
  %v65 = vld [vmem:[%s0 + $0x1b0] sm:$0xff]
  %v66 = vld [vmem:[%s0 + $0x1b8] sm:$0xff]
  %v67 = vld [vmem:[%s0 + $0x1c0] sm:$0xff]
  %v68 = vld [vmem:[%s0 + $0x1c8] sm:$0xff]
  %v69 = vld [vmem:[%s0 + $0x1d0] sm:$0xff]
  %v70 = vld [vmem:[%s0 + $0x1d8] sm:$0xff]
  %v71 = vld [vmem:[%s0 + $0x1e0] sm:$0xff]
  %v72 = vld [vmem:[%s0 + $0x1e8] sm:$0xff]
  %v73 = vld [vmem:[%s0 + $0x1f0] sm:$0xff]
  %v74 = vld [vmem:[%s0 + $0x1f8] sm:$0xff]
  %v75 = vld [vmem:[%s1] sm:$0xff]
  %v76 = vld [vmem:[%s1 + $0x8] sm:$0xff]
  %v77 = vld [vmem:[%s1 + $0x10] sm:$0xff]
  %v78 = vld [vmem:[%s1 + $0x18] sm:$0xff]
  %v79 = vld [vmem:[%s1 + $0x20] sm:$0xff]
  %vm80 = vcmask 326656
  %v82 = vsel %vm80, %v11, 0
  %v85 = vsel %vm80, %v12, 0
  %v88 = vsel %vm80, %v13, 0
  %v91 = vsel %vm80, %v14, 0
  %v94 = vsel %vm80, %v15, 0
  %v97 = vsel %vm80, %v16, 0
  %v100 = vsel %vm80, %v17, 0
  %v103 = vsel %vm80, %v18, 0
  %v106 = vsel %vm80, %v19, 0
  %v109 = vsel %vm80, %v20, 0
  %v112 = vsel %vm80, %v21, 0
  %v115 = vsel %vm80, %v22, 0
  %v118 = vsel %vm80, %v23, 0
  %v121 = vsel %vm80, %v24, 0
  %v124 = vsel %vm80, %v25, 0
  %v127 = vsel %vm80, %v26, 0
  %v130 = vsel %vm80, %v27, 0
  %v133 = vsel %vm80, %v28, 0
  %v136 = vsel %vm80, %v29, 0
  %v139 = vsel %vm80, %v30, 0
  %v142 = vsel %vm80, %v31, 0
  %v145 = vsel %vm80, %v32, 0
  %v148 = vsel %vm80, %v33, 0
  %v151 = vsel %vm80, %v34, 0
  %v154 = vsel %vm80, %v35, 0
  %v157 = vsel %vm80, %v36, 0
  %v160 = vsel %vm80, %v37, 0
  %v163 = vsel %vm80, %v38, 0
  %v166 = vsel %vm80, %v39, 0
  %v169 = vsel %vm80, %v40, 0
  %v172 = vsel %vm80, %v41, 0
  %v175 = vsel %vm80, %v42, 0
  %v178 = vsel %vm80, %v43, 0
  %v181 = vsel %vm80, %v44, 0
  %v184 = vsel %vm80, %v45, 0
  %v187 = vsel %vm80, %v46, 0
  %v190 = vsel %vm80, %v47, 0
  %v193 = vsel %vm80, %v48, 0
  %v196 = vsel %vm80, %v49, 0
  %v199 = vsel %vm80, %v50, 0
  %v202 = vsel %vm80, %v51, 0
  %v205 = vsel %vm80, %v52, 0
  %v208 = vsel %vm80, %v53, 0
  %v211 = vsel %vm80, %v54, 0
  %v214 = vsel %vm80, %v55, 0
  %v217 = vsel %vm80, %v56, 0
  %v220 = vsel %vm80, %v57, 0
  %v223 = vsel %vm80, %v58, 0
  %v226 = vsel %vm80, %v59, 0
  %v229 = vsel %vm80, %v60, 0
  %v232 = vsel %vm80, %v61, 0
  %v235 = vsel %vm80, %v62, 0
  %v238 = vsel %vm80, %v63, 0
  %v241 = vsel %vm80, %v64, 0
  %v244 = vsel %vm80, %v65, 0
  %v247 = vsel %vm80, %v66, 0
  %v250 = vsel %vm80, %v67, 0
  %v253 = vsel %vm80, %v68, 0
  %v256 = vsel %vm80, %v69, 0
  %v259 = vsel %vm80, %v70, 0
  %v262 = vsel %vm80, %v71, 0
  %v265 = vsel %vm80, %v72, 0
  %v268 = vsel %vm80, %v73, 0
  %v271 = vsel %vm80, %v74, 0
  %273 = vmatprep.subr.mxu0 0.0
  %274 = vmatpush1.msra.mxu0 %v75
  %275 = vmatprep.subr.mxu0 0.0
  %276 = vmatpush1.msra.mxu0 %v76
  %277 = vmatprep.subr.mxu0 0.0
  %278 = vmatpush1.msra.mxu0 %v77
  %279 = vmatprep.subr.mxu0 0.0
  %280 = vmatpush1.msra.mxu0 %v78
  %281 = vmatprep.subr.mxu0 0.0
  %282 = vmatpush1.msra.mxu0 %v79
  %283 = vmatprep.subr.mxu0 0.0
  %284 = vmatpush1.msra.mxu0 0.0
  %285 = vmatprep.subr.mxu0 0.0
  %286 = vmatpush1.msra.mxu0 0.0
  %287 = vmatprep.subr.mxu0 0.0
  %288 = vmatpush1.msra.mxu0 0.0
  %289 = vmatprep.subr.mxu0 0.0
  %290 = vmatpush1.msra.mxu0 0.0
  %291 = vmatprep.subr.mxu0 0.0
  %292 = vmatpush1.msra.mxu0 0.0
  %293 = vmatprep.subr.mxu0 0.0
  %294 = vmatpush1.msra.mxu0 0.0
  %295 = vmatprep.subr.mxu0 0.0
  %296 = vmatpush1.msra.mxu0 0.0
  %297 = vmatprep.subr.mxu0 0.0
  %298 = vmatpush1.msra.mxu0 0.0
  %299 = vmatprep.subr.mxu0 0.0
  %300 = vmatpush1.msra.mxu0 0.0
  %301 = vmatprep.subr.mxu0 0.0
  %302 = vmatpush1.msra.mxu0 0.0
  %303 = vmatprep.subr.mxu0 0.0
  %304 = vmatpush1.msra.mxu0 0.0
  %305 = vmatprep.subr.mxu0 0.0
  %306 = vmatpush1.msra.mxu0 0.0
  %307 = vmatprep.subr.mxu0 0.0
  %308 = vmatpush1.msra.mxu0 0.0
  %309 = vmatprep.subr.mxu0 0.0
  %310 = vmatpush1.msra.mxu0 0.0
  %311 = vmatprep.subr.mxu0 0.0
  %312 = vmatpush1.msra.mxu0 0.0
  %313 = vmatprep.subr.mxu0 0.0
  %314 = vmatpush1.msra.mxu0 0.0
  %315 = vmatprep.subr.mxu0 0.0
  %316 = vmatpush1.msra.mxu0 0.0
  %317 = vmatprep.subr.mxu0 0.0
  %318 = vmatpush1.msra.mxu0 0.0
  %319 = vmatprep.subr.mxu0 0.0
  %320 = vmatpush1.msra.mxu0 0.0
  %321 = vmatprep.subr.mxu0 0.0
  %322 = vmatpush1.msra.mxu0 0.0
  %323 = vmatprep.subr.mxu0 0.0
  %324 = vmatpush1.msra.mxu0 0.0
  %325 = vmatprep.subr.mxu0 0.0
  %326 = vmatpush1.msra.mxu0 0.0
  %327 = vmatprep.subr.mxu0 0.0
  %328 = vmatpush1.msra.mxu0 0.0
  %329 = vmatprep.subr.mxu0 0.0
  %330 = vmatpush1.msra.mxu0 0.0
  %331 = vmatprep.subr.mxu0 0.0
  %332 = vmatpush1.msra.mxu0 0.0
  %333 = vmatprep.subr.mxu0 0.0
  %334 = vmatpush1.msra.mxu0 0.0
  %335 = vmatprep.subr.mxu0 0.0
  %336 = vmatpush1.msra.mxu0 0.0
  %337 = vmatprep.mubr.f32.mxu0 0.0
  %338 = vmatmul.mubr.f32.gmra.mrb[0].mxu0 %v82
  %v339 = vpop.f32.mrb[0].mxu0
  %v340 = vadd.f32 0.0, %v339
  %v341 = vpop.f32.mrb[0].mxu0
  %342 = vmatprep.mubr.f32.mxu0 0.0
  %343 = vmatmul.mubr.f32.gmra.mrb[0].mxu0 %v85
  %v344 = vpop.f32.mrb[0].mxu0
  %v345 = vadd.f32 0.0, %v344
  %v346 = vpop.f32.mrb[0].mxu0
  %347 = vmatprep.mubr.f32.mxu0 0.0
  %348 = vmatmul.mubr.f32.gmra.mrb[0].mxu0 %v88
  %v349 = vpop.f32.mrb[0].mxu0
  %v350 = vadd.f32 0.0, %v349
  %v351 = vpop.f32.mrb[0].mxu0
  %352 = vmatprep.mubr.f32.mxu0 0.0
  %353 = vmatmul.mubr.f32.gmra.mrb[0].mxu0 %v91
  %v354 = vpop.f32.mrb[0].mxu0
  %v355 = vadd.f32 0.0, %v354
  %v356 = vpop.f32.mrb[0].mxu0
  %357 = vmatprep.mubr.f32.mxu0 0.0
  %358 = vmatmul.mubr.f32.gmra.mrb[0].mxu0 %v94
  %v359 = vpop.f32.mrb[0].mxu0
  %v360 = vadd.f32 0.0, %v359
  %v361 = vpop.f32.mrb[0].mxu0
  %362 = vmatprep.mubr.f32.mxu0 0.0
  %363 = vmatmul.mubr.f32.gmra.mrb[0].mxu0 %v97
  %v364 = vpop.f32.mrb[0].mxu0
  %v365 = vadd.f32 0.0, %v364
  %v366 = vpop.f32.mrb[0].mxu0
  %367 = vmatprep.mubr.f32.mxu0 0.0
  %368 = vmatmul.mubr.f32.gmra.mrb[0].mxu0 %v100
  %v369 = vpop.f32.mrb[0].mxu0
  %v370 = vadd.f32 0.0, %v369
  %v371 = vpop.f32.mrb[0].mxu0
  %372 = vmatprep.mubr.f32.mxu0 0.0
  %373 = vmatmul.mubr.f32.gmra.mrb[0].mxu0 %v103
  %v374 = vpop.f32.mrb[0].mxu0
  %v375 = vadd.f32 0.0, %v374
  %v376 = vpop.f32.mrb[0].mxu0
  %377 = vmatprep.mubr.f32.mxu0 0.0
  %378 = vmatmul.mubr.f32.gmra.mrb[0].mxu0 %v106
  %v379 = vpop.f32.mrb[0].mxu0
  %v380 = vadd.f32 0.0, %v379
  %v381 = vpop.f32.mrb[0].mxu0
  %382 = vmatprep.mubr.f32.mxu0 0.0
  %383 = vmatmul.mubr.f32.gmra.mrb[0].mxu0 %v109
  %v384 = vpop.f32.mrb[0].mxu0
  %v385 = vadd.f32 0.0, %v384
  %v386 = vpop.f32.mrb[0].mxu0
  %387 = vmatprep.mubr.f32.mxu0 0.0
  %388 = vmatmul.mubr.f32.gmra.mrb[0].mxu0 %v112
  %v389 = vpop.f32.mrb[0].mxu0
  %v390 = vadd.f32 0.0, %v389
  %v391 = vpop.f32.mrb[0].mxu0
  %392 = vmatprep.mubr.f32.mxu0 0.0
  %393 = vmatmul.mubr.f32.gmra.mrb[0].mxu0 %v115
  %v394 = vpop.f32.mrb[0].mxu0
  %v395 = vadd.f32 0.0, %v394
  %v396 = vpop.f32.mrb[0].mxu0
  %397 = vmatprep.mubr.f32.mxu0 0.0
  %398 = vmatmul.mubr.f32.gmra.mrb[0].mxu0 %v118
  %v399 = vpop.f32.mrb[0].mxu0
  %v400 = vadd.f32 0.0, %v399
  %v401 = vpop.f32.mrb[0].mxu0
  %402 = vmatprep.mubr.f32.mxu0 0.0
  %403 = vmatmul.mubr.f32.gmra.mrb[0].mxu0 %v121
  %v404 = vpop.f32.mrb[0].mxu0
  %v405 = vadd.f32 0.0, %v404
  %v406 = vpop.f32.mrb[0].mxu0
  %407 = vmatprep.mubr.f32.mxu0 0.0
  %408 = vmatmul.mubr.f32.gmra.mrb[0].mxu0 %v124
  %v409 = vpop.f32.mrb[0].mxu0
  %v410 = vadd.f32 0.0, %v409
  %v411 = vpop.f32.mrb[0].mxu0
  %412 = vmatprep.mubr.f32.mxu0 0.0
  %413 = vmatmul.mubr.f32.gmra.mrb[0].mxu0 %v127
  %v414 = vpop.f32.mrb[0].mxu0
  %v415 = vadd.f32 0.0, %v414
  %v416 = vpop.f32.mrb[0].mxu0
  %417 = vmatprep.mubr.f32.mxu0 0.0
  %418 = vmatmul.mubr.f32.gmra.mrb[0].mxu0 %v130
  %v419 = vpop.f32.mrb[0].mxu0
  %v420 = vadd.f32 0.0, %v419
  %v421 = vpop.f32.mrb[0].mxu0
  %422 = vmatprep.mubr.f32.mxu0 0.0
  %423 = vmatmul.mubr.f32.gmra.mrb[0].mxu0 %v133
  %v424 = vpop.f32.mrb[0].mxu0
  %v425 = vadd.f32 0.0, %v424
  %v426 = vpop.f32.mrb[0].mxu0
  %427 = vmatprep.mubr.f32.mxu0 0.0
  %428 = vmatmul.mubr.f32.gmra.mrb[0].mxu0 %v136
  %v429 = vpop.f32.mrb[0].mxu0
  %v430 = vadd.f32 0.0, %v429
  %v431 = vpop.f32.mrb[0].mxu0
  %432 = vmatprep.mubr.f32.mxu0 0.0
  %433 = vmatmul.mubr.f32.gmra.mrb[0].mxu0 %v139
  %v434 = vpop.f32.mrb[0].mxu0
  %v435 = vadd.f32 0.0, %v434
  %v436 = vpop.f32.mrb[0].mxu0
  %437 = vmatprep.mubr.f32.mxu0 0.0
  %438 = vmatmul.mubr.f32.gmra.mrb[0].mxu0 %v142
  %v439 = vpop.f32.mrb[0].mxu0
  %v440 = vadd.f32 0.0, %v439
  %v441 = vpop.f32.mrb[0].mxu0
  %442 = vmatprep.mubr.f32.mxu0 0.0
  %443 = vmatmul.mubr.f32.gmra.mrb[0].mxu0 %v145
  %v444 = vpop.f32.mrb[0].mxu0
  %v445 = vadd.f32 0.0, %v444
  %v446 = vpop.f32.mrb[0].mxu0
  %447 = vmatprep.mubr.f32.mxu0 0.0
  %448 = vmatmul.mubr.f32.gmra.mrb[0].mxu0 %v148
  %v449 = vpop.f32.mrb[0].mxu0
  %v450 = vadd.f32 0.0, %v449
  %v451 = vpop.f32.mrb[0].mxu0
  %452 = vmatprep.mubr.f32.mxu0 0.0
  %453 = vmatmul.mubr.f32.gmra.mrb[0].mxu0 %v151
  %v454 = vpop.f32.mrb[0].mxu0
  %v455 = vadd.f32 0.0, %v454
  %v456 = vpop.f32.mrb[0].mxu0
  %457 = vmatprep.mubr.f32.mxu0 0.0
  %458 = vmatmul.mubr.f32.gmra.mrb[0].mxu0 %v154
  %v459 = vpop.f32.mrb[0].mxu0
  %v460 = vadd.f32 0.0, %v459
  %v461 = vpop.f32.mrb[0].mxu0
  %462 = vmatprep.mubr.f32.mxu0 0.0
  %463 = vmatmul.mubr.f32.gmra.mrb[0].mxu0 %v157
  %v464 = vpop.f32.mrb[0].mxu0
  %v465 = vadd.f32 0.0, %v464
  %v466 = vpop.f32.mrb[0].mxu0
  %467 = vmatprep.mubr.f32.mxu0 0.0
  %468 = vmatmul.mubr.f32.gmra.mrb[0].mxu0 %v160
  %v469 = vpop.f32.mrb[0].mxu0
  %v470 = vadd.f32 0.0, %v469
  %v471 = vpop.f32.mrb[0].mxu0
  %472 = vmatprep.mubr.f32.mxu0 0.0
  %473 = vmatmul.mubr.f32.gmra.mrb[0].mxu0 %v163
  %v474 = vpop.f32.mrb[0].mxu0
  %v475 = vadd.f32 0.0, %v474
  %v476 = vpop.f32.mrb[0].mxu0
  %477 = vmatprep.mubr.f32.mxu0 0.0
  %478 = vmatmul.mubr.f32.gmra.mrb[0].mxu0 %v166
  %v479 = vpop.f32.mrb[0].mxu0
  %v480 = vadd.f32 0.0, %v479
  %v481 = vpop.f32.mrb[0].mxu0
  %482 = vmatprep.mubr.f32.mxu0 0.0
  %483 = vmatmul.mubr.f32.gmra.mrb[0].mxu0 %v169
  %v484 = vpop.f32.mrb[0].mxu0
  %v485 = vadd.f32 0.0, %v484
  %v486 = vpop.f32.mrb[0].mxu0
  %487 = vmatprep.mubr.f32.mxu0 0.0
  %488 = vmatmul.mubr.f32.gmra.mrb[0].mxu0 %v172
  %v489 = vpop.f32.mrb[0].mxu0
  %v490 = vadd.f32 0.0, %v489
  %v491 = vpop.f32.mrb[0].mxu0
  %492 = vmatprep.mubr.f32.mxu0 0.0
  %493 = vmatmul.mubr.f32.gmra.mrb[0].mxu0 %v175
  %v494 = vpop.f32.mrb[0].mxu0
  %v495 = vadd.f32 0.0, %v494
  %v496 = vpop.f32.mrb[0].mxu0
  %497 = vmatprep.mubr.f32.mxu0 0.0
  %498 = vmatmul.mubr.f32.gmra.mrb[0].mxu0 %v178
  %v499 = vpop.f32.mrb[0].mxu0
  %v500 = vadd.f32 0.0, %v499
  %v501 = vpop.f32.mrb[0].mxu0
  %502 = vmatprep.mubr.f32.mxu0 0.0
  %503 = vmatmul.mubr.f32.gmra.mrb[0].mxu0 %v181
  %v504 = vpop.f32.mrb[0].mxu0
  %v505 = vadd.f32 0.0, %v504
  %v506 = vpop.f32.mrb[0].mxu0
  %507 = vmatprep.mubr.f32.mxu0 0.0
  %508 = vmatmul.mubr.f32.gmra.mrb[0].mxu0 %v184
  %v509 = vpop.f32.mrb[0].mxu0
  %v510 = vadd.f32 0.0, %v509
  %v511 = vpop.f32.mrb[0].mxu0
  %512 = vmatprep.mubr.f32.mxu0 0.0
  %513 = vmatmul.mubr.f32.gmra.mrb[0].mxu0 %v187
  %v514 = vpop.f32.mrb[0].mxu0
  %v515 = vadd.f32 0.0, %v514
  %v516 = vpop.f32.mrb[0].mxu0
  %517 = vmatprep.mubr.f32.mxu0 0.0
  %518 = vmatmul.mubr.f32.gmra.mrb[0].mxu0 %v190
  %v519 = vpop.f32.mrb[0].mxu0
  %v520 = vadd.f32 0.0, %v519
  %v521 = vpop.f32.mrb[0].mxu0
  %522 = vmatprep.mubr.f32.mxu0 0.0
  %523 = vmatmul.mubr.f32.gmra.mrb[0].mxu0 %v193
  %v524 = vpop.f32.mrb[0].mxu0
  %v525 = vadd.f32 0.0, %v524
  %v526 = vpop.f32.mrb[0].mxu0
  %527 = vmatprep.mubr.f32.mxu0 0.0
  %528 = vmatmul.mubr.f32.gmra.mrb[0].mxu0 %v196
  %v529 = vpop.f32.mrb[0].mxu0
  %v530 = vadd.f32 0.0, %v529
  %v531 = vpop.f32.mrb[0].mxu0
  %532 = vmatprep.mubr.f32.mxu0 0.0
  %533 = vmatmul.mubr.f32.gmra.mrb[0].mxu0 %v199
  %v534 = vpop.f32.mrb[0].mxu0
  %v535 = vadd.f32 0.0, %v534
  %v536 = vpop.f32.mrb[0].mxu0
  %537 = vmatprep.mubr.f32.mxu0 0.0
  %538 = vmatmul.mubr.f32.gmra.mrb[0].mxu0 %v202
  %v539 = vpop.f32.mrb[0].mxu0
  %v540 = vadd.f32 0.0, %v539
  %v541 = vpop.f32.mrb[0].mxu0
  %542 = vmatprep.mubr.f32.mxu0 0.0
  %543 = vmatmul.mubr.f32.gmra.mrb[0].mxu0 %v205
  %v544 = vpop.f32.mrb[0].mxu0
  %v545 = vadd.f32 0.0, %v544
  %v546 = vpop.f32.mrb[0].mxu0
  %547 = vmatprep.mubr.f32.mxu0 0.0
  %548 = vmatmul.mubr.f32.gmra.mrb[0].mxu0 %v208
  %v549 = vpop.f32.mrb[0].mxu0
  %v550 = vadd.f32 0.0, %v549
  %v551 = vpop.f32.mrb[0].mxu0
  %552 = vmatprep.mubr.f32.mxu0 0.0
  %553 = vmatmul.mubr.f32.gmra.mrb[0].mxu0 %v211
  %v554 = vpop.f32.mrb[0].mxu0
  %v555 = vadd.f32 0.0, %v554
  %v556 = vpop.f32.mrb[0].mxu0
  %557 = vmatprep.mubr.f32.mxu0 0.0
  %558 = vmatmul.mubr.f32.gmra.mrb[0].mxu0 %v214
  %v559 = vpop.f32.mrb[0].mxu0
  %v560 = vadd.f32 0.0, %v559
  %v561 = vpop.f32.mrb[0].mxu0
  %562 = vmatprep.mubr.f32.mxu0 0.0
  %563 = vmatmul.mubr.f32.gmra.mrb[0].mxu0 %v217
  %v564 = vpop.f32.mrb[0].mxu0
  %v565 = vadd.f32 0.0, %v564
  %v566 = vpop.f32.mrb[0].mxu0
  %567 = vmatprep.mubr.f32.mxu0 0.0
  %568 = vmatmul.mubr.f32.gmra.mrb[0].mxu0 %v220
  %v569 = vpop.f32.mrb[0].mxu0
  %v570 = vadd.f32 0.0, %v569
  %v571 = vpop.f32.mrb[0].mxu0
  %572 = vmatprep.mubr.f32.mxu0 0.0
  %573 = vmatmul.mubr.f32.gmra.mrb[0].mxu0 %v223
  %v574 = vpop.f32.mrb[0].mxu0
  %v575 = vadd.f32 0.0, %v574
  %v576 = vpop.f32.mrb[0].mxu0
  %577 = vmatprep.mubr.f32.mxu0 0.0
  %578 = vmatmul.mubr.f32.gmra.mrb[0].mxu0 %v226
  %v579 = vpop.f32.mrb[0].mxu0
  %v580 = vadd.f32 0.0, %v579
  %v581 = vpop.f32.mrb[0].mxu0
  %582 = vmatprep.mubr.f32.mxu0 0.0
  %583 = vmatmul.mubr.f32.gmra.mrb[0].mxu0 %v229
  %v584 = vpop.f32.mrb[0].mxu0
  %v585 = vadd.f32 0.0, %v584
  %v586 = vpop.f32.mrb[0].mxu0
  %587 = vmatprep.mubr.f32.mxu0 0.0
  %588 = vmatmul.mubr.f32.gmra.mrb[0].mxu0 %v232
  %v589 = vpop.f32.mrb[0].mxu0
  %v590 = vadd.f32 0.0, %v589
  %v591 = vpop.f32.mrb[0].mxu0
  %592 = vmatprep.mubr.f32.mxu0 0.0
  %593 = vmatmul.mubr.f32.gmra.mrb[0].mxu0 %v235
  %v594 = vpop.f32.mrb[0].mxu0
  %v595 = vadd.f32 0.0, %v594
  %v596 = vpop.f32.mrb[0].mxu0
  %597 = vmatprep.mubr.f32.mxu0 0.0
  %598 = vmatmul.mubr.f32.gmra.mrb[0].mxu0 %v238
  %v599 = vpop.f32.mrb[0].mxu0
  %v600 = vadd.f32 0.0, %v599
  %v601 = vpop.f32.mrb[0].mxu0
  %602 = vmatprep.mubr.f32.mxu0 0.0
  %603 = vmatmul.mubr.f32.gmra.mrb[0].mxu0 %v241
  %v604 = vpop.f32.mrb[0].mxu0
  %v605 = vadd.f32 0.0, %v604
  %v606 = vpop.f32.mrb[0].mxu0
  %607 = vmatprep.mubr.f32.mxu0 0.0
  %608 = vmatmul.mubr.f32.gmra.mrb[0].mxu0 %v244
  %v609 = vpop.f32.mrb[0].mxu0
  %v610 = vadd.f32 0.0, %v609
  %v611 = vpop.f32.mrb[0].mxu0
  %612 = vmatprep.mubr.f32.mxu0 0.0
  %613 = vmatmul.mubr.f32.gmra.mrb[0].mxu0 %v247
  %v614 = vpop.f32.mrb[0].mxu0
  %v615 = vadd.f32 0.0, %v614
  %v616 = vpop.f32.mrb[0].mxu0
  %617 = vmatprep.mubr.f32.mxu0 0.0
  %618 = vmatmul.mubr.f32.gmra.mrb[0].mxu0 %v250
  %v619 = vpop.f32.mrb[0].mxu0
  %v620 = vadd.f32 0.0, %v619
  %v621 = vpop.f32.mrb[0].mxu0
  %622 = vmatprep.mubr.f32.mxu0 0.0
  %623 = vmatmul.mubr.f32.gmra.mrb[0].mxu0 %v253
  %v624 = vpop.f32.mrb[0].mxu0
  %v625 = vadd.f32 0.0, %v624
  %v626 = vpop.f32.mrb[0].mxu0
  %627 = vmatprep.mubr.f32.mxu0 0.0
  %628 = vmatmul.mubr.f32.gmra.mrb[0].mxu0 %v256
  %v629 = vpop.f32.mrb[0].mxu0
  %v630 = vadd.f32 0.0, %v629
  %v631 = vpop.f32.mrb[0].mxu0
  %632 = vmatprep.mubr.f32.mxu0 0.0
  %633 = vmatmul.mubr.f32.gmra.mrb[0].mxu0 %v259
  %v634 = vpop.f32.mrb[0].mxu0
  %v635 = vadd.f32 0.0, %v634
  %v636 = vpop.f32.mrb[0].mxu0
  %637 = vmatprep.mubr.f32.mxu0 0.0
  %638 = vmatmul.mubr.f32.gmra.mrb[0].mxu0 %v262
  %v639 = vpop.f32.mrb[0].mxu0
  %v640 = vadd.f32 0.0, %v639
  %v641 = vpop.f32.mrb[0].mxu0
  %642 = vmatprep.mubr.f32.mxu0 0.0
  %643 = vmatmul.mubr.f32.gmra.mrb[0].mxu0 %v265
  %v644 = vpop.f32.mrb[0].mxu0
  %v645 = vadd.f32 0.0, %v644
  %v646 = vpop.f32.mrb[0].mxu0
  %647 = vmatprep.mubr.f32.mxu0 0.0
  %648 = vmatmul.mubr.f32.gmra.mrb[0].mxu0 %v268
  %v649 = vpop.f32.mrb[0].mxu0
  %v650 = vadd.f32 0.0, %v649
  %v651 = vpop.f32.mrb[0].mxu0
  %652 = vmatprep.mubr.f32.mxu0 0.0
  %653 = vmatmul.mubr.f32.gmra.mrb[0].mxu0 %v271
  %v654 = vpop.f32.mrb[0].mxu0
  %v655 = vadd.f32 0.0, %v654
  %v656 = vpop.f32.mrb[0].mxu0
  %657 = vdwg.mxu0
  %v658 = vxor.u32 %v340, 2147483648
  %v659 = vxor.u32 %v345, 2147483648
  %v660 = vxor.u32 %v350, 2147483648
  %v661 = vxor.u32 %v355, 2147483648
  %v662 = vxor.u32 %v360, 2147483648
  %v663 = vxor.u32 %v365, 2147483648
  %v664 = vxor.u32 %v370, 2147483648
  %v665 = vxor.u32 %v375, 2147483648
  %v666 = vxor.u32 %v380, 2147483648
  %v667 = vxor.u32 %v385, 2147483648
  %v668 = vxor.u32 %v390, 2147483648
  %v669 = vxor.u32 %v395, 2147483648
  %v670 = vxor.u32 %v400, 2147483648
  %v671 = vxor.u32 %v405, 2147483648
  %v672 = vxor.u32 %v410, 2147483648
  %v673 = vxor.u32 %v415, 2147483648
  %v674 = vxor.u32 %v420, 2147483648
  %v675 = vxor.u32 %v425, 2147483648
  %v676 = vxor.u32 %v430, 2147483648
  %v677 = vxor.u32 %v435, 2147483648
  %v678 = vxor.u32 %v440, 2147483648
  %v679 = vxor.u32 %v445, 2147483648
  %v680 = vxor.u32 %v450, 2147483648
  %v681 = vxor.u32 %v455, 2147483648
  %v682 = vxor.u32 %v460, 2147483648
  %v683 = vxor.u32 %v465, 2147483648
  %v684 = vxor.u32 %v470, 2147483648
  %v685 = vxor.u32 %v475, 2147483648
  %v686 = vxor.u32 %v480, 2147483648
  %v687 = vxor.u32 %v485, 2147483648
  %v688 = vxor.u32 %v490, 2147483648
  %v689 = vxor.u32 %v495, 2147483648
  %v690 = vxor.u32 %v500, 2147483648
  %v691 = vxor.u32 %v505, 2147483648
  %v692 = vxor.u32 %v510, 2147483648
  %v693 = vxor.u32 %v515, 2147483648
  %v694 = vxor.u32 %v520, 2147483648
  %v695 = vxor.u32 %v525, 2147483648
  %v696 = vxor.u32 %v530, 2147483648
  %v697 = vxor.u32 %v535, 2147483648
  %v698 = vxor.u32 %v540, 2147483648
  %v699 = vxor.u32 %v545, 2147483648
  %v700 = vxor.u32 %v550, 2147483648
  %v701 = vxor.u32 %v555, 2147483648
  %v702 = vxor.u32 %v560, 2147483648
  %v703 = vxor.u32 %v565, 2147483648
  %v704 = vxor.u32 %v570, 2147483648
  %v705 = vxor.u32 %v575, 2147483648
  %v706 = vxor.u32 %v580, 2147483648
  %v707 = vxor.u32 %v585, 2147483648
  %v708 = vxor.u32 %v590, 2147483648
  %v709 = vxor.u32 %v595, 2147483648
  %v710 = vxor.u32 %v600, 2147483648
  %v711 = vxor.u32 %v605, 2147483648
  %v712 = vxor.u32 %v610, 2147483648
  %v713 = vxor.u32 %v615, 2147483648
  %v714 = vxor.u32 %v620, 2147483648
  %v715 = vxor.u32 %v625, 2147483648
  %v716 = vxor.u32 %v630, 2147483648
  %v717 = vxor.u32 %v635, 2147483648
  %v718 = vxor.u32 %v640, 2147483648
  %v719 = vxor.u32 %v645, 2147483648
  %v720 = vxor.u32 %v650, 2147483648
  %v721 = vxor.u32 %v655, 2147483648
  %v722 = vmul.f32 %v658, 1.442695
  %v723 = vpow.pop %v722
  %v724 = vmul.f32 %v659, 1.442695
  %v725 = vpow.pop %v724
  %v726 = vmul.f32 %v660, 1.442695
  %v727 = vpow.pop %v726
  %v728 = vmul.f32 %v661, 1.442695
  %v729 = vpow.pop %v728
  %v730 = vmul.f32 %v662, 1.442695
  %v731 = vpow.pop %v730
  %v732 = vmul.f32 %v663, 1.442695
  %v733 = vpow.pop %v732
  %v734 = vmul.f32 %v664, 1.442695
  %v735 = vpow.pop %v734
  %v736 = vmul.f32 %v665, 1.442695
  %v737 = vpow.pop %v736
  %v738 = vmul.f32 %v666, 1.442695
  %v739 = vpow.pop %v738
  %v740 = vmul.f32 %v667, 1.442695
  %v741 = vpow.pop %v740
  %v742 = vmul.f32 %v668, 1.442695
  %v743 = vpow.pop %v742
  %v744 = vmul.f32 %v669, 1.442695
  %v745 = vpow.pop %v744
  %v746 = vmul.f32 %v670, 1.442695
  %v747 = vpow.pop %v746
  %v748 = vmul.f32 %v671, 1.442695
  %v749 = vpow.pop %v748
  %v750 = vmul.f32 %v672, 1.442695
  %v751 = vpow.pop %v750
  %v752 = vmul.f32 %v673, 1.442695
  %v753 = vpow.pop %v752
  %v754 = vmul.f32 %v674, 1.442695
  %v755 = vpow.pop %v754
  %v756 = vmul.f32 %v675, 1.442695
  %v757 = vpow.pop %v756
  %v758 = vmul.f32 %v676, 1.442695
  %v759 = vpow.pop %v758
  %v760 = vmul.f32 %v677, 1.442695
  %v761 = vpow.pop %v760
  %v762 = vmul.f32 %v678, 1.442695
  %v763 = vpow.pop %v762
  %v764 = vmul.f32 %v679, 1.442695
  %v765 = vpow.pop %v764
  %v766 = vmul.f32 %v680, 1.442695
  %v767 = vpow.pop %v766
  %v768 = vmul.f32 %v681, 1.442695
  %v769 = vpow.pop %v768
  %v770 = vmul.f32 %v682, 1.442695
  %v771 = vpow.pop %v770
  %v772 = vmul.f32 %v683, 1.442695
  %v773 = vpow.pop %v772
  %v774 = vmul.f32 %v684, 1.442695
  %v775 = vpow.pop %v774
  %v776 = vmul.f32 %v685, 1.442695
  %v777 = vpow.pop %v776
  %v778 = vmul.f32 %v686, 1.442695
  %v779 = vpow.pop %v778
  %v780 = vmul.f32 %v687, 1.442695
  %v781 = vpow.pop %v780
  %v782 = vmul.f32 %v688, 1.442695
  %v783 = vpow.pop %v782
  %v784 = vmul.f32 %v689, 1.442695
  %v785 = vpow.pop %v784
  %v786 = vmul.f32 %v690, 1.442695
  %v787 = vpow.pop %v786
  %v788 = vmul.f32 %v691, 1.442695
  %v789 = vpow.pop %v788
  %v790 = vmul.f32 %v692, 1.442695
  %v791 = vpow.pop %v790
  %v792 = vmul.f32 %v693, 1.442695
  %v793 = vpow.pop %v792
  %v794 = vmul.f32 %v694, 1.442695
  %v795 = vpow.pop %v794
  %v796 = vmul.f32 %v695, 1.442695
  %v797 = vpow.pop %v796
  %v798 = vmul.f32 %v696, 1.442695
  %v799 = vpow.pop %v798
  %v800 = vmul.f32 %v697, 1.442695
  %v801 = vpow.pop %v800
  %v802 = vmul.f32 %v698, 1.442695
  %v803 = vpow.pop %v802
  %v804 = vmul.f32 %v699, 1.442695
  %v805 = vpow.pop %v804
  %v806 = vmul.f32 %v700, 1.442695
  %v807 = vpow.pop %v806
  %v808 = vmul.f32 %v701, 1.442695
  %v809 = vpow.pop %v808
  %v810 = vmul.f32 %v702, 1.442695
  %v811 = vpow.pop %v810
  %v812 = vmul.f32 %v703, 1.442695
  %v813 = vpow.pop %v812
  %v814 = vmul.f32 %v704, 1.442695
  %v815 = vpow.pop %v814
  %v816 = vmul.f32 %v705, 1.442695
  %v817 = vpow.pop %v816
  %v818 = vmul.f32 %v706, 1.442695
  %v819 = vpow.pop %v818
  %v820 = vmul.f32 %v707, 1.442695
  %v821 = vpow.pop %v820
  %v822 = vmul.f32 %v708, 1.442695
  %v823 = vpow.pop %v822
  %v824 = vmul.f32 %v709, 1.442695
  %v825 = vpow.pop %v824
  %v826 = vmul.f32 %v710, 1.442695
  %v827 = vpow.pop %v826
  %v828 = vmul.f32 %v711, 1.442695
  %v829 = vpow.pop %v828
  %v830 = vmul.f32 %v712, 1.442695
  %v831 = vpow.pop %v830
  %v832 = vmul.f32 %v713, 1.442695
  %v833 = vpow.pop %v832
  %v834 = vmul.f32 %v714, 1.442695
  %v835 = vpow.pop %v834
  %v836 = vmul.f32 %v715, 1.442695
  %v837 = vpow.pop %v836
  %v838 = vmul.f32 %v716, 1.442695
  %v839 = vpow.pop %v838
  %v840 = vmul.f32 %v717, 1.442695
  %v841 = vpow.pop %v840
  %v842 = vmul.f32 %v718, 1.442695
  %v843 = vpow.pop %v842
  %v844 = vmul.f32 %v719, 1.442695
  %v845 = vpow.pop %v844
  %v846 = vmul.f32 %v720, 1.442695
  %v847 = vpow.pop %v846
  %v848 = vmul.f32 %v721, 1.442695
  %v849 = vpow.pop %v848
  %v850 = vadd.f32 %v723, 1.0
  %v851 = vadd.f32 %v725, 1.0
  %v852 = vadd.f32 %v727, 1.0
  %v853 = vadd.f32 %v729, 1.0
  %v854 = vadd.f32 %v731, 1.0
  %v855 = vadd.f32 %v733, 1.0
  %v856 = vadd.f32 %v735, 1.0
  %v857 = vadd.f32 %v737, 1.0
  %v858 = vadd.f32 %v739, 1.0
  %v859 = vadd.f32 %v741, 1.0
  %v860 = vadd.f32 %v743, 1.0
  %v861 = vadd.f32 %v745, 1.0
  %v862 = vadd.f32 %v747, 1.0
  %v863 = vadd.f32 %v749, 1.0
  %v864 = vadd.f32 %v751, 1.0
  %v865 = vadd.f32 %v753, 1.0
  %v866 = vadd.f32 %v755, 1.0
  %v867 = vadd.f32 %v757, 1.0
  %v868 = vadd.f32 %v759, 1.0
  %v869 = vadd.f32 %v761, 1.0
  %v870 = vadd.f32 %v763, 1.0
  %v871 = vadd.f32 %v765, 1.0
  %v872 = vadd.f32 %v767, 1.0
  %v873 = vadd.f32 %v769, 1.0
  %v874 = vadd.f32 %v771, 1.0
  %v875 = vadd.f32 %v773, 1.0
  %v876 = vadd.f32 %v775, 1.0
  %v877 = vadd.f32 %v777, 1.0
  %v878 = vadd.f32 %v779, 1.0
  %v879 = vadd.f32 %v781, 1.0
  %v880 = vadd.f32 %v783, 1.0
  %v881 = vadd.f32 %v785, 1.0
  %v882 = vadd.f32 %v787, 1.0
  %v883 = vadd.f32 %v789, 1.0
  %v884 = vadd.f32 %v791, 1.0
  %v885 = vadd.f32 %v793, 1.0
  %v886 = vadd.f32 %v795, 1.0
  %v887 = vadd.f32 %v797, 1.0
  %v888 = vadd.f32 %v799, 1.0
  %v889 = vadd.f32 %v801, 1.0
  %v890 = vadd.f32 %v803, 1.0
  %v891 = vadd.f32 %v805, 1.0
  %v892 = vadd.f32 %v807, 1.0
  %v893 = vadd.f32 %v809, 1.0
  %v894 = vadd.f32 %v811, 1.0
  %v895 = vadd.f32 %v813, 1.0
  %v896 = vadd.f32 %v815, 1.0
  %v897 = vadd.f32 %v817, 1.0
  %v898 = vadd.f32 %v819, 1.0
  %v899 = vadd.f32 %v821, 1.0
  %v900 = vadd.f32 %v823, 1.0
  %v901 = vadd.f32 %v825, 1.0
  %v902 = vadd.f32 %v827, 1.0
  %v903 = vadd.f32 %v829, 1.0
  %v904 = vadd.f32 %v831, 1.0
  %v905 = vadd.f32 %v833, 1.0
  %v906 = vadd.f32 %v835, 1.0
  %v907 = vadd.f32 %v837, 1.0
  %v908 = vadd.f32 %v839, 1.0
  %v909 = vadd.f32 %v841, 1.0
  %v910 = vadd.f32 %v843, 1.0
  %v911 = vadd.f32 %v845, 1.0
  %v912 = vadd.f32 %v847, 1.0
  %v913 = vadd.f32 %v849, 1.0
  %v914 = vrcp.pop %v850
  %v915 = vmul.f32 1.0, %v914
  %v916 = vrcp.pop %v851
  %v917 = vmul.f32 1.0, %v916
  %v918 = vrcp.pop %v852
  %v919 = vmul.f32 1.0, %v918
  %v920 = vrcp.pop %v853
  %v921 = vmul.f32 1.0, %v920
  %v922 = vrcp.pop %v854
  %v923 = vmul.f32 1.0, %v922
  %v924 = vrcp.pop %v855
  %v925 = vmul.f32 1.0, %v924
  %v926 = vrcp.pop %v856
  %v927 = vmul.f32 1.0, %v926
  %v928 = vrcp.pop %v857
  %v929 = vmul.f32 1.0, %v928
  %v930 = vrcp.pop %v858
  %v931 = vmul.f32 1.0, %v930
  %v932 = vrcp.pop %v859
  %v933 = vmul.f32 1.0, %v932
  %v934 = vrcp.pop %v860
  %v935 = vmul.f32 1.0, %v934
  %v936 = vrcp.pop %v861
  %v937 = vmul.f32 1.0, %v936
  %v938 = vrcp.pop %v862
  %v939 = vmul.f32 1.0, %v938
  %v940 = vrcp.pop %v863
  %v941 = vmul.f32 1.0, %v940
  %v942 = vrcp.pop %v864
  %v943 = vmul.f32 1.0, %v942
  %v944 = vrcp.pop %v865
  %v945 = vmul.f32 1.0, %v944
  %v946 = vrcp.pop %v866
  %v947 = vmul.f32 1.0, %v946
  %v948 = vrcp.pop %v867
  %v949 = vmul.f32 1.0, %v948
  %v950 = vrcp.pop %v868
  %v951 = vmul.f32 1.0, %v950
  %v952 = vrcp.pop %v869
  %v953 = vmul.f32 1.0, %v952
  %v954 = vrcp.pop %v870
  %v955 = vmul.f32 1.0, %v954
  %v956 = vrcp.pop %v871
  %v957 = vmul.f32 1.0, %v956
  %v958 = vrcp.pop %v872
  %v959 = vmul.f32 1.0, %v958
  %v960 = vrcp.pop %v873
  %v961 = vmul.f32 1.0, %v960
  %v962 = vrcp.pop %v874
  %v963 = vmul.f32 1.0, %v962
  %v964 = vrcp.pop %v875
  %v965 = vmul.f32 1.0, %v964
  %v966 = vrcp.pop %v876
  %v967 = vmul.f32 1.0, %v966
  %v968 = vrcp.pop %v877
  %v969 = vmul.f32 1.0, %v968
  %v970 = vrcp.pop %v878
  %v971 = vmul.f32 1.0, %v970
  %v972 = vrcp.pop %v879
  %v973 = vmul.f32 1.0, %v972
  %v974 = vrcp.pop %v880
  %v975 = vmul.f32 1.0, %v974
  %v976 = vrcp.pop %v881
  %v977 = vmul.f32 1.0, %v976
  %v978 = vrcp.pop %v882
  %v979 = vmul.f32 1.0, %v978
  %v980 = vrcp.pop %v883
  %v981 = vmul.f32 1.0, %v980
  %v982 = vrcp.pop %v884
  %v983 = vmul.f32 1.0, %v982
  %v984 = vrcp.pop %v885
  %v985 = vmul.f32 1.0, %v984
  %v986 = vrcp.pop %v886
  %v987 = vmul.f32 1.0, %v986
  %v988 = vrcp.pop %v887
  %v989 = vmul.f32 1.0, %v988
  %v990 = vrcp.pop %v888
  %v991 = vmul.f32 1.0, %v990
  %v992 = vrcp.pop %v889
  %v993 = vmul.f32 1.0, %v992
  %v994 = vrcp.pop %v890
  %v995 = vmul.f32 1.0, %v994
  %v996 = vrcp.pop %v891
  %v997 = vmul.f32 1.0, %v996
  %v998 = vrcp.pop %v892
  %v999 = vmul.f32 1.0, %v998
  %v1000 = vrcp.pop %v893
  %v1001 = vmul.f32 1.0, %v1000
  %v1002 = vrcp.pop %v894
  %v1003 = vmul.f32 1.0, %v1002
  %v1004 = vrcp.pop %v895
  %v1005 = vmul.f32 1.0, %v1004
  %v1006 = vrcp.pop %v896
  %v1007 = vmul.f32 1.0, %v1006
  %v1008 = vrcp.pop %v897
  %v1009 = vmul.f32 1.0, %v1008
  %v1010 = vrcp.pop %v898
  %v1011 = vmul.f32 1.0, %v1010
  %v1012 = vrcp.pop %v899
  %v1013 = vmul.f32 1.0, %v1012
  %v1014 = vrcp.pop %v900
  %v1015 = vmul.f32 1.0, %v1014
  %v1016 = vrcp.pop %v901
  %v1017 = vmul.f32 1.0, %v1016
  %v1018 = vrcp.pop %v902
  %v1019 = vmul.f32 1.0, %v1018
  %v1020 = vrcp.pop %v903
  %v1021 = vmul.f32 1.0, %v1020
  %v1022 = vrcp.pop %v904
  %v1023 = vmul.f32 1.0, %v1022
  %v1024 = vrcp.pop %v905
  %v1025 = vmul.f32 1.0, %v1024
  %v1026 = vrcp.pop %v906
  %v1027 = vmul.f32 1.0, %v1026
  %v1028 = vrcp.pop %v907
  %v1029 = vmul.f32 1.0, %v1028
  %v1030 = vrcp.pop %v908
  %v1031 = vmul.f32 1.0, %v1030
  %v1032 = vrcp.pop %v909
  %v1033 = vmul.f32 1.0, %v1032
  %v1034 = vrcp.pop %v910
  %v1035 = vmul.f32 1.0, %v1034
  %v1036 = vrcp.pop %v911
  %v1037 = vmul.f32 1.0, %v1036
  %v1038 = vrcp.pop %v912
  %v1039 = vmul.f32 1.0, %v1038
  %v1040 = vrcp.pop %v913
  %v1041 = vmul.f32 1.0, %v1040
  %vm1042 = vcmask 97280
  %1043 = vst.msk [vmem:[%s2] sm:$0xff] %vm1042, %v915
  %1044 = vst.msk [vmem:[%s2 + $0x8] sm:$0xff] %vm1042, %v917
  %1045 = vst.msk [vmem:[%s2 + $0x10] sm:$0xff] %vm1042, %v919
  %1046 = vst.msk [vmem:[%s2 + $0x18] sm:$0xff] %vm1042, %v921
  %1047 = vst.msk [vmem:[%s2 + $0x20] sm:$0xff] %vm1042, %v923
  %1048 = vst.msk [vmem:[%s2 + $0x28] sm:$0xff] %vm1042, %v925
  %1049 = vst.msk [vmem:[%s2 + $0x30] sm:$0xff] %vm1042, %v927
  %1050 = vst.msk [vmem:[%s2 + $0x38] sm:$0xff] %vm1042, %v929
  %1051 = vst.msk [vmem:[%s2 + $0x40] sm:$0xff] %vm1042, %v931
  %1052 = vst.msk [vmem:[%s2 + $0x48] sm:$0xff] %vm1042, %v933
  %1053 = vst.msk [vmem:[%s2 + $0x50] sm:$0xff] %vm1042, %v935
  %1054 = vst.msk [vmem:[%s2 + $0x58] sm:$0xff] %vm1042, %v937
  %1055 = vst.msk [vmem:[%s2 + $0x60] sm:$0xff] %vm1042, %v939
  %1056 = vst.msk [vmem:[%s2 + $0x68] sm:$0xff] %vm1042, %v941
  %1057 = vst.msk [vmem:[%s2 + $0x70] sm:$0xff] %vm1042, %v943
  %1058 = vst.msk [vmem:[%s2 + $0x78] sm:$0xff] %vm1042, %v945
  %1059 = vst.msk [vmem:[%s2 + $0x80] sm:$0xff] %vm1042, %v947
  %1060 = vst.msk [vmem:[%s2 + $0x88] sm:$0xff] %vm1042, %v949
  %1061 = vst.msk [vmem:[%s2 + $0x90] sm:$0xff] %vm1042, %v951
  %1062 = vst.msk [vmem:[%s2 + $0x98] sm:$0xff] %vm1042, %v953
  %1063 = vst.msk [vmem:[%s2 + $0xa0] sm:$0xff] %vm1042, %v955
  %1064 = vst.msk [vmem:[%s2 + $0xa8] sm:$0xff] %vm1042, %v957
  %1065 = vst.msk [vmem:[%s2 + $0xb0] sm:$0xff] %vm1042, %v959
  %1066 = vst.msk [vmem:[%s2 + $0xb8] sm:$0xff] %vm1042, %v961
  %1067 = vst.msk [vmem:[%s2 + $0xc0] sm:$0xff] %vm1042, %v963
  %1068 = vst.msk [vmem:[%s2 + $0xc8] sm:$0xff] %vm1042, %v965
  %1069 = vst.msk [vmem:[%s2 + $0xd0] sm:$0xff] %vm1042, %v967
  %1070 = vst.msk [vmem:[%s2 + $0xd8] sm:$0xff] %vm1042, %v969
  %1071 = vst.msk [vmem:[%s2 + $0xe0] sm:$0xff] %vm1042, %v971
  %1072 = vst.msk [vmem:[%s2 + $0xe8] sm:$0xff] %vm1042, %v973
  %1073 = vst.msk [vmem:[%s2 + $0xf0] sm:$0xff] %vm1042, %v975
  %1074 = vst.msk [vmem:[%s2 + $0xf8] sm:$0xff] %vm1042, %v977
  %1075 = vst.msk [vmem:[%s2 + $0x100] sm:$0xff] %vm1042, %v979
  %1076 = vst.msk [vmem:[%s2 + $0x108] sm:$0xff] %vm1042, %v981
  %1077 = vst.msk [vmem:[%s2 + $0x110] sm:$0xff] %vm1042, %v983
  %1078 = vst.msk [vmem:[%s2 + $0x118] sm:$0xff] %vm1042, %v985
  %1079 = vst.msk [vmem:[%s2 + $0x120] sm:$0xff] %vm1042, %v987
  %1080 = vst.msk [vmem:[%s2 + $0x128] sm:$0xff] %vm1042, %v989
  %1081 = vst.msk [vmem:[%s2 + $0x130] sm:$0xff] %vm1042, %v991
  %1082 = vst.msk [vmem:[%s2 + $0x138] sm:$0xff] %vm1042, %v993
  %1083 = vst.msk [vmem:[%s2 + $0x140] sm:$0xff] %vm1042, %v995
  %1084 = vst.msk [vmem:[%s2 + $0x148] sm:$0xff] %vm1042, %v997
  %1085 = vst.msk [vmem:[%s2 + $0x150] sm:$0xff] %vm1042, %v999
  %1086 = vst.msk [vmem:[%s2 + $0x158] sm:$0xff] %vm1042, %v1001
  %1087 = vst.msk [vmem:[%s2 + $0x160] sm:$0xff] %vm1042, %v1003
  %1088 = vst.msk [vmem:[%s2 + $0x168] sm:$0xff] %vm1042, %v1005
  %1089 = vst.msk [vmem:[%s2 + $0x170] sm:$0xff] %vm1042, %v1007
  %1090 = vst.msk [vmem:[%s2 + $0x178] sm:$0xff] %vm1042, %v1009
  %1091 = vst.msk [vmem:[%s2 + $0x180] sm:$0xff] %vm1042, %v1011
  %1092 = vst.msk [vmem:[%s2 + $0x188] sm:$0xff] %vm1042, %v1013
  %1093 = vst.msk [vmem:[%s2 + $0x190] sm:$0xff] %vm1042, %v1015
  %1094 = vst.msk [vmem:[%s2 + $0x198] sm:$0xff] %vm1042, %v1017
  %1095 = vst.msk [vmem:[%s2 + $0x1a0] sm:$0xff] %vm1042, %v1019
  %1096 = vst.msk [vmem:[%s2 + $0x1a8] sm:$0xff] %vm1042, %v1021
  %1097 = vst.msk [vmem:[%s2 + $0x1b0] sm:$0xff] %vm1042, %v1023
  %1098 = vst.msk [vmem:[%s2 + $0x1b8] sm:$0xff] %vm1042, %v1025
  %1099 = vst.msk [vmem:[%s2 + $0x1c0] sm:$0xff] %vm1042, %v1027
  %1100 = vst.msk [vmem:[%s2 + $0x1c8] sm:$0xff] %vm1042, %v1029
  %1101 = vst.msk [vmem:[%s2 + $0x1d0] sm:$0xff] %vm1042, %v1031
  %1102 = vst.msk [vmem:[%s2 + $0x1d8] sm:$0xff] %vm1042, %v1033
  %1103 = vst.msk [vmem:[%s2 + $0x1e0] sm:$0xff] %vm1042, %v1035
  %1104 = vst.msk [vmem:[%s2 + $0x1e8] sm:$0xff] %vm1042, %v1037
  %1105 = vst.msk [vmem:[%s2 + $0x1f0] sm:$0xff] %vm1042, %v1039
  %1106 = vst.msk [vmem:[%s2 + $0x1f8] sm:$0xff] %vm1042, %v1041
  // Predicated region
  $region10: #{rcvae_forward.25} parent=0 // pred_check
    _
  $region11: #{rcvae_forward.25} parent=0 // pred_check_branch
    %1108 = sbr.rel (0) target = $region13
  $region12: #{rcvae_forward.25} parent=0 // pred_region
    _
  $region13: #{rcvae_forward.25} parent=0 // pred_fallthru
    _
  // Predicated region
  $region14: #{rcvae_forward.25} parent=0 // pred_check
    _
  $region15: #{rcvae_forward.25} parent=0 // pred_check_branch
    %1110 = sbr.rel (0) target = $region17
  $region16: #{rcvae_forward.25} parent=0 // pred_region
    _
  $region17: #{rcvae_forward.25} parent=0 // pred_fallthru
    _

</llo_original>
